<compile_context>
chip_gen: v5e
topology: v5e:2x2
jax: 0.10.0
libtpu: 0.0.40
codegen_flags: <defaults>
</compile_context>

<pallas_src>
import functools

import jax
import jax.numpy as jnp
import numpy as np
from jax.experimental import pallas as pl
from jax.experimental.pallas import tpu as pltpu

EPS = 1e-5

# Row indices inside the packed `vecs` (17, Hp) slab of per-feature vectors.
I_NB1, I_NG, I_NBETA, I_NB2 = 0, 1, 2, 3
I_EB1, I_EG, I_EBETA, I_EB2 = 4, 5, 6, 7
I_GB1, I_GG, I_GBETA, I_GB2 = 8, 9, 10, 11
I_MB, I_CB, I_LNG, I_LNB, I_OB = 12, 13, 14, 15, 16
N_VECS = 17

PARAM_NAMES = [
    "nw1", "nb1", "ng", "nbeta", "nw2", "nb2",      # node_net MLP
    "ew1", "eb1", "eg", "ebeta", "ew2", "eb2",      # edge_net MLP
    "mw", "mb",                                      # msg_net Linear
    "gw1", "gb1", "gg", "gbeta", "gw2", "gb2",      # gate MLP
    "cw", "cb",                                      # centroid_lin Linear
    "lng", "lnb",                                    # layer_norm
    "ow", "ob",                                      # out_transform Linear
]


# ---------------------------------------------------------------------------
# Kernel
# ---------------------------------------------------------------------------
def node_block_kernel(x_ref, ea_ref, row_ref, col_ref,
                      wfn_ref, wfe_ref, whh_ref, vecs_ref, out_ref, *, hidden):
    f32, bf16 = jnp.float32, jnp.bfloat16
    Bt, N, Dn1 = x_ref.shape
    E, De = ea_ref.shape[1], ea_ref.shape[2]
    Hp = whh_ref.shape[0]
    inv_h = 1.0 / float(hidden)
    pad_lanes = float(Hp - hidden)

    def v(i):                                  # (1, Hp) f32 packed vector
        return vecs_ref[i:i + 1, :]

    def w(k):                                  # k-th (Hp, Hp) lane slab of w_hh
        return whh_ref[:, k * Hp:(k + 1) * Hp]

    def ln_relu(h, gi, bi):
        # Lanes [hidden, Hp) of `h` are exact zeros; gamma/beta are zero there
        # too, so padded lanes stay zero after LayerNorm + ReLU.  Statistics
        # are taken over the true `hidden` lanes.
        mu = jnp.sum(h, axis=-1, keepdims=True) * inv_h
        d = h - mu
        var = (jnp.sum(d * d, axis=-1, keepdims=True) - pad_lanes * mu * mu) * inv_h
        hn = d * jax.lax.rsqrt(var + EPS) * v(gi) + v(bi)
        return jnp.maximum(hn, 0.0)

    # ---- node-level fused first layer (flattened rows): [nw1 | cw | gw1(x,t)]
    xt = x_ref[...].reshape(Bt * N, Dn1).astype(bf16)
    node_first = jnp.dot(xt, wfn_ref[...], preferred_element_type=f32)   # (Bt*N, 3Hp)
    node_pre = node_first[:, :Hp] + v(I_NB1)
    centroid = node_first[:, Hp:2 * Hp] + v(I_CB)                        # centroid_lin(x)
    g_node = node_first[:, 2 * Hp:]                                      # gate's x/t part

    node_h = jnp.dot(ln_relu(node_pre, I_NG, I_NBETA).astype(bf16), w(0),
                     preferred_element_type=f32) + v(I_NB2)              # (Bt*N, Hp)

    # ---- edge-level fused first layer (flattened rows): [ew1 | gw1(edge)] ---
    ea = ea_ref[...].reshape(Bt * E, De).astype(bf16)
    edge_first = jnp.dot(ea, wfe_ref[...], preferred_element_type=f32)   # (Bt*E, 2Hp)
    edge_h = jnp.dot(ln_relu(edge_first[:, :Hp] + v(I_EB1), I_EG, I_EBETA).astype(bf16),
                     w(1), preferred_element_type=f32) + v(I_EB2)        # (Bt*E, Hp)

    # ---- per-graph fused one-hot gather over col: [node_h | g_node] ---------
    col = col_ref[...]                                                   # (Bt, E, 1) i32
    onehot_col = (jax.lax.broadcasted_iota(jnp.int32, (Bt, E, N), 2)
                  == col).astype(bf16)                                   # (Bt, E, N)
    cat_nodes = jnp.concatenate([node_h.astype(bf16), g_node.astype(bf16)],
                                axis=-1).reshape(Bt, N, 2 * Hp)
    gathered = jnp.einsum('ben,bnh->beh', onehot_col, cat_nodes,
                          preferred_element_type=f32).reshape(Bt * E, 2 * Hp)
    node_h_col = gathered[:, :Hp]
    g_col = gathered[:, Hp:]

    # gate = MLP(cat([edge_attr, x[col], node_time[col]]))
    gate_pre = edge_first[:, Hp:] + g_col + v(I_GB1)
    gate = jnp.dot(ln_relu(gate_pre, I_GG, I_GBETA).astype(bf16), w(2),
                   preferred_element_type=f32) + v(I_GB2)                # (Bt*E, Hp)

    msg = jnp.dot((edge_h * node_h_col).astype(bf16), w(3),
                  preferred_element_type=f32) + v(I_MB)                  # msg_net
    msg = msg / (1.0 + jnp.exp(-gate))                                   # exact sigmoid gate

    # ---- per-graph one-hot scatter_sum over row (dim_size = N) --------------
    row = row_ref[...]                                                   # (Bt, 1, E) i32
    onehot_row_t = (jax.lax.broadcasted_iota(jnp.int32, (Bt, N, E), 1)
                    == row).astype(bf16)                                 # (Bt, N, E)
    aggr = jnp.einsum('bne,beh->bnh', onehot_row_t,
                      msg.astype(bf16).reshape(Bt, E, Hp),
                      preferred_element_type=f32).reshape(Bt * N, Hp)

    # centroid_lin(x) + aggr -> LayerNorm -> ReLU -> out_transform
    out = ln_relu(centroid + aggr, I_LNG, I_LNB)
    final = jnp.dot(out.astype(bf16), w(4), preferred_element_type=f32) + v(I_OB)
    out_ref[...] = final.reshape(Bt, N, Hp)    # lane-dense store; wrapper slices to Dn


# ---------------------------------------------------------------------------
# Host-side packing: 26 small tensors -> 4 lane-aligned slabs (weights bf16)
# ---------------------------------------------------------------------------
def pack_params(p, node_dim, edge_dim, hidden_dim):
    Dn, De, H = node_dim, edge_dim, hidden_dim
    Hp = max(128, ((H + 127) // 128) * 128)   # lane-padded hidden dim
    assert Dn <= Hp

    def pad_w(a, rows, cols):
        return jnp.pad(a, ((0, rows - a.shape[0]), (0, cols - a.shape[1])))

    def pad_v(a):                              # (1, k) -> (1, Hp)
        return jnp.pad(a, ((0, 0), (0, Hp - a.shape[1])))

    # node-level fused first layer: [node_net.w1 | centroid_lin.w | gate.w1(x,t rows)]
    nw1 = pad_w(p["nw1"], Dn + 1, Hp)          # zero row for the appended time feature
    cw = pad_w(p["cw"], Dn + 1, Hp)
    g_xt = pad_w(p["gw1"][De:, :], Dn + 1, Hp)
    w_first_node = jnp.concatenate([nw1, cw, g_xt], axis=1).astype(jnp.bfloat16)  # (Dn+1, 3Hp)

    # edge-level fused first layer: [edge_net.w1 | gate.w1(edge rows)]
    ew1 = pad_w(p["ew1"], De, Hp)
    g_e = pad_w(p["gw1"][:De, :], De, Hp)
    w_first_edge = jnp.concatenate([ew1, g_e], axis=1).astype(jnp.bfloat16)       # (De, 2Hp)

    # hidden->hidden weights, lane-concatenated: [nw2 | ew2 | gw2 | mw | ow]
    w_hh = jnp.concatenate(
        [pad_w(p["nw2"], Hp, Hp), pad_w(p["ew2"], Hp, Hp), pad_w(p["gw2"], Hp, Hp),
         pad_w(p["mw"], Hp, Hp), pad_w(p["ow"], Hp, Hp)],
        axis=1).astype(jnp.bfloat16)                                               # (Hp, 5Hp)

    # per-feature vectors (biases / gammas / betas), zero-padded to Hp lanes so
    # padded lanes stay exactly zero through LayerNorm + ReLU.
    vecs = jnp.concatenate([
        pad_v(p["nb1"]), pad_v(p["ng"]), pad_v(p["nbeta"]), pad_v(p["nb2"]),
        pad_v(p["eb1"]), pad_v(p["eg"]), pad_v(p["ebeta"]), pad_v(p["eb2"]),
        pad_v(p["gb1"]), pad_v(p["gg"]), pad_v(p["gbeta"]), pad_v(p["gb2"]),
        pad_v(p["mb"]), pad_v(p["cb"]), pad_v(p["lng"]), pad_v(p["lnb"]), pad_v(p["ob"]),
    ], axis=0).astype(jnp.float32)                                                 # (17, Hp)

    return w_first_node, w_first_edge, w_hh, vecs, H, Hp


def _default_grid_blocks(batch):
    # v7x has 2 TensorCores/chip: a 2-way 'parallel' grid shards the batch
    # across them.  v5e/v6e have a single TC where extra grid steps are pure
    # serial overhead, so stay at one block.
    try:
        kind = jax.devices()[0].device_kind.lower()
        if "v7" in kind and batch % 2 == 0:
            return 2
    except Exception:
        pass
    return 1


# ---------------------------------------------------------------------------
# Wrapper
# ---------------------------------------------------------------------------
def node_block(x, edge_index, edge_attr, node_time, packed):
    """Batched NodeBlock forward. x:(B,N,Dn), edge_index:(B,2,E), edge_attr:(B,E,De),
    node_time:(B,N,1). Returns (B,N,Dn)."""
    wfn, wfe, whh, vecs, H, Hp = packed
    B, N, Dn = x.shape
    _, E, De = edge_attr.shape

    # Wrapper-side concat fuses into the producing XLA ops (free); drops an
    # in-kernel lane concat and a sub-(8,128) input.
    xt = jnp.concatenate([x, node_time], axis=-1)                       # (B, N, Dn+1)
    row = edge_index[:, 0, :].astype(jnp.int32).reshape(B, 1, E)
    col = edge_index[:, 1, :].astype(jnp.int32).reshape(B, E, 1)

    G = _default_grid_blocks(B)
    Bt = B // G

    def data_spec(shape):
        nd = len(shape)
        return pl.BlockSpec((Bt,) + tuple(shape[1:]),
                            lambda g, nd=nd: (g,) + (0,) * (nd - 1))

    def param_spec(shape):
        nd = len(shape)
        return pl.BlockSpec(tuple(shape), lambda g, nd=nd: (0,) * nd)

    args = (xt, edge_attr, row, col, wfn, wfe, whh, vecs)

    # Advisory cost estimate (~2*matmul flops with padded widths, exp count, I/O bytes).
    flops = 2 * B * (
        N * (Dn + 1) * 3 * Hp        # fused node first layer
        + N * Hp * Hp                # node_net second linear
        + E * De * 2 * Hp            # fused edge first layer
        + 3 * E * Hp * Hp            # edge_net / gate second linear, msg_net
        + E * N * 2 * Hp             # fused one-hot gather
        + N * E * Hp                 # one-hot scatter_sum
        + N * Hp * Hp)               # out_transform
    transcendentals = B * E * Hp
    param_bytes = sum(int(a.size) * a.dtype.itemsize for a in (wfn, wfe, whh, vecs))
    io_bytes = sum(int(a.size) * a.dtype.itemsize for a in (xt, edge_attr, row, col))
    bytes_accessed = param_bytes * G + io_bytes + B * N * Hp * 4

    # Explicit scoped-VMEM budget: double-buffered blocks + params + a rough
    # bound on live activations / one-hots, clamped to stay inside v7x's 64 MiB.
    per_step_io = io_bytes // G + Bt * N * Hp * 4
    act_bytes = (Bt * N * 8 * Hp + Bt * E * 10 * Hp + 4 * Bt * E * N) * 4
    vmem_limit = int(min(max(2 * (param_bytes + per_step_io) + act_bytes + (4 << 20),
                             32 << 20), 64 << 20))

    out = pl.pallas_call(
        functools.partial(node_block_kernel, hidden=H),
        out_shape=jax.ShapeDtypeStruct((B, N, Hp), jnp.float32),
        grid_spec=pltpu.PrefetchScalarGridSpec(
            num_scalar_prefetch=0,
            grid=(G,),
            in_specs=[data_spec(xt.shape), data_spec(edge_attr.shape),
                      data_spec(row.shape), data_spec(col.shape),
                      param_spec(wfn.shape), param_spec(wfe.shape),
                      param_spec(whh.shape), param_spec(vecs.shape)],
            out_specs=pl.BlockSpec((Bt, N, Hp), lambda g: (g, 0, 0)),
        ),
        compiler_params=pltpu.CompilerParams(
            dimension_semantics=("parallel",),
            vmem_limit_bytes=vmem_limit),
        cost_estimate=pl.CostEstimate(flops=int(flops),
                                      transcendentals=int(transcendentals),
                                      bytes_accessed=int(bytes_accessed)),
    )(*args)
    return out[:, :, :Dn]          # lane-dense kernel output; cheap XLA slice


# ---------------------------------------------------------------------------
# Pure-JAX reference (mirrors the PyTorch forward, f32 throughout)
# ---------------------------------------------------------------------------
def node_block_ref(x, edge_index, edge_attr, node_time, p):
    row, col = edge_index[0], edge_index[1]
    N = x.shape[0]

    def mlp(h, w1, b1, g, beta, w2, b2):
        h = h @ w1 + b1
        mu = h.mean(-1, keepdims=True)
        var = ((h - mu) ** 2).mean(-1, keepdims=True)
        h = (h - mu) / jnp.sqrt(var + EPS) * g + beta
        h = jnp.maximum(h, 0.0)
        return h @ w2 + b2

    node_h = mlp(x, p["nw1"], p["nb1"], p["ng"], p["nbeta"], p["nw2"], p["nb2"])
    edge_h = mlp(edge_attr, p["ew1"], p["eb1"], p["eg"], p["ebeta"], p["ew2"], p["eb2"])
    msg_j = (edge_h * node_h[col]) @ p["mw"] + p["mb"]
    gate_in = jnp.concatenate([edge_attr, x[col], node_time[col]], axis=-1)
    gate = mlp(gate_in, p["gw1"], p["gb1"], p["gg"], p["gbeta"], p["gw2"], p["gb2"])
    msg_j = msg_j * jax.nn.sigmoid(gate)
    aggr = jnp.zeros((N, msg_j.shape[-1]), jnp.float32).at[row].add(msg_j)
    out = x @ p["cw"] + p["cb"] + aggr
    mu = out.mean(-1, keepdims=True)
    var = ((out - mu) ** 2).mean(-1, keepdims=True)
    out = (out - mu) / jnp.sqrt(var + EPS) * p["lng"] + p["lnb"]
    out = jnp.maximum(out, 0.0)
    return out @ p["ow"] + p["ob"]


def init_params(key, node_dim, edge_dim, hidden_dim):
    gate_in = edge_dim + node_dim + 1
    shapes = {
        "nw1": (node_dim, hidden_dim), "nb1": (1, hidden_dim),
        "ng": (1, hidden_dim), "nbeta": (1, hidden_dim),
        "nw2": (hidden_dim, hidden_dim), "nb2": (1, hidden_dim),
        "ew1": (edge_dim, hidden_dim), "eb1": (1, hidden_dim),
        "eg": (1, hidden_dim), "ebeta": (1, hidden_dim),
        "ew2": (hidden_dim, hidden_dim), "eb2": (1, hidden_dim),
        "mw": (hidden_dim, hidden_dim), "mb": (1, hidden_dim),
        "gw1": (gate_in, hidden_dim), "gb1": (1, hidden_dim),
        "gg": (1, hidden_dim), "gbeta": (1, hidden_dim),
        "gw2": (hidden_dim, hidden_dim), "gb2": (1, hidden_dim),
        "cw": (node_dim, hidden_dim), "cb": (1, hidden_dim),
        "lng": (1, hidden_dim), "lnb": (1, hidden_dim),
        "ow": (hidden_dim, node_dim), "ob": (1, node_dim),
    }
    ln_gamma = {"ng", "eg", "gg", "lng"}
    ln_beta = {"nbeta", "ebeta", "gbeta", "lnb"}
    biases = {"nb1", "nb2", "eb1", "eb2", "gb1", "gb2", "mb", "cb", "ob"}

    params = {}
    keys = jax.random.split(key, len(PARAM_NAMES))
    for k, name in zip(keys, PARAM_NAMES):
        if name in ln_gamma:
            params[name] = jnp.ones(shapes[name], jnp.float32)
        elif name in ln_beta:
            params[name] = jnp.zeros(shapes[name], jnp.float32)
        elif name in biases:
            params[name] = 0.05 * jax.random.normal(k, shapes[name], jnp.float32)
        else:
            params[name] = 0.2 * jax.random.normal(k, shapes[name], jnp.float32)
    return params


if __name__ == "__main__":
    B, N, E = 4, 16, 48
    node_dim, edge_dim, hidden_dim = 8, 4, 32

    key = jax.random.PRNGKey(0)
    kx, ke, kt, ki, kp = jax.random.split(key, 5)

    x = jax.random.normal(kx, (B, N, node_dim), jnp.float32)
    edge_attr = jax.random.normal(ke, (B, E, edge_dim), jnp.float32)
    node_time = jax.random.normal(kt, (B, N, 1), jnp.float32)
    edge_index = jax.random.randint(ki, (B, 2, E), 0, N, jnp.int32)
    params = init_params(kp, node_dim, edge_dim, hidden_dim)
    packed = pack_params(params, node_dim, edge_dim, hidden_dim)

    out = node_block(x, edge_index, edge_attr, node_time, packed)
    out = jax.block_until_ready(out)

    ref = jax.vmap(node_block_ref, in_axes=(0, 0, 0, 0, None))(
        x, edge_index, edge_attr, node_time, params)

    assert out.shape == (B, N, node_dim)
    err = float(np.max(np.abs(np.asarray(out) - np.asarray(ref))))
    # bf16 MXU operands (f32 accumulation) vs the pure-f32 reference => looser tolerance.
    assert np.allclose(np.asarray(out), np.asarray(ref), atol=5e-2, rtol=5e-2), err
    print("KERNEL_OK")
</pallas_src>

<mosaic_0001>
module attributes {stable_mosaic.version = 11 : i64} {
  func.func @node_block_kernel(%arg0: i32, %arg1: memref<4x16x9xf32, #tpu.memory_space<vmem>>, %arg2: memref<4x48x4xf32, #tpu.memory_space<vmem>>, %arg3: memref<4x1x48xi32, #tpu.memory_space<vmem>>, %arg4: memref<4x48x1xi32, #tpu.memory_space<vmem>>, %arg5: memref<9x384xbf16, #tpu.memory_space<vmem>>, %arg6: memref<4x256xbf16, #tpu.memory_space<vmem>>, %arg7: memref<128x640xbf16, #tpu.memory_space<vmem>>, %arg8: memref<17x128xf32, #tpu.memory_space<vmem>>, %arg9: memref<4x16x128xf32, #tpu.memory_space<vmem>>) attributes {dimension_semantics = [#tpu.dimension_semantics<parallel>], iteration_bounds = array<i64: 1>, scalar_prefetch = 0 : i64, scratch_operands = 0 : i64, tpu.core_type = #tpu.core_type<tc>, window_params = [{transform_indices = @transform_0, window_bounds = array<i64: 4, 16, 9>}, {transform_indices = @transform_1, window_bounds = array<i64: 4, 48, 4>}, {transform_indices = @transform_2, window_bounds = array<i64: 4, 1, 48>}, {transform_indices = @transform_3, window_bounds = array<i64: 4, 48, 1>}, {pipeline_mode = #tpu.pipeline_mode<synchronous>, transform_indices = @transform_4, window_bounds = array<i64: 9, 384>}, {pipeline_mode = #tpu.pipeline_mode<synchronous>, transform_indices = @transform_5, window_bounds = array<i64: 4, 256>}, {pipeline_mode = #tpu.pipeline_mode<synchronous>, transform_indices = @transform_6, window_bounds = array<i64: 128, 640>}, {pipeline_mode = #tpu.pipeline_mode<synchronous>, transform_indices = @transform_7, window_bounds = array<i64: 17, 128>}, {transform_indices = @transform_8, window_bounds = array<i64: 4, 16, 128>}]} {
    %c0 = arith.constant 0 : index
    %c0_0 = arith.constant 0 : index
    %c0_1 = arith.constant 0 : index
    %0 = vector.load %arg1[%c0, %c0_0, %c0_1] : memref<4x16x9xf32, #tpu.memory_space<vmem>>, vector<4x16x9xf32>
    %1 = vector.shape_cast %0 : vector<4x16x9xf32> to vector<64x9xf32>
    %2 = arith.truncf %1 : vector<64x9xf32> to vector<64x9xbf16>
    %c0_2 = arith.constant 0 : index
    %c0_3 = arith.constant 0 : index
    %3 = vector.load %arg5[%c0_2, %c0_3] : memref<9x384xbf16, #tpu.memory_space<vmem>>, vector<9x384xbf16>
    %cst = arith.constant dense<0.000000e+00> : vector<64x384xf32>
    %4 = tpu.matmul %2, %3, %cst {dimension_numbers = #tpu.dot_dimension_numbers<[1], [0], [0], [1], [0, 0, 1, 1], [], []>} : vector<64x9xbf16>, vector<9x384xbf16>, vector<64x384xf32> -> vector<64x384xf32>
    %5 = vector.extract_strided_slice %4 {offsets = [0, 0], sizes = [64, 128], strides = [1, 1]} : vector<64x384xf32> to vector<64x128xf32>
    %c0_4 = arith.constant 0 : index
    %c0_5 = arith.constant 0 : index
    %6 = vector.load %arg8[%c0_4, %c0_5] : memref<17x128xf32, #tpu.memory_space<vmem>>, vector<1x128xf32>
    %7 = vector.broadcast %6 : vector<1x128xf32> to vector<64x128xf32>
    %8 = arith.addf %5, %7 : vector<64x128xf32>
    %9 = vector.extract_strided_slice %4 {offsets = [0, 128], sizes = [64, 128], strides = [1, 1]} : vector<64x384xf32> to vector<64x128xf32>
    %c13 = arith.constant 13 : index
    %c0_6 = arith.constant 0 : index
    %10 = vector.load %arg8[%c13, %c0_6] : memref<17x128xf32, #tpu.memory_space<vmem>>, vector<1x128xf32>
    %11 = vector.broadcast %10 : vector<1x128xf32> to vector<64x128xf32>
    %12 = arith.addf %9, %11 : vector<64x128xf32>
    %13 = vector.extract_strided_slice %4 {offsets = [0, 256], sizes = [64, 128], strides = [1, 1]} : vector<64x384xf32> to vector<64x128xf32>
    %cst_7 = arith.constant dense<0.000000e+00> : vector<64xf32>
    %14 = vector.multi_reduction <add>, %8, %cst_7 [1] : vector<64x128xf32> to vector<64xf32>
    %15 = vector.shape_cast %14 : vector<64xf32> to vector<64x1xf32>
    %cst_8 = arith.constant 3.125000e-02 : f32
    %16 = vector.broadcast %cst_8 : f32 to vector<64x1xf32>
    %17 = arith.mulf %15, %16 : vector<64x1xf32>
    %18 = vector.broadcast %17 : vector<64x1xf32> to vector<64x128xf32>
    %19 = arith.subf %8, %18 : vector<64x128xf32>
    %20 = arith.mulf %19, %19 : vector<64x128xf32>
    %cst_9 = arith.constant dense<0.000000e+00> : vector<64xf32>
    %21 = vector.multi_reduction <add>, %20, %cst_9 [1] : vector<64x128xf32> to vector<64xf32>
    %22 = vector.shape_cast %21 : vector<64xf32> to vector<64x1xf32>
    %cst_10 = arith.constant 9.600000e+01 : f32
    %23 = vector.broadcast %cst_10 : f32 to vector<64x1xf32>
    %24 = arith.mulf %23, %17 : vector<64x1xf32>
    %25 = arith.mulf %24, %17 : vector<64x1xf32>
    %26 = arith.subf %22, %25 : vector<64x1xf32>
    %cst_11 = arith.constant 3.125000e-02 : f32
    %27 = vector.broadcast %cst_11 : f32 to vector<64x1xf32>
    %28 = arith.mulf %26, %27 : vector<64x1xf32>
    %cst_12 = arith.constant 9.99999974E-6 : f32
    %29 = vector.broadcast %cst_12 : f32 to vector<64x1xf32>
    %30 = arith.addf %28, %29 : vector<64x1xf32>
    %31 = math.rsqrt %30 : vector<64x1xf32>
    %32 = vector.broadcast %31 : vector<64x1xf32> to vector<64x128xf32>
    %33 = arith.mulf %19, %32 : vector<64x128xf32>
    %c1 = arith.constant 1 : index
    %c0_13 = arith.constant 0 : index
    %34 = vector.load %arg8[%c1, %c0_13] : memref<17x128xf32, #tpu.memory_space<vmem>>, vector<1x128xf32>
    %35 = vector.broadcast %34 : vector<1x128xf32> to vector<64x128xf32>
    %36 = arith.mulf %33, %35 : vector<64x128xf32>
    %c2 = arith.constant 2 : index
    %c0_14 = arith.constant 0 : index
    %37 = vector.load %arg8[%c2, %c0_14] : memref<17x128xf32, #tpu.memory_space<vmem>>, vector<1x128xf32>
    %38 = vector.broadcast %37 : vector<1x128xf32> to vector<64x128xf32>
    %39 = arith.addf %36, %38 : vector<64x128xf32>
    %cst_15 = arith.constant 0.000000e+00 : f32
    %40 = vector.broadcast %cst_15 : f32 to vector<64x128xf32>
    %41 = arith.maximumf %39, %40 : vector<64x128xf32>
    %42 = arith.truncf %41 : vector<64x128xf32> to vector<64x128xbf16>
    %c0_16 = arith.constant 0 : index
    %c0_17 = arith.constant 0 : index
    %43 = vector.load %arg7[%c0_16, %c0_17] : memref<128x640xbf16, #tpu.memory_space<vmem>>, vector<128x128xbf16>
    %cst_18 = arith.constant dense<0.000000e+00> : vector<64x128xf32>
    %44 = tpu.matmul %42, %43, %cst_18 {dimension_numbers = #tpu.dot_dimension_numbers<[1], [0], [0], [1], [0, 0, 1, 1], [], []>} : vector<64x128xbf16>, vector<128x128xbf16>, vector<64x128xf32> -> vector<64x128xf32>
    %c3 = arith.constant 3 : index
    %c0_19 = arith.constant 0 : index
    %45 = vector.load %arg8[%c3, %c0_19] : memref<17x128xf32, #tpu.memory_space<vmem>>, vector<1x128xf32>
    %46 = vector.broadcast %45 : vector<1x128xf32> to vector<64x128xf32>
    %47 = arith.addf %44, %46 : vector<64x128xf32>
    %c0_20 = arith.constant 0 : index
    %c0_21 = arith.constant 0 : index
    %c0_22 = arith.constant 0 : index
    %48 = vector.load %arg2[%c0_20, %c0_21, %c0_22] : memref<4x48x4xf32, #tpu.memory_space<vmem>>, vector<4x48x4xf32>
    %49 = vector.shape_cast %48 : vector<4x48x4xf32> to vector<192x4xf32>
    %50 = arith.truncf %49 : vector<192x4xf32> to vector<192x4xbf16>
    %c0_23 = arith.constant 0 : index
    %c0_24 = arith.constant 0 : index
    %51 = vector.load %arg6[%c0_23, %c0_24] : memref<4x256xbf16, #tpu.memory_space<vmem>>, vector<4x256xbf16>
    %cst_25 = arith.constant dense<0.000000e+00> : vector<192x256xf32>
    %52 = tpu.matmul %50, %51, %cst_25 {dimension_numbers = #tpu.dot_dimension_numbers<[1], [0], [0], [1], [0, 0, 1, 1], [], []>} : vector<192x4xbf16>, vector<4x256xbf16>, vector<192x256xf32> -> vector<192x256xf32>
    %53 = vector.extract_strided_slice %52 {offsets = [0, 0], sizes = [192, 128], strides = [1, 1]} : vector<192x256xf32> to vector<192x128xf32>
    %c4 = arith.constant 4 : index
    %c0_26 = arith.constant 0 : index
    %54 = vector.load %arg8[%c4, %c0_26] : memref<17x128xf32, #tpu.memory_space<vmem>>, vector<1x128xf32>
    %55 = vector.broadcast %54 : vector<1x128xf32> to vector<192x128xf32>
    %56 = arith.addf %53, %55 : vector<192x128xf32>
    %cst_27 = arith.constant dense<0.000000e+00> : vector<192xf32>
    %57 = vector.multi_reduction <add>, %56, %cst_27 [1] : vector<192x128xf32> to vector<192xf32>
    %58 = vector.shape_cast %57 : vector<192xf32> to vector<192x1xf32>
    %cst_28 = arith.constant 3.125000e-02 : f32
    %59 = vector.broadcast %cst_28 : f32 to vector<192x1xf32>
    %60 = arith.mulf %58, %59 : vector<192x1xf32>
    %61 = vector.broadcast %60 : vector<192x1xf32> to vector<192x128xf32>
    %62 = arith.subf %56, %61 : vector<192x128xf32>
    %63 = arith.mulf %62, %62 : vector<192x128xf32>
    %cst_29 = arith.constant dense<0.000000e+00> : vector<192xf32>
    %64 = vector.multi_reduction <add>, %63, %cst_29 [1] : vector<192x128xf32> to vector<192xf32>
    %65 = vector.shape_cast %64 : vector<192xf32> to vector<192x1xf32>
    %cst_30 = arith.constant 9.600000e+01 : f32
    %66 = vector.broadcast %cst_30 : f32 to vector<192x1xf32>
    %67 = arith.mulf %66, %60 : vector<192x1xf32>
    %68 = arith.mulf %67, %60 : vector<192x1xf32>
    %69 = arith.subf %65, %68 : vector<192x1xf32>
    %cst_31 = arith.constant 3.125000e-02 : f32
    %70 = vector.broadcast %cst_31 : f32 to vector<192x1xf32>
    %71 = arith.mulf %69, %70 : vector<192x1xf32>
    %cst_32 = arith.constant 9.99999974E-6 : f32
    %72 = vector.broadcast %cst_32 : f32 to vector<192x1xf32>
    %73 = arith.addf %71, %72 : vector<192x1xf32>
    %74 = math.rsqrt %73 : vector<192x1xf32>
    %75 = vector.broadcast %74 : vector<192x1xf32> to vector<192x128xf32>
    %76 = arith.mulf %62, %75 : vector<192x128xf32>
    %c5 = arith.constant 5 : index
    %c0_33 = arith.constant 0 : index
    %77 = vector.load %arg8[%c5, %c0_33] : memref<17x128xf32, #tpu.memory_space<vmem>>, vector<1x128xf32>
    %78 = vector.broadcast %77 : vector<1x128xf32> to vector<192x128xf32>
    %79 = arith.mulf %76, %78 : vector<192x128xf32>
    %c6 = arith.constant 6 : index
    %c0_34 = arith.constant 0 : index
    %80 = vector.load %arg8[%c6, %c0_34] : memref<17x128xf32, #tpu.memory_space<vmem>>, vector<1x128xf32>
    %81 = vector.broadcast %80 : vector<1x128xf32> to vector<192x128xf32>
    %82 = arith.addf %79, %81 : vector<192x128xf32>
    %cst_35 = arith.constant 0.000000e+00 : f32
    %83 = vector.broadcast %cst_35 : f32 to vector<192x128xf32>
    %84 = arith.maximumf %82, %83 : vector<192x128xf32>
    %85 = arith.truncf %84 : vector<192x128xf32> to vector<192x128xbf16>
    %c0_36 = arith.constant 0 : index
    %c128 = arith.constant 128 : index
    %86 = vector.load %arg7[%c0_36, %c128] : memref<128x640xbf16, #tpu.memory_space<vmem>>, vector<128x128xbf16>
    %cst_37 = arith.constant dense<0.000000e+00> : vector<192x128xf32>
    %87 = tpu.matmul %85, %86, %cst_37 {dimension_numbers = #tpu.dot_dimension_numbers<[1], [0], [0], [1], [0, 0, 1, 1], [], []>} : vector<192x128xbf16>, vector<128x128xbf16>, vector<192x128xf32> -> vector<192x128xf32>
    %c7 = arith.constant 7 : index
    %c0_38 = arith.constant 0 : index
    %88 = vector.load %arg8[%c7, %c0_38] : memref<17x128xf32, #tpu.memory_space<vmem>>, vector<1x128xf32>
    %89 = vector.broadcast %88 : vector<1x128xf32> to vector<192x128xf32>
    %90 = arith.addf %87, %89 : vector<192x128xf32>
    %c0_39 = arith.constant 0 : index
    %c0_40 = arith.constant 0 : index
    %c0_41 = arith.constant 0 : index
    %91 = vector.load %arg4[%c0_39, %c0_40, %c0_41] : memref<4x48x1xi32, #tpu.memory_space<vmem>>, vector<4x48x1xi32>
    %92 = tpu.iota {dimensions = array<i32: 2>} : vector<4x48x16xi32>
    %93 = vector.broadcast %91 : vector<4x48x1xi32> to vector<4x48x16xi32>
    %94 = arith.cmpi eq, %92, %93 : vector<4x48x16xi32>
    %95 = arith.extui %94 : vector<4x48x16xi1> to vector<4x48x16xi32>
    %96 = arith.sitofp %95 : vector<4x48x16xi32> to vector<4x48x16xf32>
    %97 = arith.truncf %96 : vector<4x48x16xf32> to vector<4x48x16xbf16>
    %98 = arith.truncf %47 : vector<64x128xf32> to vector<64x128xbf16>
    %99 = arith.truncf %13 : vector<64x128xf32> to vector<64x128xbf16>
    %100 = tpu.concatenate %98, %99 in 1 : vector<64x128xbf16>, vector<64x128xbf16> -> vector<64x256xbf16>
    %101 = vector.shape_cast %100 : vector<64x256xbf16> to vector<4x16x256xbf16>
    "tpu.trace_start"() <{level = 10 : i32, message = "ben,bnh->beh"}> : () -> ()
    %cst_42 = arith.constant dense<0.000000e+00> : vector<4x48x256xf32>
    %102 = tpu.matmul %97, %101, %cst_42 {dimension_numbers = #tpu.dot_dimension_numbers<[2], [1], [1], [2], [0, 0, 0, 1, 1, 2], [0], [0]>} : vector<4x48x16xbf16>, vector<4x16x256xbf16>, vector<4x48x256xf32> -> vector<4x48x256xf32>
    "tpu.trace_stop"() : () -> ()
    %103 = vector.shape_cast %102 : vector<4x48x256xf32> to vector<192x256xf32>
    %104 = vector.extract_strided_slice %103 {offsets = [0, 0], sizes = [192, 128], strides = [1, 1]} : vector<192x256xf32> to vector<192x128xf32>
    %105 = vector.extract_strided_slice %103 {offsets = [0, 128], sizes = [192, 128], strides = [1, 1]} : vector<192x256xf32> to vector<192x128xf32>
    %106 = vector.extract_strided_slice %52 {offsets = [0, 128], sizes = [192, 128], strides = [1, 1]} : vector<192x256xf32> to vector<192x128xf32>
    %107 = arith.addf %106, %105 : vector<192x128xf32>
    %c8 = arith.constant 8 : index
    %c0_43 = arith.constant 0 : index
    %108 = vector.load %arg8[%c8, %c0_43] : memref<17x128xf32, #tpu.memory_space<vmem>>, vector<1x128xf32>
    %109 = vector.broadcast %108 : vector<1x128xf32> to vector<192x128xf32>
    %110 = arith.addf %107, %109 : vector<192x128xf32>
    %cst_44 = arith.constant dense<0.000000e+00> : vector<192xf32>
    %111 = vector.multi_reduction <add>, %110, %cst_44 [1] : vector<192x128xf32> to vector<192xf32>
    %112 = vector.shape_cast %111 : vector<192xf32> to vector<192x1xf32>
    %cst_45 = arith.constant 3.125000e-02 : f32
    %113 = vector.broadcast %cst_45 : f32 to vector<192x1xf32>
    %114 = arith.mulf %112, %113 : vector<192x1xf32>
    %115 = vector.broadcast %114 : vector<192x1xf32> to vector<192x128xf32>
    %116 = arith.subf %110, %115 : vector<192x128xf32>
    %117 = arith.mulf %116, %116 : vector<192x128xf32>
    %cst_46 = arith.constant dense<0.000000e+00> : vector<192xf32>
    %118 = vector.multi_reduction <add>, %117, %cst_46 [1] : vector<192x128xf32> to vector<192xf32>
    %119 = vector.shape_cast %118 : vector<192xf32> to vector<192x1xf32>
    %cst_47 = arith.constant 9.600000e+01 : f32
    %120 = vector.broadcast %cst_47 : f32 to vector<192x1xf32>
    %121 = arith.mulf %120, %114 : vector<192x1xf32>
    %122 = arith.mulf %121, %114 : vector<192x1xf32>
    %123 = arith.subf %119, %122 : vector<192x1xf32>
    %cst_48 = arith.constant 3.125000e-02 : f32
    %124 = vector.broadcast %cst_48 : f32 to vector<192x1xf32>
    %125 = arith.mulf %123, %124 : vector<192x1xf32>
    %cst_49 = arith.constant 9.99999974E-6 : f32
    %126 = vector.broadcast %cst_49 : f32 to vector<192x1xf32>
    %127 = arith.addf %125, %126 : vector<192x1xf32>
    %128 = math.rsqrt %127 : vector<192x1xf32>
    %129 = vector.broadcast %128 : vector<192x1xf32> to vector<192x128xf32>
    %130 = arith.mulf %116, %129 : vector<192x128xf32>
    %c9 = arith.constant 9 : index
    %c0_50 = arith.constant 0 : index
    %131 = vector.load %arg8[%c9, %c0_50] : memref<17x128xf32, #tpu.memory_space<vmem>>, vector<1x128xf32>
    %132 = vector.broadcast %131 : vector<1x128xf32> to vector<192x128xf32>
    %133 = arith.mulf %130, %132 : vector<192x128xf32>
    %c10 = arith.constant 10 : index
    %c0_51 = arith.constant 0 : index
    %134 = vector.load %arg8[%c10, %c0_51] : memref<17x128xf32, #tpu.memory_space<vmem>>, vector<1x128xf32>
    %135 = vector.broadcast %134 : vector<1x128xf32> to vector<192x128xf32>
    %136 = arith.addf %133, %135 : vector<192x128xf32>
    %cst_52 = arith.constant 0.000000e+00 : f32
    %137 = vector.broadcast %cst_52 : f32 to vector<192x128xf32>
    %138 = arith.maximumf %136, %137 : vector<192x128xf32>
    %139 = arith.truncf %138 : vector<192x128xf32> to vector<192x128xbf16>
    %c0_53 = arith.constant 0 : index
    %c256 = arith.constant 256 : index
    %140 = vector.load %arg7[%c0_53, %c256] : memref<128x640xbf16, #tpu.memory_space<vmem>>, vector<128x128xbf16>
    %cst_54 = arith.constant dense<0.000000e+00> : vector<192x128xf32>
    %141 = tpu.matmul %139, %140, %cst_54 {dimension_numbers = #tpu.dot_dimension_numbers<[1], [0], [0], [1], [0, 0, 1, 1], [], []>} : vector<192x128xbf16>, vector<128x128xbf16>, vector<192x128xf32> -> vector<192x128xf32>
    %c11 = arith.constant 11 : index
    %c0_55 = arith.constant 0 : index
    %142 = vector.load %arg8[%c11, %c0_55] : memref<17x128xf32, #tpu.memory_space<vmem>>, vector<1x128xf32>
    %143 = vector.broadcast %142 : vector<1x128xf32> to vector<192x128xf32>
    %144 = arith.addf %141, %143 : vector<192x128xf32>
    %145 = arith.mulf %90, %104 : vector<192x128xf32>
    %146 = arith.truncf %145 : vector<192x128xf32> to vector<192x128xbf16>
    %c0_56 = arith.constant 0 : index
    %c384 = arith.constant 384 : index
    %147 = vector.load %arg7[%c0_56, %c384] : memref<128x640xbf16, #tpu.memory_space<vmem>>, vector<128x128xbf16>
    %cst_57 = arith.constant dense<0.000000e+00> : vector<192x128xf32>
    %148 = tpu.matmul %146, %147, %cst_57 {dimension_numbers = #tpu.dot_dimension_numbers<[1], [0], [0], [1], [0, 0, 1, 1], [], []>} : vector<192x128xbf16>, vector<128x128xbf16>, vector<192x128xf32> -> vector<192x128xf32>
    %c12 = arith.constant 12 : index
    %c0_58 = arith.constant 0 : index
    %149 = vector.load %arg8[%c12, %c0_58] : memref<17x128xf32, #tpu.memory_space<vmem>>, vector<1x128xf32>
    %150 = vector.broadcast %149 : vector<1x128xf32> to vector<192x128xf32>
    %151 = arith.addf %148, %150 : vector<192x128xf32>
    %cst_59 = arith.constant 0.000000e+00 : f32
    %152 = vector.broadcast %cst_59 : f32 to vector<192x128xf32>
    %153 = arith.subf %152, %144 : vector<192x128xf32>
    %154 = math.exp %153 : vector<192x128xf32>
    %cst_60 = arith.constant 1.000000e+00 : f32
    %155 = vector.broadcast %cst_60 : f32 to vector<192x128xf32>
    %156 = arith.addf %155, %154 : vector<192x128xf32>
    %157 = arith.divf %151, %156 : vector<192x128xf32>
    %c0_61 = arith.constant 0 : index
    %c0_62 = arith.constant 0 : index
    %c0_63 = arith.constant 0 : index
    %158 = vector.load %arg3[%c0_61, %c0_62, %c0_63] : memref<4x1x48xi32, #tpu.memory_space<vmem>>, vector<4x1x48xi32>
    %159 = tpu.iota {dimensions = array<i32: 1>} : vector<4x16x48xi32>
    %160 = vector.broadcast %158 : vector<4x1x48xi32> to vector<4x16x48xi32>
    %161 = arith.cmpi eq, %159, %160 : vector<4x16x48xi32>
    %162 = arith.extui %161 : vector<4x16x48xi1> to vector<4x16x48xi32>
    %163 = arith.sitofp %162 : vector<4x16x48xi32> to vector<4x16x48xf32>
    %164 = arith.truncf %163 : vector<4x16x48xf32> to vector<4x16x48xbf16>
    %165 = arith.truncf %157 : vector<192x128xf32> to vector<192x128xbf16>
    %166 = vector.shape_cast %165 : vector<192x128xbf16> to vector<4x48x128xbf16>
    "tpu.trace_start"() <{level = 10 : i32, message = "bne,beh->bnh"}> : () -> ()
    %cst_64 = arith.constant dense<0.000000e+00> : vector<4x16x128xf32>
    %167 = tpu.matmul %164, %166, %cst_64 {dimension_numbers = #tpu.dot_dimension_numbers<[2], [1], [1], [2], [0, 0, 0, 1, 1, 2], [0], [0]>} : vector<4x16x48xbf16>, vector<4x48x128xbf16>, vector<4x16x128xf32> -> vector<4x16x128xf32>
    "tpu.trace_stop"() : () -> ()
    %168 = vector.shape_cast %167 : vector<4x16x128xf32> to vector<64x128xf32>
    %169 = arith.addf %12, %168 : vector<64x128xf32>
    %cst_65 = arith.constant dense<0.000000e+00> : vector<64xf32>
    %170 = vector.multi_reduction <add>, %169, %cst_65 [1] : vector<64x128xf32> to vector<64xf32>
    %171 = vector.shape_cast %170 : vector<64xf32> to vector<64x1xf32>
    %cst_66 = arith.constant 3.125000e-02 : f32
    %172 = vector.broadcast %cst_66 : f32 to vector<64x1xf32>
    %173 = arith.mulf %171, %172 : vector<64x1xf32>
    %174 = vector.broadcast %173 : vector<64x1xf32> to vector<64x128xf32>
    %175 = arith.subf %169, %174 : vector<64x128xf32>
    %176 = arith.mulf %175, %175 : vector<64x128xf32>
    %cst_67 = arith.constant dense<0.000000e+00> : vector<64xf32>
    %177 = vector.multi_reduction <add>, %176, %cst_67 [1] : vector<64x128xf32> to vector<64xf32>
    %178 = vector.shape_cast %177 : vector<64xf32> to vector<64x1xf32>
    %cst_68 = arith.constant 9.600000e+01 : f32
    %179 = vector.broadcast %cst_68 : f32 to vector<64x1xf32>
    %180 = arith.mulf %179, %173 : vector<64x1xf32>
    %181 = arith.mulf %180, %173 : vector<64x1xf32>
    %182 = arith.subf %178, %181 : vector<64x1xf32>
    %cst_69 = arith.constant 3.125000e-02 : f32
    %183 = vector.broadcast %cst_69 : f32 to vector<64x1xf32>
    %184 = arith.mulf %182, %183 : vector<64x1xf32>
    %cst_70 = arith.constant 9.99999974E-6 : f32
    %185 = vector.broadcast %cst_70 : f32 to vector<64x1xf32>
    %186 = arith.addf %184, %185 : vector<64x1xf32>
    %187 = math.rsqrt %186 : vector<64x1xf32>
    %188 = vector.broadcast %187 : vector<64x1xf32> to vector<64x128xf32>
    %189 = arith.mulf %175, %188 : vector<64x128xf32>
    %c14 = arith.constant 14 : index
    %c0_71 = arith.constant 0 : index
    %190 = vector.load %arg8[%c14, %c0_71] : memref<17x128xf32, #tpu.memory_space<vmem>>, vector<1x128xf32>
    %191 = vector.broadcast %190 : vector<1x128xf32> to vector<64x128xf32>
    %192 = arith.mulf %189, %191 : vector<64x128xf32>
    %c15 = arith.constant 15 : index
    %c0_72 = arith.constant 0 : index
    %193 = vector.load %arg8[%c15, %c0_72] : memref<17x128xf32, #tpu.memory_space<vmem>>, vector<1x128xf32>
    %194 = vector.broadcast %193 : vector<1x128xf32> to vector<64x128xf32>
    %195 = arith.addf %192, %194 : vector<64x128xf32>
    %cst_73 = arith.constant 0.000000e+00 : f32
    %196 = vector.broadcast %cst_73 : f32 to vector<64x128xf32>
    %197 = arith.maximumf %195, %196 : vector<64x128xf32>
    %198 = arith.truncf %197 : vector<64x128xf32> to vector<64x128xbf16>
    %c0_74 = arith.constant 0 : index
    %c512 = arith.constant 512 : index
    %199 = vector.load %arg7[%c0_74, %c512] : memref<128x640xbf16, #tpu.memory_space<vmem>>, vector<128x128xbf16>
    %cst_75 = arith.constant dense<0.000000e+00> : vector<64x128xf32>
    %200 = tpu.matmul %198, %199, %cst_75 {dimension_numbers = #tpu.dot_dimension_numbers<[1], [0], [0], [1], [0, 0, 1, 1], [], []>} : vector<64x128xbf16>, vector<128x128xbf16>, vector<64x128xf32> -> vector<64x128xf32>
    %c16 = arith.constant 16 : index
    %c0_76 = arith.constant 0 : index
    %201 = vector.load %arg8[%c16, %c0_76] : memref<17x128xf32, #tpu.memory_space<vmem>>, vector<1x128xf32>
    %202 = vector.broadcast %201 : vector<1x128xf32> to vector<64x128xf32>
    %203 = arith.addf %200, %202 : vector<64x128xf32>
    %204 = vector.shape_cast %203 : vector<64x128xf32> to vector<4x16x128xf32>
    %c0_77 = arith.constant 0 : index
    %c0_78 = arith.constant 0 : index
    %c0_79 = arith.constant 0 : index
    %205 = vector.load %arg9[%c0_77, %c0_78, %c0_79] : memref<4x16x128xf32, #tpu.memory_space<vmem>>, vector<4x16x128xf32>
    tpu.vector_store %arg9[%c0_77, %c0_78, %c0_79], %204 {strides = array<i32>} : memref<4x16x128xf32, #tpu.memory_space<vmem>>, vector<4x16x128xf32>,
    return
  }
  func.func @transform_0(%arg0: i32) -> (i32, i32, i32) {
    %c0_i32 = arith.constant 0 : i32
    %c0_i32_0 = arith.constant 0 : i32
    %c0_i32_1 = arith.constant 0 : i32
    return %arg0, %c0_i32, %c0_i32_0 : i32, i32, i32
  }
  func.func @transform_1(%arg0: i32) -> (i32, i32, i32) {
    %c0_i32 = arith.constant 0 : i32
    %c0_i32_0 = arith.constant 0 : i32
    %c0_i32_1 = arith.constant 0 : i32
    return %arg0, %c0_i32, %c0_i32_0 : i32, i32, i32
  }
  func.func @transform_2(%arg0: i32) -> (i32, i32, i32) {
    %c0_i32 = arith.constant 0 : i32
    %c0_i32_0 = arith.constant 0 : i32
    %c0_i32_1 = arith.constant 0 : i32
    return %arg0, %c0_i32, %c0_i32_0 : i32, i32, i32
  }
  func.func @transform_3(%arg0: i32) -> (i32, i32, i32) {
    %c0_i32 = arith.constant 0 : i32
    %c0_i32_0 = arith.constant 0 : i32
    %c0_i32_1 = arith.constant 0 : i32
    return %arg0, %c0_i32, %c0_i32_0 : i32, i32, i32
  }
  func.func @transform_4(%arg0: i32) -> (i32, i32) {
    %c0_i32 = arith.constant 0 : i32
    %c0_i32_0 = arith.constant 0 : i32
    %c0_i32_1 = arith.constant 0 : i32
    return %c0_i32, %c0_i32_0 : i32, i32
  }
  func.func @transform_5(%arg0: i32) -> (i32, i32) {
    %c0_i32 = arith.constant 0 : i32
    %c0_i32_0 = arith.constant 0 : i32
    %c0_i32_1 = arith.constant 0 : i32
    return %c0_i32, %c0_i32_0 : i32, i32
  }
  func.func @transform_6(%arg0: i32) -> (i32, i32) {
    %c0_i32 = arith.constant 0 : i32
    %c0_i32_0 = arith.constant 0 : i32
    %c0_i32_1 = arith.constant 0 : i32
    return %c0_i32, %c0_i32_0 : i32, i32
  }
  func.func @transform_7(%arg0: i32) -> (i32, i32) {
    %c0_i32 = arith.constant 0 : i32
    %c0_i32_0 = arith.constant 0 : i32
    %c0_i32_1 = arith.constant 0 : i32
    return %c0_i32, %c0_i32_0 : i32, i32
  }
  func.func @transform_8(%arg0: i32) -> (i32, i32, i32) {
    %c0_i32 = arith.constant 0 : i32
    %c0_i32_0 = arith.constant 0 : i32
    %c0_i32_1 = arith.constant 0 : i32
    return %arg0, %c0_i32, %c0_i32_0 : i32, i32, i32
  }
}

</mosaic_0001>

<llo_original>
// kernel: tpu_custom_call.1
$region0: #{tpu_custom_call.1}
  #allocation0 [shape = 'u32[]', space=smem, size = 0x4, offset = 0x4, fixed_abs, tag = 'smem constant byte address 0x4 - core index']
  #allocation1 [shape = 'u32[72,128]{1,0:T(1,128)}', space=vmem, size = 0x9000, scoped, tag = 'internal scratch']
  %s0 = inlined_call_operand.vmem [shape: f32[4,16,9], index: 0, kind: input, shape index: {}]
  %s1 = inlined_call_operand.vmem [shape: f32[4,48,4], index: 1, kind: input, shape index: {}]
  %s2 = inlined_call_operand.vmem [shape: s32[4,1,48], index: 2, kind: input, shape index: {}]
  %s3 = inlined_call_operand.vmem [shape: s32[4,48,1], index: 3, kind: input, shape index: {}]
  %s4 = inlined_call_operand.vmem [shape: bf16[9,384], index: 4, kind: input, shape index: {}]
  %s5 = inlined_call_operand.vmem [shape: bf16[4,256], index: 5, kind: input, shape index: {}]
  %s6 = inlined_call_operand.vmem [shape: bf16[128,640], index: 6, kind: input, shape index: {}]
  %s7 = inlined_call_operand.vmem [shape: f32[17,128], index: 7, kind: input, shape index: {}]
  %s8 = inlined_call_operand.hbm [shape: f32[4,16,128], index: 8, kind: output, shape index: {}]
  %s9 = sld [smem:[#allocation0]]
  $region42: #{tpu_custom_call.1} parent=0
    _
  %s11 = ssub.s32 1, %s9
  %s12 = scalar_select 0, %s11, %s9
  $region1: #{tpu_custom_call.1} parent=0
    #allocation2 [shape = 'u8[32768]{0}', space=vmem, size = 0x8000, scoped, tag = 'output window, operand 0, single buffered']
    #allocation3 [shape = 's32[1]{0}', space=sflag, size = 0x4, scoped, tag = 'scoped memory for tpu_custom_call.1']
    %13 = vsyncpa [#allocation3], 0
    // Predicated region
    $region2: #{tpu_custom_call.1} parent=1 // pred_check
      _
    $region3: #{tpu_custom_call.1} parent=1 // pred_check_branch
      %15 = sbr.rel (0) target = $region5
    $region4: #{tpu_custom_call.1} parent=1 // pred_region
      _
    $region5: #{tpu_custom_call.1} parent=1 // pred_fallthru
      _
    // Predicated region
    $region6: #{tpu_custom_call.1} parent=1 // pred_check
      _
    $region7: #{tpu_custom_call.1} parent=1 // pred_check_branch
      %17 = sbr.rel (0) target = $region9
    $region8: #{tpu_custom_call.1} parent=1 // pred_region
      _
    $region9: #{tpu_custom_call.1} parent=1 // pred_fallthru
      _
    // Predicated region
    $region10: #{tpu_custom_call.1} parent=1 // pred_check
      _
    $region11: #{tpu_custom_call.1} parent=1 // pred_check_branch
      %19 = sbr.rel (0) target = $region13
    $region12: #{tpu_custom_call.1} parent=1 // pred_region
      _
    $region13: #{tpu_custom_call.1} parent=1 // pred_fallthru
      _
    // Predicated region
    $region14: #{tpu_custom_call.1} parent=1 // pred_check
      _
    $region15: #{tpu_custom_call.1} parent=1 // pred_check_branch
      %21 = sbr.rel (0) target = $region17
    $region16: #{tpu_custom_call.1} parent=1 // pred_region
      _
    $region17: #{tpu_custom_call.1} parent=1 // pred_fallthru
      _
    // Predicated region
    $region18: #{tpu_custom_call.1} parent=1 // pred_check
      _
    $region19: #{tpu_custom_call.1} parent=1 // pred_check_branch
      %23 = sbr.rel (0) target = $region21
    $region20: #{tpu_custom_call.1} parent=1 // pred_region
      _
    $region21: #{tpu_custom_call.1} parent=1 // pred_fallthru
      _
    // Predicated region
    $region22: #{tpu_custom_call.1} parent=1 // pred_check
      _
    $region23: #{tpu_custom_call.1} parent=1 // pred_check_branch
      %25 = sbr.rel (0) target = $region25
    $region24: #{tpu_custom_call.1} parent=1 // pred_region
      _
    $region25: #{tpu_custom_call.1} parent=1 // pred_fallthru
      _
    // Predicated region
    $region26: #{tpu_custom_call.1} parent=1 // pred_check
      _
    $region27: #{tpu_custom_call.1} parent=1 // pred_check_branch
      %27 = sbr.rel (0) target = $region29
    $region28: #{tpu_custom_call.1} parent=1 // pred_region
      _
    $region29: #{tpu_custom_call.1} parent=1 // pred_fallthru
      _
    // Predicated region
    $region30: #{tpu_custom_call.1} parent=1 // pred_check
      _
    $region31: #{tpu_custom_call.1} parent=1 // pred_check_branch
      %29 = sbr.rel (0) target = $region33
    $region32: #{tpu_custom_call.1} parent=1 // pred_region
      _
    $region33: #{tpu_custom_call.1} parent=1 // pred_fallthru
      _
    %v31 = vld [vmem:[%s0] sm:$0xff]
    %v32 = vld [vmem:[%s0 + $0x8] sm:$0xff]
    %v33 = vld [vmem:[%s0 + $0x10] sm:$0xff]
    %v34 = vld [vmem:[%s0 + $0x18] sm:$0xff]
    %v35 = vld [vmem:[%s0 + $0x20] sm:$0xff]
    %v36 = vld [vmem:[%s0 + $0x28] sm:$0xff]
    %v37 = vld [vmem:[%s0 + $0x30] sm:$0xff]
    %v38 = vld [vmem:[%s0 + $0x38] sm:$0xff]
    %v39 = vpack.c.bf16 %v32, %v31
    %v40 = vpack.c.bf16 %v34, %v33
    %v41 = vpack.c.bf16 %v36, %v35
    %v42 = vpack.c.bf16 %v38, %v37
    %v43 = vld [vmem:[%s4] sm:$0xff]
    %v44 = vld [vmem:[%s4 + $0x8] sm:$0xf]
    %v45 = vld [vmem:[%s4 + $0xc] sm:$0x11]
    %v46 = vld [vmem:[%s4 + $0x14] sm:$0x1]
    %v51 = vunpack.c.l.b16 %v43
    %v52 = vunpack.c.h.b16 %v43
    %v53 = vunpack.c.l.b16 %v44
    %v54 = vunpack.c.l.b16 %v45
    %v55 = vunpack.c.h.b16 %v45
    %v56 = vunpack.c.l.b16 %v46
    %v57 = vpack.c.b16 %v54, %v51
    %v58 = vpack.c.b16 %v55, %v52
    %v59 = vpack.c.b16 %v56, %v53
    %vm60 = vcmask 72704
    %v62 = vsel %vm60, %v39, 0
    %v65 = vsel %vm60, %v40, 0
    %v68 = vsel %vm60, %v41, 0
    %v71 = vsel %vm60, %v42, 0
    %vm73 = vcmask 1043456
    %vm74 = vcmask 1044480
    %v75 = vsel %vm73, 4294967295, 65535
    %v76 = vsel %vm74, %v75, 0
    %v78 = vand.u32 %v57, %v76
    %v81 = vand.u32 %v58, %v76
    %v84 = vand.u32 %v59, %v76
    %86 = vmatpush.bf16.msra.mxu0 0
    %87 = vmatpush.bf16.msra.mxu0 0
    %88 = vmatpush.bf16.msra.mxu0 0
    %89 = vmatpush.bf16.msra.mxu0 0
    %90 = vmatpush.bf16.msra.mxu0 0
    %91 = vmatpush.bf16.msra.mxu0 0
    %92 = vmatpush.bf16.msra.mxu0 0
    %93 = vmatpush.bf16.msra.mxu0 %v78
    %94 = vmatmul.bf16.gmra.mxu0 %v62
    %v95 = vpop.f32.mrf.mxu0
    %v96 = vadd.f32 0.0, %v95
    %v97 = vpop.f32.mrf.mxu0
    %v98 = vadd.f32 0.0, %v97
    %99 = vmatmul.bf16.gmra.mxu0 %v65
    %v100 = vpop.f32.mrf.mxu0
    %v101 = vadd.f32 0.0, %v100
    %v102 = vpop.f32.mrf.mxu0
    %v103 = vadd.f32 0.0, %v102
    %104 = vmatmul.bf16.gmra.mxu0 %v68
    %v105 = vpop.f32.mrf.mxu0
    %v106 = vadd.f32 0.0, %v105
    %v107 = vpop.f32.mrf.mxu0
    %v108 = vadd.f32 0.0, %v107
    %109 = vmatmul.bf16.gmra.mxu0 %v71
    %v110 = vpop.f32.mrf.mxu0
    %v111 = vadd.f32 0.0, %v110
    %v112 = vpop.f32.mrf.mxu0
    %v113 = vadd.f32 0.0, %v112
    %114 = vdwg.mxu0
    %115 = vmatpush.bf16.msra.mxu0 0
    %116 = vmatpush.bf16.msra.mxu0 0
    %117 = vmatpush.bf16.msra.mxu0 0
    %118 = vmatpush.bf16.msra.mxu0 0
    %119 = vmatpush.bf16.msra.mxu0 0
    %120 = vmatpush.bf16.msra.mxu0 0
    %121 = vmatpush.bf16.msra.mxu0 0
    %122 = vmatpush.bf16.msra.mxu0 %v81
    %123 = vmatmul.bf16.gmra.mxu0 %v62
    %v124 = vpop.f32.mrf.mxu0
    %v125 = vadd.f32 0.0, %v124
    %v126 = vpop.f32.mrf.mxu0
    %v127 = vadd.f32 0.0, %v126
    %128 = vmatmul.bf16.gmra.mxu0 %v65
    %v129 = vpop.f32.mrf.mxu0
    %v130 = vadd.f32 0.0, %v129
    %v131 = vpop.f32.mrf.mxu0
    %v132 = vadd.f32 0.0, %v131
    %133 = vmatmul.bf16.gmra.mxu0 %v68
    %v134 = vpop.f32.mrf.mxu0
    %v135 = vadd.f32 0.0, %v134
    %v136 = vpop.f32.mrf.mxu0
    %v137 = vadd.f32 0.0, %v136
    %138 = vmatmul.bf16.gmra.mxu0 %v71
    %v139 = vpop.f32.mrf.mxu0
    %v140 = vadd.f32 0.0, %v139
    %v141 = vpop.f32.mrf.mxu0
    %v142 = vadd.f32 0.0, %v141
    %143 = vdwg.mxu0
    %144 = vmatpush.bf16.msra.mxu0 0
    %145 = vmatpush.bf16.msra.mxu0 0
    %146 = vmatpush.bf16.msra.mxu0 0
    %147 = vmatpush.bf16.msra.mxu0 0
    %148 = vmatpush.bf16.msra.mxu0 0
    %149 = vmatpush.bf16.msra.mxu0 0
    %150 = vmatpush.bf16.msra.mxu0 0
    %151 = vmatpush.bf16.msra.mxu0 %v84
    %152 = vmatmul.bf16.gmra.mxu0 %v62
    %v153 = vpop.f32.mrf.mxu0
    %v154 = vadd.f32 0.0, %v153
    %v155 = vpop.f32.mrf.mxu0
    %v156 = vadd.f32 0.0, %v155
    %157 = vmatmul.bf16.gmra.mxu0 %v65
    %v158 = vpop.f32.mrf.mxu0
    %v159 = vadd.f32 0.0, %v158
    %v160 = vpop.f32.mrf.mxu0
    %v161 = vadd.f32 0.0, %v160
    %162 = vmatmul.bf16.gmra.mxu0 %v68
    %v163 = vpop.f32.mrf.mxu0
    %v164 = vadd.f32 0.0, %v163
    %v165 = vpop.f32.mrf.mxu0
    %v166 = vadd.f32 0.0, %v165
    %167 = vmatmul.bf16.gmra.mxu0 %v71
    %v168 = vpop.f32.mrf.mxu0
    %v169 = vadd.f32 0.0, %v168
    %v170 = vpop.f32.mrf.mxu0
    %v171 = vadd.f32 0.0, %v170
    %172 = vdwg.mxu0
    %v173 = vld [vmem:[%s7] sm:$0x1]
    %v174 = vperm.slane %v173, 0
    %v175 = vadd.f32 %v96, %v174
    %v176 = vadd.f32 %v98, %v174
    %v177 = vadd.f32 %v101, %v174
    %v178 = vadd.f32 %v103, %v174
    %v179 = vadd.f32 %v106, %v174
    %v180 = vadd.f32 %v108, %v174
    %v181 = vadd.f32 %v111, %v174
    %v182 = vadd.f32 %v113, %v174
    %v183 = vld [vmem:[%s7 + $0xd] sm:$0x1]
    %v184 = vperm.slane %v183, 0
    %v185 = vadd.f32 %v125, %v184
    %v186 = vadd.f32 %v127, %v184
    %v187 = vadd.f32 %v130, %v184
    %v188 = vadd.f32 %v132, %v184
    %v189 = vadd.f32 %v135, %v184
    %v190 = vadd.f32 %v137, %v184
    %v191 = vadd.f32 %v140, %v184
    %v192 = vadd.f32 %v142, %v184
    %193 = vadd.xlane.f32.xlu0 %v175
    %v194 = vpop.xlane.xlu0 %193
    %195 = vadd.xlane.f32.xlu0 %v176
    %v196 = vpop.xlane.xlu0 %195
    %197 = vadd.xlane.f32.xlu0 %v177
    %v198 = vpop.xlane.xlu0 %197
    %199 = vadd.xlane.f32.xlu0 %v178
    %v200 = vpop.xlane.xlu0 %199
    %201 = vadd.xlane.f32.xlu0 %v179
    %v202 = vpop.xlane.xlu0 %201
    %203 = vadd.xlane.f32.xlu0 %v180
    %v204 = vpop.xlane.xlu0 %203
    %205 = vadd.xlane.f32.xlu0 %v181
    %v206 = vpop.xlane.xlu0 %205
    %207 = vadd.xlane.f32.xlu0 %v182
    %v208 = vpop.xlane.xlu0 %207
    %v209 = vmul.f32 %v194, 0.03125
    %v210 = vmul.f32 %v196, 0.03125
    %v211 = vmul.f32 %v198, 0.03125
    %v212 = vmul.f32 %v200, 0.03125
    %v213 = vmul.f32 %v202, 0.03125
    %v214 = vmul.f32 %v204, 0.03125
    %v215 = vmul.f32 %v206, 0.03125
    %v216 = vmul.f32 %v208, 0.03125
    %v217 = vsub.f32 %v175, %v209
    %v218 = vsub.f32 %v176, %v210
    %v219 = vsub.f32 %v177, %v211
    %v220 = vsub.f32 %v178, %v212
    %v221 = vsub.f32 %v179, %v213
    %v222 = vsub.f32 %v180, %v214
    %v223 = vsub.f32 %v181, %v215
    %v224 = vsub.f32 %v182, %v216
    %v225 = vmul.f32 %v217, %v217
    %v226 = vmul.f32 %v218, %v218
    %v227 = vmul.f32 %v219, %v219
    %v228 = vmul.f32 %v220, %v220
    %v229 = vmul.f32 %v221, %v221
    %v230 = vmul.f32 %v222, %v222
    %v231 = vmul.f32 %v223, %v223
    %v232 = vmul.f32 %v224, %v224
    %233 = vadd.xlane.f32.xlu0 %v225
    %v234 = vpop.xlane.xlu0 %233
    %235 = vadd.xlane.f32.xlu0 %v226
    %v236 = vpop.xlane.xlu0 %235
    %237 = vadd.xlane.f32.xlu0 %v227
    %v238 = vpop.xlane.xlu0 %237
    %239 = vadd.xlane.f32.xlu0 %v228
    %v240 = vpop.xlane.xlu0 %239
    %241 = vadd.xlane.f32.xlu0 %v229
    %v242 = vpop.xlane.xlu0 %241
    %243 = vadd.xlane.f32.xlu0 %v230
    %v244 = vpop.xlane.xlu0 %243
    %245 = vadd.xlane.f32.xlu0 %v231
    %v246 = vpop.xlane.xlu0 %245
    %247 = vadd.xlane.f32.xlu0 %v232
    %v248 = vpop.xlane.xlu0 %247
    %v249 = vmul.f32 %v209, 96.0
    %v250 = vmul.f32 %v210, 96.0
    %v251 = vmul.f32 %v211, 96.0
    %v252 = vmul.f32 %v212, 96.0
    %v253 = vmul.f32 %v213, 96.0
    %v254 = vmul.f32 %v214, 96.0
    %v255 = vmul.f32 %v215, 96.0
    %v256 = vmul.f32 %v216, 96.0
    %v257 = vmul.f32 %v249, %v209
    %v258 = vmul.f32 %v250, %v210
    %v259 = vmul.f32 %v251, %v211
    %v260 = vmul.f32 %v252, %v212
    %v261 = vmul.f32 %v253, %v213
    %v262 = vmul.f32 %v254, %v214
    %v263 = vmul.f32 %v255, %v215
    %v264 = vmul.f32 %v256, %v216
    %v265 = vsub.f32 %v234, %v257
    %v266 = vsub.f32 %v236, %v258
    %v267 = vsub.f32 %v238, %v259
    %v268 = vsub.f32 %v240, %v260
    %v269 = vsub.f32 %v242, %v261
    %v270 = vsub.f32 %v244, %v262
    %v271 = vsub.f32 %v246, %v263
    %v272 = vsub.f32 %v248, %v264
    %v273 = vmul.f32 %v265, 0.03125
    %v274 = vmul.f32 %v266, 0.03125
    %v275 = vmul.f32 %v267, 0.03125
    %v276 = vmul.f32 %v268, 0.03125
    %v277 = vmul.f32 %v269, 0.03125
    %v278 = vmul.f32 %v270, 0.03125
    %v279 = vmul.f32 %v271, 0.03125
    %v280 = vmul.f32 %v272, 0.03125
    %v281 = vadd.f32 %v273, 1e-05
    %v282 = vadd.f32 %v274, 1e-05
    %v283 = vadd.f32 %v275, 1e-05
    %v284 = vadd.f32 %v276, 1e-05
    %v285 = vadd.f32 %v277, 1e-05
    %v286 = vadd.f32 %v278, 1e-05
    %v287 = vadd.f32 %v279, 1e-05
    %v288 = vadd.f32 %v280, 1e-05
    %v289 = vrsqrt.pop %v281
    %v290 = vmul.f32 %v289, %v281
    %v291 = vmul.f32 %v290, %v289
    %v292 = vmul.f32 0.5, %v291
    %v293 = vsub.f32 1.5, %v292
    %v294 = vmul.f32 %v289, %v293
    %vm295 = vweird.f32 %v281
    %vm296 = vweird.f32 %v289
    %vm297 = vmor %vm295, %vm296
    %v298 = vsel %vm297, %v289, %v294
    %v299 = vrsqrt.pop %v282
    %v300 = vmul.f32 %v299, %v282
    %v301 = vmul.f32 %v300, %v299
    %v302 = vmul.f32 0.5, %v301
    %v303 = vsub.f32 1.5, %v302
    %v304 = vmul.f32 %v299, %v303
    %vm305 = vweird.f32 %v282
    %vm306 = vweird.f32 %v299
    %vm307 = vmor %vm305, %vm306
    %v308 = vsel %vm307, %v299, %v304
    %v309 = vrsqrt.pop %v283
    %v310 = vmul.f32 %v309, %v283
    %v311 = vmul.f32 %v310, %v309
    %v312 = vmul.f32 0.5, %v311
    %v313 = vsub.f32 1.5, %v312
    %v314 = vmul.f32 %v309, %v313
    %vm315 = vweird.f32 %v283
    %vm316 = vweird.f32 %v309
    %vm317 = vmor %vm315, %vm316
    %v318 = vsel %vm317, %v309, %v314
    %v319 = vrsqrt.pop %v284
    %v320 = vmul.f32 %v319, %v284
    %v321 = vmul.f32 %v320, %v319
    %v322 = vmul.f32 0.5, %v321
    %v323 = vsub.f32 1.5, %v322
    %v324 = vmul.f32 %v319, %v323
    %vm325 = vweird.f32 %v284
    %vm326 = vweird.f32 %v319
    %vm327 = vmor %vm325, %vm326
    %v328 = vsel %vm327, %v319, %v324
    %v329 = vrsqrt.pop %v285
    %v330 = vmul.f32 %v329, %v285
    %v331 = vmul.f32 %v330, %v329
    %v332 = vmul.f32 0.5, %v331
    %v333 = vsub.f32 1.5, %v332
    %v334 = vmul.f32 %v329, %v333
    %vm335 = vweird.f32 %v285
    %vm336 = vweird.f32 %v329
    %vm337 = vmor %vm335, %vm336
    %v338 = vsel %vm337, %v329, %v334
    %v339 = vrsqrt.pop %v286
    %v340 = vmul.f32 %v339, %v286
    %v341 = vmul.f32 %v340, %v339
    %v342 = vmul.f32 0.5, %v341
    %v343 = vsub.f32 1.5, %v342
    %v344 = vmul.f32 %v339, %v343
    %vm345 = vweird.f32 %v286
    %vm346 = vweird.f32 %v339
    %vm347 = vmor %vm345, %vm346
    %v348 = vsel %vm347, %v339, %v344
    %v349 = vrsqrt.pop %v287
    %v350 = vmul.f32 %v349, %v287
    %v351 = vmul.f32 %v350, %v349
    %v352 = vmul.f32 0.5, %v351
    %v353 = vsub.f32 1.5, %v352
    %v354 = vmul.f32 %v349, %v353
    %vm355 = vweird.f32 %v287
    %vm356 = vweird.f32 %v349
    %vm357 = vmor %vm355, %vm356
    %v358 = vsel %vm357, %v349, %v354
    %v359 = vrsqrt.pop %v288
    %v360 = vmul.f32 %v359, %v288
    %v361 = vmul.f32 %v360, %v359
    %v362 = vmul.f32 0.5, %v361
    %v363 = vsub.f32 1.5, %v362
    %v364 = vmul.f32 %v359, %v363
    %vm365 = vweird.f32 %v288
    %vm366 = vweird.f32 %v359
    %vm367 = vmor %vm365, %vm366
    %v368 = vsel %vm367, %v359, %v364
    %v369 = vmul.f32 %v217, %v298
    %v370 = vmul.f32 %v218, %v308
    %v371 = vmul.f32 %v219, %v318
    %v372 = vmul.f32 %v220, %v328
    %v373 = vmul.f32 %v221, %v338
    %v374 = vmul.f32 %v222, %v348
    %v375 = vmul.f32 %v223, %v358
    %v376 = vmul.f32 %v224, %v368
    %v377 = vld [vmem:[%s7 + $0x1] sm:$0x1]
    %v378 = vperm.slane %v377, 0
    %v379 = vmul.f32 %v369, %v378
    %v380 = vmul.f32 %v370, %v378
    %v381 = vmul.f32 %v371, %v378
    %v382 = vmul.f32 %v372, %v378
    %v383 = vmul.f32 %v373, %v378
    %v384 = vmul.f32 %v374, %v378
    %v385 = vmul.f32 %v375, %v378
    %v386 = vmul.f32 %v376, %v378
    %v387 = vld [vmem:[%s7 + $0x2] sm:$0x1]
    %v388 = vperm.slane %v387, 0
    %v389 = vadd.f32 %v379, %v388
    %v390 = vadd.f32 %v380, %v388
    %v391 = vadd.f32 %v381, %v388
    %v392 = vadd.f32 %v382, %v388
    %v393 = vadd.f32 %v383, %v388
    %v394 = vadd.f32 %v384, %v388
    %v395 = vadd.f32 %v385, %v388
    %v396 = vadd.f32 %v386, %v388
    %v397 = vmax.f32 %v389, 0.0
    %v398 = vmax.f32 %v390, 0.0
    %v399 = vmax.f32 %v391, 0.0
    %v400 = vmax.f32 %v392, 0.0
    %v401 = vmax.f32 %v393, 0.0
    %v402 = vmax.f32 %v394, 0.0
    %v403 = vmax.f32 %v395, 0.0
    %v404 = vmax.f32 %v396, 0.0
    %v405 = vpack.c.bf16 %v398, %v397
    %v406 = vpack.c.bf16 %v400, %v399
    %v407 = vpack.c.bf16 %v402, %v401
    %v408 = vpack.c.bf16 %v404, %v403
    %v409 = vld [vmem:[%s6] sm:$0xf]
    %v410 = vld [vmem:[%s6 + $0x14] sm:$0xf]
    %v411 = vld [vmem:[%s6 + $0x28] sm:$0xf]
    %v412 = vld [vmem:[%s6 + $0x3c] sm:$0xf]
    %v413 = vld [vmem:[%s6 + $0x50] sm:$0xf]
    %v414 = vld [vmem:[%s6 + $0x64] sm:$0xf]
    %v415 = vld [vmem:[%s6 + $0x78] sm:$0xf]
    %v416 = vld [vmem:[%s6 + $0x8c] sm:$0xf]
    %v417 = vld [vmem:[%s6 + $0xa0] sm:$0xf]
    %v418 = vld [vmem:[%s6 + $0xb4] sm:$0xf]
    %v419 = vld [vmem:[%s6 + $0xc8] sm:$0xf]
    %v420 = vld [vmem:[%s6 + $0xdc] sm:$0xf]
    %v421 = vld [vmem:[%s6 + $0xf0] sm:$0xf]
    %v422 = vld [vmem:[%s6 + $0x104] sm:$0xf]
    %v423 = vld [vmem:[%s6 + $0x118] sm:$0xf]
    %v424 = vld [vmem:[%s6 + $0x12c] sm:$0xf]
    %v425 = vld [vmem:[%s7 + $0x3] sm:$0x1]
    %v426 = vperm.slane %v425, 0
    %v443 = vunpack.c.l.b16 %v409
    %v444 = vunpack.c.l.b16 %v410
    %v445 = vunpack.c.l.b16 %v411
    %v446 = vunpack.c.l.b16 %v412
    %v447 = vunpack.c.l.b16 %v413
    %v448 = vunpack.c.l.b16 %v414
    %v449 = vunpack.c.l.b16 %v415
    %v450 = vunpack.c.l.b16 %v416
    %v451 = vunpack.c.l.b16 %v417
    %v452 = vunpack.c.l.b16 %v418
    %v453 = vunpack.c.l.b16 %v419
    %v454 = vunpack.c.l.b16 %v420
    %v455 = vunpack.c.l.b16 %v421
    %v456 = vunpack.c.l.b16 %v422
    %v457 = vunpack.c.l.b16 %v423
    %v458 = vunpack.c.l.b16 %v424
    %v459 = vpack.c.b16 %v444, %v443
    %v460 = vpack.c.b16 %v446, %v445
    %v461 = vpack.c.b16 %v448, %v447
    %v462 = vpack.c.b16 %v450, %v449
    %v463 = vpack.c.b16 %v452, %v451
    %v464 = vpack.c.b16 %v454, %v453
    %v465 = vpack.c.b16 %v456, %v455
    %v466 = vpack.c.b16 %v458, %v457
    %475 = vmatpush.bf16.msra.mxu0 %v466
    %476 = vmatpush.bf16.msra.mxu0 %v465
    %477 = vmatpush.bf16.msra.mxu0 %v464
    %478 = vmatpush.bf16.msra.mxu0 %v463
    %479 = vmatpush.bf16.msra.mxu0 %v462
    %480 = vmatpush.bf16.msra.mxu0 %v461
    %481 = vmatpush.bf16.msra.mxu0 %v460
    %482 = vmatpush.bf16.msra.mxu0 %v459
    %483 = vmatmul.bf16.gmra.mxu0 %v405
    %v484 = vpop.f32.mrf.mxu0
    %v485 = vadd.f32 %v426, %v484
    %v486 = vpop.f32.mrf.mxu0
    %v487 = vadd.f32 %v426, %v486
    %488 = vmatmul.bf16.gmra.mxu0 %v406
    %v489 = vpop.f32.mrf.mxu0
    %v490 = vadd.f32 %v426, %v489
    %v491 = vpop.f32.mrf.mxu0
    %v492 = vadd.f32 %v426, %v491
    %493 = vmatmul.bf16.gmra.mxu0 %v407
    %v494 = vpop.f32.mrf.mxu0
    %v495 = vadd.f32 %v426, %v494
    %v496 = vpop.f32.mrf.mxu0
    %v497 = vadd.f32 %v426, %v496
    %498 = vmatmul.bf16.gmra.mxu0 %v408
    %v499 = vpop.f32.mrf.mxu0
    %v500 = vadd.f32 %v426, %v499
    %v501 = vpop.f32.mrf.mxu0
    %v502 = vadd.f32 %v426, %v501
    %503 = vdwg.mxu0
    %v504 = vld [vmem:[%s1] sm:$0xff]
    %v505 = vld [vmem:[%s1 + $0x8] sm:$0xff]
    %v506 = vld [vmem:[%s1 + $0x10] sm:$0xff]
    %v507 = vld [vmem:[%s1 + $0x18] sm:$0xff]
    %v508 = vld [vmem:[%s1 + $0x20] sm:$0xff]
    %v509 = vld [vmem:[%s1 + $0x28] sm:$0xff]
    %v510 = vld [vmem:[%s1 + $0x30] sm:$0xff]
    %v511 = vld [vmem:[%s1 + $0x38] sm:$0xff]
    %v512 = vld [vmem:[%s1 + $0x40] sm:$0xff]
    %v513 = vld [vmem:[%s1 + $0x48] sm:$0xff]
    %v514 = vld [vmem:[%s1 + $0x50] sm:$0xff]
    %v515 = vld [vmem:[%s1 + $0x58] sm:$0xff]
    %v516 = vld [vmem:[%s1 + $0x60] sm:$0xff]
    %v517 = vld [vmem:[%s1 + $0x68] sm:$0xff]
    %v518 = vld [vmem:[%s1 + $0x70] sm:$0xff]
    %v519 = vld [vmem:[%s1 + $0x78] sm:$0xff]
    %v520 = vld [vmem:[%s1 + $0x80] sm:$0xff]
    %v521 = vld [vmem:[%s1 + $0x88] sm:$0xff]
    %v522 = vld [vmem:[%s1 + $0x90] sm:$0xff]
    %v523 = vld [vmem:[%s1 + $0x98] sm:$0xff]
    %v524 = vld [vmem:[%s1 + $0xa0] sm:$0xff]
    %v525 = vld [vmem:[%s1 + $0xa8] sm:$0xff]
    %v526 = vld [vmem:[%s1 + $0xb0] sm:$0xff]
    %v527 = vld [vmem:[%s1 + $0xb8] sm:$0xff]
    %v528 = vpack.c.bf16 %v505, %v504
    %v529 = vpack.c.bf16 %v507, %v506
    %v530 = vpack.c.bf16 %v509, %v508
    %v531 = vpack.c.bf16 %v511, %v510
    %v532 = vpack.c.bf16 %v513, %v512
    %v533 = vpack.c.bf16 %v515, %v514
    %v534 = vpack.c.bf16 %v517, %v516
    %v535 = vpack.c.bf16 %v519, %v518
    %v536 = vpack.c.bf16 %v521, %v520
    %v537 = vpack.c.bf16 %v523, %v522
    %v538 = vpack.c.bf16 %v525, %v524
    %v539 = vpack.c.bf16 %v527, %v526
    %v540 = vld [vmem:[%s5] sm:$0xf]
    %542 = vst [vmem:[#allocation1] ss:$4 sm:$0xff] %v540
    %v543 = vld.sshfl [vmem:[#allocation1] sm:$0xff pattern:$0x73625140]
    %v544 = vld.sshfl [vmem:[#allocation1 + $0x8] sm:$0xff pattern:$0x73625140]
    %vm545 = vcmask 31744
    %v547 = vsel %vm545, %v528, 0
    %v550 = vsel %vm545, %v529, 0
    %v553 = vsel %vm545, %v530, 0
    %v556 = vsel %vm545, %v531, 0
    %v559 = vsel %vm545, %v532, 0
    %v562 = vsel %vm545, %v533, 0
    %v565 = vsel %vm545, %v534, 0
    %v568 = vsel %vm545, %v535, 0
    %v571 = vsel %vm545, %v536, 0
    %v574 = vsel %vm545, %v537, 0
    %v577 = vsel %vm545, %v538, 0
    %v580 = vsel %vm545, %v539, 0
    %vm582 = vcmask 1041408
    %v583 = vsel %vm582, %v543, 0
    %v585 = vsel %vm582, %v544, 0
    %587 = vmatpush.bf16.msra.mxu0 0
    %588 = vmatpush.bf16.msra.mxu0 0
    %589 = vmatpush.bf16.msra.mxu0 0
    %590 = vmatpush.bf16.msra.mxu0 0
    %591 = vmatpush.bf16.msra.mxu0 0
    %592 = vmatpush.bf16.msra.mxu0 0
    %593 = vmatpush.bf16.msra.mxu0 0
    %594 = vmatpush.bf16.msra.mxu0 %v583
    %595 = vmatmul.bf16.gmra.mxu0 %v547
    %v596 = vpop.f32.mrf.mxu0
    %v597 = vadd.f32 0.0, %v596
    %v598 = vpop.f32.mrf.mxu0
    %v599 = vadd.f32 0.0, %v598
    %600 = vmatmul.bf16.gmra.mxu0 %v550
    %v601 = vpop.f32.mrf.mxu0
    %v602 = vadd.f32 0.0, %v601
    %v603 = vpop.f32.mrf.mxu0
    %v604 = vadd.f32 0.0, %v603
    %605 = vmatmul.bf16.gmra.mxu0 %v553
    %v606 = vpop.f32.mrf.mxu0
    %v607 = vadd.f32 0.0, %v606
    %v608 = vpop.f32.mrf.mxu0
    %v609 = vadd.f32 0.0, %v608
    %610 = vmatmul.bf16.gmra.mxu0 %v556
    %v611 = vpop.f32.mrf.mxu0
    %v612 = vadd.f32 0.0, %v611
    %v613 = vpop.f32.mrf.mxu0
    %v614 = vadd.f32 0.0, %v613
    %615 = vmatmul.bf16.gmra.mxu0 %v559
    %v616 = vpop.f32.mrf.mxu0
    %v617 = vadd.f32 0.0, %v616
    %v618 = vpop.f32.mrf.mxu0
    %v619 = vadd.f32 0.0, %v618
    %620 = vmatmul.bf16.gmra.mxu0 %v562
    %v621 = vpop.f32.mrf.mxu0
    %v622 = vadd.f32 0.0, %v621
    %v623 = vpop.f32.mrf.mxu0
    %v624 = vadd.f32 0.0, %v623
    %625 = vmatmul.bf16.gmra.mxu0 %v565
    %v626 = vpop.f32.mrf.mxu0
    %v627 = vadd.f32 0.0, %v626
    %v628 = vpop.f32.mrf.mxu0
    %v629 = vadd.f32 0.0, %v628
    %630 = vmatmul.bf16.gmra.mxu0 %v568
    %v631 = vpop.f32.mrf.mxu0
    %v632 = vadd.f32 0.0, %v631
    %v633 = vpop.f32.mrf.mxu0
    %v634 = vadd.f32 0.0, %v633
    %635 = vmatmul.bf16.gmra.mxu0 %v571
    %v636 = vpop.f32.mrf.mxu0
    %v637 = vadd.f32 0.0, %v636
    %v638 = vpop.f32.mrf.mxu0
    %v639 = vadd.f32 0.0, %v638
    %640 = vmatmul.bf16.gmra.mxu0 %v574
    %v641 = vpop.f32.mrf.mxu0
    %v642 = vadd.f32 0.0, %v641
    %v643 = vpop.f32.mrf.mxu0
    %v644 = vadd.f32 0.0, %v643
    %645 = vmatmul.bf16.gmra.mxu0 %v577
    %v646 = vpop.f32.mrf.mxu0
    %v647 = vadd.f32 0.0, %v646
    %v648 = vpop.f32.mrf.mxu0
    %v649 = vadd.f32 0.0, %v648
    %650 = vmatmul.bf16.gmra.mxu0 %v580
    %v651 = vpop.f32.mrf.mxu0
    %v652 = vadd.f32 0.0, %v651
    %v653 = vpop.f32.mrf.mxu0
    %v654 = vadd.f32 0.0, %v653
    %655 = vdwg.mxu0
    %656 = vmatpush.bf16.msra.mxu0 0
    %657 = vmatpush.bf16.msra.mxu0 0
    %658 = vmatpush.bf16.msra.mxu0 0
    %659 = vmatpush.bf16.msra.mxu0 0
    %660 = vmatpush.bf16.msra.mxu0 0
    %661 = vmatpush.bf16.msra.mxu0 0
    %662 = vmatpush.bf16.msra.mxu0 0
    %663 = vmatpush.bf16.msra.mxu0 %v585
    %664 = vmatmul.bf16.gmra.mxu0 %v547
    %v665 = vpop.f32.mrf.mxu0
    %v666 = vadd.f32 0.0, %v665
    %v667 = vpop.f32.mrf.mxu0
    %v668 = vadd.f32 0.0, %v667
    %669 = vmatmul.bf16.gmra.mxu0 %v550
    %v670 = vpop.f32.mrf.mxu0
    %v671 = vadd.f32 0.0, %v670
    %v672 = vpop.f32.mrf.mxu0
    %v673 = vadd.f32 0.0, %v672
    %674 = vmatmul.bf16.gmra.mxu0 %v553
    %v675 = vpop.f32.mrf.mxu0
    %v676 = vadd.f32 0.0, %v675
    %v677 = vpop.f32.mrf.mxu0
    %v678 = vadd.f32 0.0, %v677
    %679 = vmatmul.bf16.gmra.mxu0 %v556
    %v680 = vpop.f32.mrf.mxu0
    %v681 = vadd.f32 0.0, %v680
    %v682 = vpop.f32.mrf.mxu0
    %v683 = vadd.f32 0.0, %v682
    %684 = vmatmul.bf16.gmra.mxu0 %v559
    %v685 = vpop.f32.mrf.mxu0
    %v686 = vadd.f32 0.0, %v685
    %v687 = vpop.f32.mrf.mxu0
    %v688 = vadd.f32 0.0, %v687
    %689 = vmatmul.bf16.gmra.mxu0 %v562
    %v690 = vpop.f32.mrf.mxu0
    %v691 = vadd.f32 0.0, %v690
    %v692 = vpop.f32.mrf.mxu0
    %v693 = vadd.f32 0.0, %v692
    %694 = vmatmul.bf16.gmra.mxu0 %v565
    %v695 = vpop.f32.mrf.mxu0
    %v696 = vadd.f32 0.0, %v695
    %v697 = vpop.f32.mrf.mxu0
    %v698 = vadd.f32 0.0, %v697
    %699 = vmatmul.bf16.gmra.mxu0 %v568
    %v700 = vpop.f32.mrf.mxu0
    %v701 = vadd.f32 0.0, %v700
    %v702 = vpop.f32.mrf.mxu0
    %v703 = vadd.f32 0.0, %v702
    %704 = vmatmul.bf16.gmra.mxu0 %v571
    %v705 = vpop.f32.mrf.mxu0
    %v706 = vadd.f32 0.0, %v705
    %v707 = vpop.f32.mrf.mxu0
    %v708 = vadd.f32 0.0, %v707
    %709 = vmatmul.bf16.gmra.mxu0 %v574
    %v710 = vpop.f32.mrf.mxu0
    %v711 = vadd.f32 0.0, %v710
    %v712 = vpop.f32.mrf.mxu0
    %v713 = vadd.f32 0.0, %v712
    %714 = vmatmul.bf16.gmra.mxu0 %v577
    %v715 = vpop.f32.mrf.mxu0
    %v716 = vadd.f32 0.0, %v715
    %v717 = vpop.f32.mrf.mxu0
    %v718 = vadd.f32 0.0, %v717
    %719 = vmatmul.bf16.gmra.mxu0 %v580
    %v720 = vpop.f32.mrf.mxu0
    %v721 = vadd.f32 0.0, %v720
    %v722 = vpop.f32.mrf.mxu0
    %v723 = vadd.f32 0.0, %v722
    %724 = vdwg.mxu0
    %v725 = vld [vmem:[%s7 + $0x4] sm:$0x1]
    %v726 = vperm.slane %v725, 0
    %v727 = vadd.f32 %v597, %v726
    %v728 = vadd.f32 %v599, %v726
    %v729 = vadd.f32 %v602, %v726
    %v730 = vadd.f32 %v604, %v726
    %v731 = vadd.f32 %v607, %v726
    %v732 = vadd.f32 %v609, %v726
    %v733 = vadd.f32 %v612, %v726
    %v734 = vadd.f32 %v614, %v726
    %v735 = vadd.f32 %v617, %v726
    %v736 = vadd.f32 %v619, %v726
    %v737 = vadd.f32 %v622, %v726
    %v738 = vadd.f32 %v624, %v726
    %v739 = vadd.f32 %v627, %v726
    %v740 = vadd.f32 %v629, %v726
    %v741 = vadd.f32 %v632, %v726
    %v742 = vadd.f32 %v634, %v726
    %v743 = vadd.f32 %v637, %v726
    %v744 = vadd.f32 %v639, %v726
    %v745 = vadd.f32 %v642, %v726
    %v746 = vadd.f32 %v644, %v726
    %v747 = vadd.f32 %v647, %v726
    %v748 = vadd.f32 %v649, %v726
    %v749 = vadd.f32 %v652, %v726
    %v750 = vadd.f32 %v654, %v726
    %751 = vadd.xlane.f32.xlu0 %v727
    %v752 = vpop.xlane.xlu0 %751
    %753 = vadd.xlane.f32.xlu0 %v728
    %v754 = vpop.xlane.xlu0 %753
    %755 = vadd.xlane.f32.xlu0 %v729
    %v756 = vpop.xlane.xlu0 %755
    %757 = vadd.xlane.f32.xlu0 %v730
    %v758 = vpop.xlane.xlu0 %757
    %759 = vadd.xlane.f32.xlu0 %v731
    %v760 = vpop.xlane.xlu0 %759
    %761 = vadd.xlane.f32.xlu0 %v732
    %v762 = vpop.xlane.xlu0 %761
    %763 = vadd.xlane.f32.xlu0 %v733
    %v764 = vpop.xlane.xlu0 %763
    %765 = vadd.xlane.f32.xlu0 %v734
    %v766 = vpop.xlane.xlu0 %765
    %767 = vadd.xlane.f32.xlu0 %v735
    %v768 = vpop.xlane.xlu0 %767
    %769 = vadd.xlane.f32.xlu0 %v736
    %v770 = vpop.xlane.xlu0 %769
    %771 = vadd.xlane.f32.xlu0 %v737
    %v772 = vpop.xlane.xlu0 %771
    %773 = vadd.xlane.f32.xlu0 %v738
    %v774 = vpop.xlane.xlu0 %773
    %775 = vadd.xlane.f32.xlu0 %v739
    %v776 = vpop.xlane.xlu0 %775
    %777 = vadd.xlane.f32.xlu0 %v740
    %v778 = vpop.xlane.xlu0 %777
    %779 = vadd.xlane.f32.xlu0 %v741
    %v780 = vpop.xlane.xlu0 %779
    %781 = vadd.xlane.f32.xlu0 %v742
    %v782 = vpop.xlane.xlu0 %781
    %783 = vadd.xlane.f32.xlu0 %v743
    %v784 = vpop.xlane.xlu0 %783
    %785 = vadd.xlane.f32.xlu0 %v744
    %v786 = vpop.xlane.xlu0 %785
    %787 = vadd.xlane.f32.xlu0 %v745
    %v788 = vpop.xlane.xlu0 %787
    %789 = vadd.xlane.f32.xlu0 %v746
    %v790 = vpop.xlane.xlu0 %789
    %791 = vadd.xlane.f32.xlu0 %v747
    %v792 = vpop.xlane.xlu0 %791
    %793 = vadd.xlane.f32.xlu0 %v748
    %v794 = vpop.xlane.xlu0 %793
    %795 = vadd.xlane.f32.xlu0 %v749
    %v796 = vpop.xlane.xlu0 %795
    %797 = vadd.xlane.f32.xlu0 %v750
    %v798 = vpop.xlane.xlu0 %797
    %v799 = vmul.f32 %v752, 0.03125
    %v800 = vmul.f32 %v754, 0.03125
    %v801 = vmul.f32 %v756, 0.03125
    %v802 = vmul.f32 %v758, 0.03125
    %v803 = vmul.f32 %v760, 0.03125
    %v804 = vmul.f32 %v762, 0.03125
    %v805 = vmul.f32 %v764, 0.03125
    %v806 = vmul.f32 %v766, 0.03125
    %v807 = vmul.f32 %v768, 0.03125
    %v808 = vmul.f32 %v770, 0.03125
    %v809 = vmul.f32 %v772, 0.03125
    %v810 = vmul.f32 %v774, 0.03125
    %v811 = vmul.f32 %v776, 0.03125
    %v812 = vmul.f32 %v778, 0.03125
    %v813 = vmul.f32 %v780, 0.03125
    %v814 = vmul.f32 %v782, 0.03125
    %v815 = vmul.f32 %v784, 0.03125
    %v816 = vmul.f32 %v786, 0.03125
    %v817 = vmul.f32 %v788, 0.03125
    %v818 = vmul.f32 %v790, 0.03125
    %v819 = vmul.f32 %v792, 0.03125
    %v820 = vmul.f32 %v794, 0.03125
    %v821 = vmul.f32 %v796, 0.03125
    %v822 = vmul.f32 %v798, 0.03125
    %v823 = vsub.f32 %v727, %v799
    %v824 = vsub.f32 %v728, %v800
    %v825 = vsub.f32 %v729, %v801
    %v826 = vsub.f32 %v730, %v802
    %v827 = vsub.f32 %v731, %v803
    %v828 = vsub.f32 %v732, %v804
    %v829 = vsub.f32 %v733, %v805
    %v830 = vsub.f32 %v734, %v806
    %v831 = vsub.f32 %v735, %v807
    %v832 = vsub.f32 %v736, %v808
    %v833 = vsub.f32 %v737, %v809
    %v834 = vsub.f32 %v738, %v810
    %v835 = vsub.f32 %v739, %v811
    %v836 = vsub.f32 %v740, %v812
    %v837 = vsub.f32 %v741, %v813
    %v838 = vsub.f32 %v742, %v814
    %v839 = vsub.f32 %v743, %v815
    %v840 = vsub.f32 %v744, %v816
    %v841 = vsub.f32 %v745, %v817
    %v842 = vsub.f32 %v746, %v818
    %v843 = vsub.f32 %v747, %v819
    %v844 = vsub.f32 %v748, %v820
    %v845 = vsub.f32 %v749, %v821
    %v846 = vsub.f32 %v750, %v822
    %v847 = vmul.f32 %v823, %v823
    %v848 = vmul.f32 %v824, %v824
    %v849 = vmul.f32 %v825, %v825
    %v850 = vmul.f32 %v826, %v826
    %v851 = vmul.f32 %v827, %v827
    %v852 = vmul.f32 %v828, %v828
    %v853 = vmul.f32 %v829, %v829
    %v854 = vmul.f32 %v830, %v830
    %v855 = vmul.f32 %v831, %v831
    %v856 = vmul.f32 %v832, %v832
    %v857 = vmul.f32 %v833, %v833
    %v858 = vmul.f32 %v834, %v834
    %v859 = vmul.f32 %v835, %v835
    %v860 = vmul.f32 %v836, %v836
    %v861 = vmul.f32 %v837, %v837
    %v862 = vmul.f32 %v838, %v838
    %v863 = vmul.f32 %v839, %v839
    %v864 = vmul.f32 %v840, %v840
    %v865 = vmul.f32 %v841, %v841
    %v866 = vmul.f32 %v842, %v842
    %v867 = vmul.f32 %v843, %v843
    %v868 = vmul.f32 %v844, %v844
    %v869 = vmul.f32 %v845, %v845
    %v870 = vmul.f32 %v846, %v846
    %871 = vadd.xlane.f32.xlu0 %v847
    %v872 = vpop.xlane.xlu0 %871
    %873 = vadd.xlane.f32.xlu0 %v848
    %v874 = vpop.xlane.xlu0 %873
    %875 = vadd.xlane.f32.xlu0 %v849
    %v876 = vpop.xlane.xlu0 %875
    %877 = vadd.xlane.f32.xlu0 %v850
    %v878 = vpop.xlane.xlu0 %877
    %879 = vadd.xlane.f32.xlu0 %v851
    %v880 = vpop.xlane.xlu0 %879
    %881 = vadd.xlane.f32.xlu0 %v852
    %v882 = vpop.xlane.xlu0 %881
    %883 = vadd.xlane.f32.xlu0 %v853
    %v884 = vpop.xlane.xlu0 %883
    %885 = vadd.xlane.f32.xlu0 %v854
    %v886 = vpop.xlane.xlu0 %885
    %887 = vadd.xlane.f32.xlu0 %v855
    %v888 = vpop.xlane.xlu0 %887
    %889 = vadd.xlane.f32.xlu0 %v856
    %v890 = vpop.xlane.xlu0 %889
    %891 = vadd.xlane.f32.xlu0 %v857
    %v892 = vpop.xlane.xlu0 %891
    %893 = vadd.xlane.f32.xlu0 %v858
    %v894 = vpop.xlane.xlu0 %893
    %895 = vadd.xlane.f32.xlu0 %v859
    %v896 = vpop.xlane.xlu0 %895
    %897 = vadd.xlane.f32.xlu0 %v860
    %v898 = vpop.xlane.xlu0 %897
    %899 = vadd.xlane.f32.xlu0 %v861
    %v900 = vpop.xlane.xlu0 %899
    %901 = vadd.xlane.f32.xlu0 %v862
    %v902 = vpop.xlane.xlu0 %901
    %903 = vadd.xlane.f32.xlu0 %v863
    %v904 = vpop.xlane.xlu0 %903
    %905 = vadd.xlane.f32.xlu0 %v864
    %v906 = vpop.xlane.xlu0 %905
    %907 = vadd.xlane.f32.xlu0 %v865
    %v908 = vpop.xlane.xlu0 %907
    %909 = vadd.xlane.f32.xlu0 %v866
    %v910 = vpop.xlane.xlu0 %909
    %911 = vadd.xlane.f32.xlu0 %v867
    %v912 = vpop.xlane.xlu0 %911
    %913 = vadd.xlane.f32.xlu0 %v868
    %v914 = vpop.xlane.xlu0 %913
    %915 = vadd.xlane.f32.xlu0 %v869
    %v916 = vpop.xlane.xlu0 %915
    %917 = vadd.xlane.f32.xlu0 %v870
    %v918 = vpop.xlane.xlu0 %917
    %v919 = vmul.f32 %v799, 96.0
    %v920 = vmul.f32 %v800, 96.0
    %v921 = vmul.f32 %v801, 96.0
    %v922 = vmul.f32 %v802, 96.0
    %v923 = vmul.f32 %v803, 96.0
    %v924 = vmul.f32 %v804, 96.0
    %v925 = vmul.f32 %v805, 96.0
    %v926 = vmul.f32 %v806, 96.0
    %v927 = vmul.f32 %v807, 96.0
    %v928 = vmul.f32 %v808, 96.0
    %v929 = vmul.f32 %v809, 96.0
    %v930 = vmul.f32 %v810, 96.0
    %v931 = vmul.f32 %v811, 96.0
    %v932 = vmul.f32 %v812, 96.0
    %v933 = vmul.f32 %v813, 96.0
    %v934 = vmul.f32 %v814, 96.0
    %v935 = vmul.f32 %v815, 96.0
    %v936 = vmul.f32 %v816, 96.0
    %v937 = vmul.f32 %v817, 96.0
    %v938 = vmul.f32 %v818, 96.0
    %v939 = vmul.f32 %v819, 96.0
    %v940 = vmul.f32 %v820, 96.0
    %v941 = vmul.f32 %v821, 96.0
    %v942 = vmul.f32 %v822, 96.0
    %v943 = vmul.f32 %v919, %v799
    %v944 = vmul.f32 %v920, %v800
    %v945 = vmul.f32 %v921, %v801
    %v946 = vmul.f32 %v922, %v802
    %v947 = vmul.f32 %v923, %v803
    %v948 = vmul.f32 %v924, %v804
    %v949 = vmul.f32 %v925, %v805
    %v950 = vmul.f32 %v926, %v806
    %v951 = vmul.f32 %v927, %v807
    %v952 = vmul.f32 %v928, %v808
    %v953 = vmul.f32 %v929, %v809
    %v954 = vmul.f32 %v930, %v810
    %v955 = vmul.f32 %v931, %v811
    %v956 = vmul.f32 %v932, %v812
    %v957 = vmul.f32 %v933, %v813
    %v958 = vmul.f32 %v934, %v814
    %v959 = vmul.f32 %v935, %v815
    %v960 = vmul.f32 %v936, %v816
    %v961 = vmul.f32 %v937, %v817
    %v962 = vmul.f32 %v938, %v818
    %v963 = vmul.f32 %v939, %v819
    %v964 = vmul.f32 %v940, %v820
    %v965 = vmul.f32 %v941, %v821
    %v966 = vmul.f32 %v942, %v822
    %v967 = vsub.f32 %v872, %v943
    %v968 = vsub.f32 %v874, %v944
    %v969 = vsub.f32 %v876, %v945
    %v970 = vsub.f32 %v878, %v946
    %v971 = vsub.f32 %v880, %v947
    %v972 = vsub.f32 %v882, %v948
    %v973 = vsub.f32 %v884, %v949
    %v974 = vsub.f32 %v886, %v950
    %v975 = vsub.f32 %v888, %v951
    %v976 = vsub.f32 %v890, %v952
    %v977 = vsub.f32 %v892, %v953
    %v978 = vsub.f32 %v894, %v954
    %v979 = vsub.f32 %v896, %v955
    %v980 = vsub.f32 %v898, %v956
    %v981 = vsub.f32 %v900, %v957
    %v982 = vsub.f32 %v902, %v958
    %v983 = vsub.f32 %v904, %v959
    %v984 = vsub.f32 %v906, %v960
    %v985 = vsub.f32 %v908, %v961
    %v986 = vsub.f32 %v910, %v962
    %v987 = vsub.f32 %v912, %v963
    %v988 = vsub.f32 %v914, %v964
    %v989 = vsub.f32 %v916, %v965
    %v990 = vsub.f32 %v918, %v966
    %v991 = vmul.f32 %v967, 0.03125
    %v992 = vmul.f32 %v968, 0.03125
    %v993 = vmul.f32 %v969, 0.03125
    %v994 = vmul.f32 %v970, 0.03125
    %v995 = vmul.f32 %v971, 0.03125
    %v996 = vmul.f32 %v972, 0.03125
    %v997 = vmul.f32 %v973, 0.03125
    %v998 = vmul.f32 %v974, 0.03125
    %v999 = vmul.f32 %v975, 0.03125
    %v1000 = vmul.f32 %v976, 0.03125
    %v1001 = vmul.f32 %v977, 0.03125
    %v1002 = vmul.f32 %v978, 0.03125
    %v1003 = vmul.f32 %v979, 0.03125
    %v1004 = vmul.f32 %v980, 0.03125
    %v1005 = vmul.f32 %v981, 0.03125
    %v1006 = vmul.f32 %v982, 0.03125
    %v1007 = vmul.f32 %v983, 0.03125
    %v1008 = vmul.f32 %v984, 0.03125
    %v1009 = vmul.f32 %v985, 0.03125
    %v1010 = vmul.f32 %v986, 0.03125
    %v1011 = vmul.f32 %v987, 0.03125
    %v1012 = vmul.f32 %v988, 0.03125
    %v1013 = vmul.f32 %v989, 0.03125
    %v1014 = vmul.f32 %v990, 0.03125
    %v1015 = vadd.f32 %v991, 1e-05
    %v1016 = vadd.f32 %v992, 1e-05
    %v1017 = vadd.f32 %v993, 1e-05
    %v1018 = vadd.f32 %v994, 1e-05
    %v1019 = vadd.f32 %v995, 1e-05
    %v1020 = vadd.f32 %v996, 1e-05
    %v1021 = vadd.f32 %v997, 1e-05
    %v1022 = vadd.f32 %v998, 1e-05
    %v1023 = vadd.f32 %v999, 1e-05
    %v1024 = vadd.f32 %v1000, 1e-05
    %v1025 = vadd.f32 %v1001, 1e-05
    %v1026 = vadd.f32 %v1002, 1e-05
    %v1027 = vadd.f32 %v1003, 1e-05
    %v1028 = vadd.f32 %v1004, 1e-05
    %v1029 = vadd.f32 %v1005, 1e-05
    %v1030 = vadd.f32 %v1006, 1e-05
    %v1031 = vadd.f32 %v1007, 1e-05
    %v1032 = vadd.f32 %v1008, 1e-05
    %v1033 = vadd.f32 %v1009, 1e-05
    %v1034 = vadd.f32 %v1010, 1e-05
    %v1035 = vadd.f32 %v1011, 1e-05
    %v1036 = vadd.f32 %v1012, 1e-05
    %v1037 = vadd.f32 %v1013, 1e-05
    %v1038 = vadd.f32 %v1014, 1e-05
    %v1039 = vrsqrt.pop %v1015
    %v1040 = vmul.f32 %v1039, %v1015
    %v1041 = vmul.f32 %v1040, %v1039
    %v1042 = vmul.f32 0.5, %v1041
    %v1043 = vsub.f32 1.5, %v1042
    %v1044 = vmul.f32 %v1039, %v1043
    %vm1045 = vweird.f32 %v1015
    %vm1046 = vweird.f32 %v1039
    %vm1047 = vmor %vm1045, %vm1046
    %v1048 = vsel %vm1047, %v1039, %v1044
    %v1049 = vrsqrt.pop %v1016
    %v1050 = vmul.f32 %v1049, %v1016
    %v1051 = vmul.f32 %v1050, %v1049
    %v1052 = vmul.f32 0.5, %v1051
    %v1053 = vsub.f32 1.5, %v1052
    %v1054 = vmul.f32 %v1049, %v1053
    %vm1055 = vweird.f32 %v1016
    %vm1056 = vweird.f32 %v1049
    %vm1057 = vmor %vm1055, %vm1056
    %v1058 = vsel %vm1057, %v1049, %v1054
    %v1059 = vrsqrt.pop %v1017
    %v1060 = vmul.f32 %v1059, %v1017
    %v1061 = vmul.f32 %v1060, %v1059
    %v1062 = vmul.f32 0.5, %v1061
    %v1063 = vsub.f32 1.5, %v1062
    %v1064 = vmul.f32 %v1059, %v1063
    %vm1065 = vweird.f32 %v1017
    %vm1066 = vweird.f32 %v1059
    %vm1067 = vmor %vm1065, %vm1066
    %v1068 = vsel %vm1067, %v1059, %v1064
    %v1069 = vrsqrt.pop %v1018
    %v1070 = vmul.f32 %v1069, %v1018
    %v1071 = vmul.f32 %v1070, %v1069
    %v1072 = vmul.f32 0.5, %v1071
    %v1073 = vsub.f32 1.5, %v1072
    %v1074 = vmul.f32 %v1069, %v1073
    %vm1075 = vweird.f32 %v1018
    %vm1076 = vweird.f32 %v1069
    %vm1077 = vmor %vm1075, %vm1076
    %v1078 = vsel %vm1077, %v1069, %v1074
    %v1079 = vrsqrt.pop %v1019
    %v1080 = vmul.f32 %v1079, %v1019
    %v1081 = vmul.f32 %v1080, %v1079
    %v1082 = vmul.f32 0.5, %v1081
    %v1083 = vsub.f32 1.5, %v1082
    %v1084 = vmul.f32 %v1079, %v1083
    %vm1085 = vweird.f32 %v1019
    %vm1086 = vweird.f32 %v1079
    %vm1087 = vmor %vm1085, %vm1086
    %v1088 = vsel %vm1087, %v1079, %v1084
    %v1089 = vrsqrt.pop %v1020
    %v1090 = vmul.f32 %v1089, %v1020
    %v1091 = vmul.f32 %v1090, %v1089
    %v1092 = vmul.f32 0.5, %v1091
    %v1093 = vsub.f32 1.5, %v1092
    %v1094 = vmul.f32 %v1089, %v1093
    %vm1095 = vweird.f32 %v1020
    %vm1096 = vweird.f32 %v1089
    %vm1097 = vmor %vm1095, %vm1096
    %v1098 = vsel %vm1097, %v1089, %v1094
    %v1099 = vrsqrt.pop %v1021
    %v1100 = vmul.f32 %v1099, %v1021
    %v1101 = vmul.f32 %v1100, %v1099
    %v1102 = vmul.f32 0.5, %v1101
    %v1103 = vsub.f32 1.5, %v1102
    %v1104 = vmul.f32 %v1099, %v1103
    %vm1105 = vweird.f32 %v1021
    %vm1106 = vweird.f32 %v1099
    %vm1107 = vmor %vm1105, %vm1106
    %v1108 = vsel %vm1107, %v1099, %v1104
    %v1109 = vrsqrt.pop %v1022
    %v1110 = vmul.f32 %v1109, %v1022
    %v1111 = vmul.f32 %v1110, %v1109
    %v1112 = vmul.f32 0.5, %v1111
    %v1113 = vsub.f32 1.5, %v1112
    %v1114 = vmul.f32 %v1109, %v1113
    %vm1115 = vweird.f32 %v1022
    %vm1116 = vweird.f32 %v1109
    %vm1117 = vmor %vm1115, %vm1116
    %v1118 = vsel %vm1117, %v1109, %v1114
    %v1119 = vrsqrt.pop %v1023
    %v1120 = vmul.f32 %v1119, %v1023
    %v1121 = vmul.f32 %v1120, %v1119
    %v1122 = vmul.f32 0.5, %v1121
    %v1123 = vsub.f32 1.5, %v1122
    %v1124 = vmul.f32 %v1119, %v1123
    %vm1125 = vweird.f32 %v1023
    %vm1126 = vweird.f32 %v1119
    %vm1127 = vmor %vm1125, %vm1126
    %v1128 = vsel %vm1127, %v1119, %v1124
    %v1129 = vrsqrt.pop %v1024
    %v1130 = vmul.f32 %v1129, %v1024
    %v1131 = vmul.f32 %v1130, %v1129
    %v1132 = vmul.f32 0.5, %v1131
    %v1133 = vsub.f32 1.5, %v1132
    %v1134 = vmul.f32 %v1129, %v1133
    %vm1135 = vweird.f32 %v1024
    %vm1136 = vweird.f32 %v1129
    %vm1137 = vmor %vm1135, %vm1136
    %v1138 = vsel %vm1137, %v1129, %v1134
    %v1139 = vrsqrt.pop %v1025
    %v1140 = vmul.f32 %v1139, %v1025
    %v1141 = vmul.f32 %v1140, %v1139
    %v1142 = vmul.f32 0.5, %v1141
    %v1143 = vsub.f32 1.5, %v1142
    %v1144 = vmul.f32 %v1139, %v1143
    %vm1145 = vweird.f32 %v1025
    %vm1146 = vweird.f32 %v1139
    %vm1147 = vmor %vm1145, %vm1146
    %v1148 = vsel %vm1147, %v1139, %v1144
    %v1149 = vrsqrt.pop %v1026
    %v1150 = vmul.f32 %v1149, %v1026
    %v1151 = vmul.f32 %v1150, %v1149
    %v1152 = vmul.f32 0.5, %v1151
    %v1153 = vsub.f32 1.5, %v1152
    %v1154 = vmul.f32 %v1149, %v1153
    %vm1155 = vweird.f32 %v1026
    %vm1156 = vweird.f32 %v1149
    %vm1157 = vmor %vm1155, %vm1156
    %v1158 = vsel %vm1157, %v1149, %v1154
    %v1159 = vrsqrt.pop %v1027
    %v1160 = vmul.f32 %v1159, %v1027
    %v1161 = vmul.f32 %v1160, %v1159
    %v1162 = vmul.f32 0.5, %v1161
    %v1163 = vsub.f32 1.5, %v1162
    %v1164 = vmul.f32 %v1159, %v1163
    %vm1165 = vweird.f32 %v1027
    %vm1166 = vweird.f32 %v1159
    %vm1167 = vmor %vm1165, %vm1166
    %v1168 = vsel %vm1167, %v1159, %v1164
    %v1169 = vrsqrt.pop %v1028
    %v1170 = vmul.f32 %v1169, %v1028
    %v1171 = vmul.f32 %v1170, %v1169
    %v1172 = vmul.f32 0.5, %v1171
    %v1173 = vsub.f32 1.5, %v1172
    %v1174 = vmul.f32 %v1169, %v1173
    %vm1175 = vweird.f32 %v1028
    %vm1176 = vweird.f32 %v1169
    %vm1177 = vmor %vm1175, %vm1176
    %v1178 = vsel %vm1177, %v1169, %v1174
    %v1179 = vrsqrt.pop %v1029
    %v1180 = vmul.f32 %v1179, %v1029
    %v1181 = vmul.f32 %v1180, %v1179
    %v1182 = vmul.f32 0.5, %v1181
    %v1183 = vsub.f32 1.5, %v1182
    %v1184 = vmul.f32 %v1179, %v1183
    %vm1185 = vweird.f32 %v1029
    %vm1186 = vweird.f32 %v1179
    %vm1187 = vmor %vm1185, %vm1186
    %v1188 = vsel %vm1187, %v1179, %v1184
    %v1189 = vrsqrt.pop %v1030
    %v1190 = vmul.f32 %v1189, %v1030
    %v1191 = vmul.f32 %v1190, %v1189
    %v1192 = vmul.f32 0.5, %v1191
    %v1193 = vsub.f32 1.5, %v1192
    %v1194 = vmul.f32 %v1189, %v1193
    %vm1195 = vweird.f32 %v1030
    %vm1196 = vweird.f32 %v1189
    %vm1197 = vmor %vm1195, %vm1196
    %v1198 = vsel %vm1197, %v1189, %v1194
    %v1199 = vrsqrt.pop %v1031
    %v1200 = vmul.f32 %v1199, %v1031
    %v1201 = vmul.f32 %v1200, %v1199
    %v1202 = vmul.f32 0.5, %v1201
    %v1203 = vsub.f32 1.5, %v1202
    %v1204 = vmul.f32 %v1199, %v1203
    %vm1205 = vweird.f32 %v1031
    %vm1206 = vweird.f32 %v1199
    %vm1207 = vmor %vm1205, %vm1206
    %v1208 = vsel %vm1207, %v1199, %v1204
    %v1209 = vrsqrt.pop %v1032
    %v1210 = vmul.f32 %v1209, %v1032
    %v1211 = vmul.f32 %v1210, %v1209
    %v1212 = vmul.f32 0.5, %v1211
    %v1213 = vsub.f32 1.5, %v1212
    %v1214 = vmul.f32 %v1209, %v1213
    %vm1215 = vweird.f32 %v1032
    %vm1216 = vweird.f32 %v1209
    %vm1217 = vmor %vm1215, %vm1216
    %v1218 = vsel %vm1217, %v1209, %v1214
    %v1219 = vrsqrt.pop %v1033
    %v1220 = vmul.f32 %v1219, %v1033
    %v1221 = vmul.f32 %v1220, %v1219
    %v1222 = vmul.f32 0.5, %v1221
    %v1223 = vsub.f32 1.5, %v1222
    %v1224 = vmul.f32 %v1219, %v1223
    %vm1225 = vweird.f32 %v1033
    %vm1226 = vweird.f32 %v1219
    %vm1227 = vmor %vm1225, %vm1226
    %v1228 = vsel %vm1227, %v1219, %v1224
    %v1229 = vrsqrt.pop %v1034
    %v1230 = vmul.f32 %v1229, %v1034
    %v1231 = vmul.f32 %v1230, %v1229
    %v1232 = vmul.f32 0.5, %v1231
    %v1233 = vsub.f32 1.5, %v1232
    %v1234 = vmul.f32 %v1229, %v1233
    %vm1235 = vweird.f32 %v1034
    %vm1236 = vweird.f32 %v1229
    %vm1237 = vmor %vm1235, %vm1236
    %v1238 = vsel %vm1237, %v1229, %v1234
    %v1239 = vrsqrt.pop %v1035
    %v1240 = vmul.f32 %v1239, %v1035
    %v1241 = vmul.f32 %v1240, %v1239
    %v1242 = vmul.f32 0.5, %v1241
    %v1243 = vsub.f32 1.5, %v1242
    %v1244 = vmul.f32 %v1239, %v1243
    %vm1245 = vweird.f32 %v1035
    %vm1246 = vweird.f32 %v1239
    %vm1247 = vmor %vm1245, %vm1246
    %v1248 = vsel %vm1247, %v1239, %v1244
    %v1249 = vrsqrt.pop %v1036
    %v1250 = vmul.f32 %v1249, %v1036
    %v1251 = vmul.f32 %v1250, %v1249
    %v1252 = vmul.f32 0.5, %v1251
    %v1253 = vsub.f32 1.5, %v1252
    %v1254 = vmul.f32 %v1249, %v1253
    %vm1255 = vweird.f32 %v1036
    %vm1256 = vweird.f32 %v1249
    %vm1257 = vmor %vm1255, %vm1256
    %v1258 = vsel %vm1257, %v1249, %v1254
    %v1259 = vrsqrt.pop %v1037
    %v1260 = vmul.f32 %v1259, %v1037
    %v1261 = vmul.f32 %v1260, %v1259
    %v1262 = vmul.f32 0.5, %v1261
    %v1263 = vsub.f32 1.5, %v1262
    %v1264 = vmul.f32 %v1259, %v1263
    %vm1265 = vweird.f32 %v1037
    %vm1266 = vweird.f32 %v1259
    %vm1267 = vmor %vm1265, %vm1266
    %v1268 = vsel %vm1267, %v1259, %v1264
    %v1269 = vrsqrt.pop %v1038
    %v1270 = vmul.f32 %v1269, %v1038
    %v1271 = vmul.f32 %v1270, %v1269
    %v1272 = vmul.f32 0.5, %v1271
    %v1273 = vsub.f32 1.5, %v1272
    %v1274 = vmul.f32 %v1269, %v1273
    %vm1275 = vweird.f32 %v1038
    %vm1276 = vweird.f32 %v1269
    %vm1277 = vmor %vm1275, %vm1276
    %v1278 = vsel %vm1277, %v1269, %v1274
    %v1279 = vmul.f32 %v823, %v1048
    %v1280 = vmul.f32 %v824, %v1058
    %v1281 = vmul.f32 %v825, %v1068
    %v1282 = vmul.f32 %v826, %v1078
    %v1283 = vmul.f32 %v827, %v1088
    %v1284 = vmul.f32 %v828, %v1098
    %v1285 = vmul.f32 %v829, %v1108
    %v1286 = vmul.f32 %v830, %v1118
    %v1287 = vmul.f32 %v831, %v1128
    %v1288 = vmul.f32 %v832, %v1138
    %v1289 = vmul.f32 %v833, %v1148
    %v1290 = vmul.f32 %v834, %v1158
    %v1291 = vmul.f32 %v835, %v1168
    %v1292 = vmul.f32 %v836, %v1178
    %v1293 = vmul.f32 %v837, %v1188
    %v1294 = vmul.f32 %v838, %v1198
    %v1295 = vmul.f32 %v839, %v1208
    %v1296 = vmul.f32 %v840, %v1218
    %v1297 = vmul.f32 %v841, %v1228
    %v1298 = vmul.f32 %v842, %v1238
    %v1299 = vmul.f32 %v843, %v1248
    %v1300 = vmul.f32 %v844, %v1258
    %v1301 = vmul.f32 %v845, %v1268
    %v1302 = vmul.f32 %v846, %v1278
    %v1303 = vld [vmem:[%s7 + $0x5] sm:$0x1]
    %v1304 = vperm.slane %v1303, 0
    %v1305 = vmul.f32 %v1279, %v1304
    %v1306 = vmul.f32 %v1280, %v1304
    %v1307 = vmul.f32 %v1281, %v1304
    %v1308 = vmul.f32 %v1282, %v1304
    %v1309 = vmul.f32 %v1283, %v1304
    %v1310 = vmul.f32 %v1284, %v1304
    %v1311 = vmul.f32 %v1285, %v1304
    %v1312 = vmul.f32 %v1286, %v1304
    %v1313 = vmul.f32 %v1287, %v1304
    %v1314 = vmul.f32 %v1288, %v1304
    %v1315 = vmul.f32 %v1289, %v1304
    %v1316 = vmul.f32 %v1290, %v1304
    %v1317 = vmul.f32 %v1291, %v1304
    %v1318 = vmul.f32 %v1292, %v1304
    %v1319 = vmul.f32 %v1293, %v1304
    %v1320 = vmul.f32 %v1294, %v1304
    %v1321 = vmul.f32 %v1295, %v1304
    %v1322 = vmul.f32 %v1296, %v1304
    %v1323 = vmul.f32 %v1297, %v1304
    %v1324 = vmul.f32 %v1298, %v1304
    %v1325 = vmul.f32 %v1299, %v1304
    %v1326 = vmul.f32 %v1300, %v1304
    %v1327 = vmul.f32 %v1301, %v1304
    %v1328 = vmul.f32 %v1302, %v1304
    %v1329 = vld [vmem:[%s7 + $0x6] sm:$0x1]
    %v1330 = vperm.slane %v1329, 0
    %v1331 = vadd.f32 %v1305, %v1330
    %v1332 = vadd.f32 %v1306, %v1330
    %v1333 = vadd.f32 %v1307, %v1330
    %v1334 = vadd.f32 %v1308, %v1330
    %v1335 = vadd.f32 %v1309, %v1330
    %v1336 = vadd.f32 %v1310, %v1330
    %v1337 = vadd.f32 %v1311, %v1330
    %v1338 = vadd.f32 %v1312, %v1330
    %v1339 = vadd.f32 %v1313, %v1330
    %v1340 = vadd.f32 %v1314, %v1330
    %v1341 = vadd.f32 %v1315, %v1330
    %v1342 = vadd.f32 %v1316, %v1330
    %v1343 = vadd.f32 %v1317, %v1330
    %v1344 = vadd.f32 %v1318, %v1330
    %v1345 = vadd.f32 %v1319, %v1330
    %v1346 = vadd.f32 %v1320, %v1330
    %v1347 = vadd.f32 %v1321, %v1330
    %v1348 = vadd.f32 %v1322, %v1330
    %v1349 = vadd.f32 %v1323, %v1330
    %v1350 = vadd.f32 %v1324, %v1330
    %v1351 = vadd.f32 %v1325, %v1330
    %v1352 = vadd.f32 %v1326, %v1330
    %v1353 = vadd.f32 %v1327, %v1330
    %v1354 = vadd.f32 %v1328, %v1330
    %v1355 = vmax.f32 %v1331, 0.0
    %v1356 = vmax.f32 %v1332, 0.0
    %v1357 = vmax.f32 %v1333, 0.0
    %v1358 = vmax.f32 %v1334, 0.0
    %v1359 = vmax.f32 %v1335, 0.0
    %v1360 = vmax.f32 %v1336, 0.0
    %v1361 = vmax.f32 %v1337, 0.0
    %v1362 = vmax.f32 %v1338, 0.0
    %v1363 = vmax.f32 %v1339, 0.0
    %v1364 = vmax.f32 %v1340, 0.0
    %v1365 = vmax.f32 %v1341, 0.0
    %v1366 = vmax.f32 %v1342, 0.0
    %v1367 = vmax.f32 %v1343, 0.0
    %v1368 = vmax.f32 %v1344, 0.0
    %v1369 = vmax.f32 %v1345, 0.0
    %v1370 = vmax.f32 %v1346, 0.0
    %v1371 = vmax.f32 %v1347, 0.0
    %v1372 = vmax.f32 %v1348, 0.0
    %v1373 = vmax.f32 %v1349, 0.0
    %v1374 = vmax.f32 %v1350, 0.0
    %v1375 = vmax.f32 %v1351, 0.0
    %v1376 = vmax.f32 %v1352, 0.0
    %v1377 = vmax.f32 %v1353, 0.0
    %v1378 = vmax.f32 %v1354, 0.0
    %v1379 = vpack.c.bf16 %v1356, %v1355
    %v1380 = vpack.c.bf16 %v1358, %v1357
    %v1381 = vpack.c.bf16 %v1360, %v1359
    %v1382 = vpack.c.bf16 %v1362, %v1361
    %v1383 = vpack.c.bf16 %v1364, %v1363
    %v1384 = vpack.c.bf16 %v1366, %v1365
    %v1385 = vpack.c.bf16 %v1368, %v1367
    %v1386 = vpack.c.bf16 %v1370, %v1369
    %v1387 = vpack.c.bf16 %v1372, %v1371
    %v1388 = vpack.c.bf16 %v1374, %v1373
    %v1389 = vpack.c.bf16 %v1376, %v1375
    %v1390 = vpack.c.bf16 %v1378, %v1377
    %v1391 = vld [vmem:[%s6 + $0x4] sm:$0xf]
    %v1392 = vld [vmem:[%s6 + $0x18] sm:$0xf]
    %v1393 = vld [vmem:[%s6 + $0x2c] sm:$0xf]
    %v1394 = vld [vmem:[%s6 + $0x40] sm:$0xf]
    %v1395 = vld [vmem:[%s6 + $0x54] sm:$0xf]
    %v1396 = vld [vmem:[%s6 + $0x68] sm:$0xf]
    %v1397 = vld [vmem:[%s6 + $0x7c] sm:$0xf]
    %v1398 = vld [vmem:[%s6 + $0x90] sm:$0xf]
    %v1399 = vld [vmem:[%s6 + $0xa4] sm:$0xf]
    %v1400 = vld [vmem:[%s6 + $0xb8] sm:$0xf]
    %v1401 = vld [vmem:[%s6 + $0xcc] sm:$0xf]
    %v1402 = vld [vmem:[%s6 + $0xe0] sm:$0xf]
    %v1403 = vld [vmem:[%s6 + $0xf4] sm:$0xf]
    %v1404 = vld [vmem:[%s6 + $0x108] sm:$0xf]
    %v1405 = vld [vmem:[%s6 + $0x11c] sm:$0xf]
    %v1406 = vld [vmem:[%s6 + $0x130] sm:$0xf]
    %v1407 = vld [vmem:[%s7 + $0x7] sm:$0x1]
    %v1408 = vperm.slane %v1407, 0
    %v1425 = vunpack.c.l.b16 %v1391
    %v1426 = vunpack.c.l.b16 %v1392
    %v1427 = vunpack.c.l.b16 %v1393
    %v1428 = vunpack.c.l.b16 %v1394
    %v1429 = vunpack.c.l.b16 %v1395
    %v1430 = vunpack.c.l.b16 %v1396
    %v1431 = vunpack.c.l.b16 %v1397
    %v1432 = vunpack.c.l.b16 %v1398
    %v1433 = vunpack.c.l.b16 %v1399
    %v1434 = vunpack.c.l.b16 %v1400
    %v1435 = vunpack.c.l.b16 %v1401
    %v1436 = vunpack.c.l.b16 %v1402
    %v1437 = vunpack.c.l.b16 %v1403
    %v1438 = vunpack.c.l.b16 %v1404
    %v1439 = vunpack.c.l.b16 %v1405
    %v1440 = vunpack.c.l.b16 %v1406
    %v1441 = vpack.c.b16 %v1426, %v1425
    %v1442 = vpack.c.b16 %v1428, %v1427
    %v1443 = vpack.c.b16 %v1430, %v1429
    %v1444 = vpack.c.b16 %v1432, %v1431
    %v1445 = vpack.c.b16 %v1434, %v1433
    %v1446 = vpack.c.b16 %v1436, %v1435
    %v1447 = vpack.c.b16 %v1438, %v1437
    %v1448 = vpack.c.b16 %v1440, %v1439
    %1457 = vmatpush.bf16.msra.mxu0 %v1448
    %1458 = vmatpush.bf16.msra.mxu0 %v1447
    %1459 = vmatpush.bf16.msra.mxu0 %v1446
    %1460 = vmatpush.bf16.msra.mxu0 %v1445
    %1461 = vmatpush.bf16.msra.mxu0 %v1444
    %1462 = vmatpush.bf16.msra.mxu0 %v1443
    %1463 = vmatpush.bf16.msra.mxu0 %v1442
    %1464 = vmatpush.bf16.msra.mxu0 %v1441
    %1465 = vmatmul.bf16.gmra.mxu0 %v1379
    %v1466 = vpop.f32.mrf.mxu0
    %v1467 = vadd.f32 %v1408, %v1466
    %v1468 = vpop.f32.mrf.mxu0
    %v1469 = vadd.f32 %v1408, %v1468
    %1470 = vmatmul.bf16.gmra.mxu0 %v1380
    %v1471 = vpop.f32.mrf.mxu0
    %v1472 = vadd.f32 %v1408, %v1471
    %v1473 = vpop.f32.mrf.mxu0
    %v1474 = vadd.f32 %v1408, %v1473
    %1475 = vmatmul.bf16.gmra.mxu0 %v1381
    %v1476 = vpop.f32.mrf.mxu0
    %v1477 = vadd.f32 %v1408, %v1476
    %v1478 = vpop.f32.mrf.mxu0
    %v1479 = vadd.f32 %v1408, %v1478
    %1480 = vmatmul.bf16.gmra.mxu0 %v1382
    %v1481 = vpop.f32.mrf.mxu0
    %v1482 = vadd.f32 %v1408, %v1481
    %v1483 = vpop.f32.mrf.mxu0
    %v1484 = vadd.f32 %v1408, %v1483
    %1485 = vmatmul.bf16.gmra.mxu0 %v1383
    %v1486 = vpop.f32.mrf.mxu0
    %v1487 = vadd.f32 %v1408, %v1486
    %v1488 = vpop.f32.mrf.mxu0
    %v1489 = vadd.f32 %v1408, %v1488
    %1490 = vmatmul.bf16.gmra.mxu0 %v1384
    %v1491 = vpop.f32.mrf.mxu0
    %v1492 = vadd.f32 %v1408, %v1491
    %v1493 = vpop.f32.mrf.mxu0
    %v1494 = vadd.f32 %v1408, %v1493
    %1495 = vmatmul.bf16.gmra.mxu0 %v1385
    %v1496 = vpop.f32.mrf.mxu0
    %v1497 = vadd.f32 %v1408, %v1496
    %v1498 = vpop.f32.mrf.mxu0
    %v1499 = vadd.f32 %v1408, %v1498
    %1500 = vmatmul.bf16.gmra.mxu0 %v1386
    %v1501 = vpop.f32.mrf.mxu0
    %v1502 = vadd.f32 %v1408, %v1501
    %v1503 = vpop.f32.mrf.mxu0
    %v1504 = vadd.f32 %v1408, %v1503
    %1505 = vmatmul.bf16.gmra.mxu0 %v1387
    %v1506 = vpop.f32.mrf.mxu0
    %v1507 = vadd.f32 %v1408, %v1506
    %v1508 = vpop.f32.mrf.mxu0
    %v1509 = vadd.f32 %v1408, %v1508
    %1510 = vmatmul.bf16.gmra.mxu0 %v1388
    %v1511 = vpop.f32.mrf.mxu0
    %v1512 = vadd.f32 %v1408, %v1511
    %v1513 = vpop.f32.mrf.mxu0
    %v1514 = vadd.f32 %v1408, %v1513
    %1515 = vmatmul.bf16.gmra.mxu0 %v1389
    %v1516 = vpop.f32.mrf.mxu0
    %v1517 = vadd.f32 %v1408, %v1516
    %v1518 = vpop.f32.mrf.mxu0
    %v1519 = vadd.f32 %v1408, %v1518
    %1520 = vmatmul.bf16.gmra.mxu0 %v1390
    %v1521 = vpop.f32.mrf.mxu0
    %v1522 = vadd.f32 %v1408, %v1521
    %v1523 = vpop.f32.mrf.mxu0
    %v1524 = vadd.f32 %v1408, %v1523
    %1525 = vdwg.mxu0
    %v1526 = vld [vmem:[%s3] sm:$0xff]
    %v1527 = vld [vmem:[%s3 + $0x8] sm:$0xff]
    %v1528 = vld [vmem:[%s3 + $0x10] sm:$0xff]
    %v1529 = vld [vmem:[%s3 + $0x18] sm:$0xff]
    %v1530 = vld [vmem:[%s3 + $0x20] sm:$0xff]
    %v1531 = vld [vmem:[%s3 + $0x28] sm:$0xff]
    %v1532 = vld [vmem:[%s3 + $0x30] sm:$0xff]
    %v1533 = vld [vmem:[%s3 + $0x38] sm:$0xff]
    %v1534 = vld [vmem:[%s3 + $0x40] sm:$0xff]
    %v1535 = vld [vmem:[%s3 + $0x48] sm:$0xff]
    %v1536 = vld [vmem:[%s3 + $0x50] sm:$0xff]
    %v1537 = vld [vmem:[%s3 + $0x58] sm:$0xff]
    %v1538 = vld [vmem:[%s3 + $0x60] sm:$0xff]
    %v1539 = vld [vmem:[%s3 + $0x68] sm:$0xff]
    %v1540 = vld [vmem:[%s3 + $0x70] sm:$0xff]
    %v1541 = vld [vmem:[%s3 + $0x78] sm:$0xff]
    %v1542 = vld [vmem:[%s3 + $0x80] sm:$0xff]
    %v1543 = vld [vmem:[%s3 + $0x88] sm:$0xff]
    %v1544 = vld [vmem:[%s3 + $0x90] sm:$0xff]
    %v1545 = vld [vmem:[%s3 + $0x98] sm:$0xff]
    %v1546 = vld [vmem:[%s3 + $0xa0] sm:$0xff]
    %v1547 = vld [vmem:[%s3 + $0xa8] sm:$0xff]
    %v1548 = vld [vmem:[%s3 + $0xb0] sm:$0xff]
    %v1549 = vld [vmem:[%s3 + $0xb8] sm:$0xff]
    %v1550 = vlaneseq
    %v1551 = vand.u32 %v1550, 127
    %1552 = vset.pattern.permute.xlu0 0
    %1553 = vperm.xlu0 %1552, %v1526
    %v1554 = vpop.permute.xlu0 %1553
    %1555 = vset.pattern.permute.xlu0 0
    %1556 = vperm.xlu0 %1555, %v1527
    %v1557 = vpop.permute.xlu0 %1556
    %1558 = vset.pattern.permute.xlu0 0
    %1559 = vperm.xlu0 %1558, %v1528
    %v1560 = vpop.permute.xlu0 %1559
    %1561 = vset.pattern.permute.xlu0 0
    %1562 = vperm.xlu0 %1561, %v1529
    %v1563 = vpop.permute.xlu0 %1562
    %1564 = vset.pattern.permute.xlu0 0
    %1565 = vperm.xlu0 %1564, %v1530
    %v1566 = vpop.permute.xlu0 %1565
    %1567 = vset.pattern.permute.xlu0 0
    %1568 = vperm.xlu0 %1567, %v1531
    %v1569 = vpop.permute.xlu0 %1568
    %1570 = vset.pattern.permute.xlu0 0
    %1571 = vperm.xlu0 %1570, %v1532
    %v1572 = vpop.permute.xlu0 %1571
    %1573 = vset.pattern.permute.xlu0 0
    %1574 = vperm.xlu0 %1573, %v1533
    %v1575 = vpop.permute.xlu0 %1574
    %1576 = vset.pattern.permute.xlu0 0
    %1577 = vperm.xlu0 %1576, %v1534
    %v1578 = vpop.permute.xlu0 %1577
    %1579 = vset.pattern.permute.xlu0 0
    %1580 = vperm.xlu0 %1579, %v1535
    %v1581 = vpop.permute.xlu0 %1580
    %1582 = vset.pattern.permute.xlu0 0
    %1583 = vperm.xlu0 %1582, %v1536
    %v1584 = vpop.permute.xlu0 %1583
    %1585 = vset.pattern.permute.xlu0 0
    %1586 = vperm.xlu0 %1585, %v1537
    %v1587 = vpop.permute.xlu0 %1586
    %1588 = vset.pattern.permute.xlu0 0
    %1589 = vperm.xlu0 %1588, %v1538
    %v1590 = vpop.permute.xlu0 %1589
    %1591 = vset.pattern.permute.xlu0 0
    %1592 = vperm.xlu0 %1591, %v1539
    %v1593 = vpop.permute.xlu0 %1592
    %1594 = vset.pattern.permute.xlu0 0
    %1595 = vperm.xlu0 %1594, %v1540
    %v1596 = vpop.permute.xlu0 %1595
    %1597 = vset.pattern.permute.xlu0 0
    %1598 = vperm.xlu0 %1597, %v1541
    %v1599 = vpop.permute.xlu0 %1598
    %1600 = vset.pattern.permute.xlu0 0
    %1601 = vperm.xlu0 %1600, %v1542
    %v1602 = vpop.permute.xlu0 %1601
    %1603 = vset.pattern.permute.xlu0 0
    %1604 = vperm.xlu0 %1603, %v1543
    %v1605 = vpop.permute.xlu0 %1604
    %1606 = vset.pattern.permute.xlu0 0
    %1607 = vperm.xlu0 %1606, %v1544
    %v1608 = vpop.permute.xlu0 %1607
    %1609 = vset.pattern.permute.xlu0 0
    %1610 = vperm.xlu0 %1609, %v1545
    %v1611 = vpop.permute.xlu0 %1610
    %1612 = vset.pattern.permute.xlu0 0
    %1613 = vperm.xlu0 %1612, %v1546
    %v1614 = vpop.permute.xlu0 %1613
    %1615 = vset.pattern.permute.xlu0 0
    %1616 = vperm.xlu0 %1615, %v1547
    %v1617 = vpop.permute.xlu0 %1616
    %1618 = vset.pattern.permute.xlu0 0
    %1619 = vperm.xlu0 %1618, %v1548
    %v1620 = vpop.permute.xlu0 %1619
    %1621 = vset.pattern.permute.xlu0 0
    %1622 = vperm.xlu0 %1621, %v1549
    %v1623 = vpop.permute.xlu0 %1622
    %vm1624 = vcmp.eq.s32.totalorder %v1551, %v1554
    %vm1625 = vcmp.eq.s32.totalorder %v1551, %v1557
    %vm1626 = vcmp.eq.s32.totalorder %v1551, %v1560
    %vm1627 = vcmp.eq.s32.totalorder %v1551, %v1563
    %vm1628 = vcmp.eq.s32.totalorder %v1551, %v1566
    %vm1629 = vcmp.eq.s32.totalorder %v1551, %v1569
    %vm1630 = vcmp.eq.s32.totalorder %v1551, %v1572
    %vm1631 = vcmp.eq.s32.totalorder %v1551, %v1575
    %vm1632 = vcmp.eq.s32.totalorder %v1551, %v1578
    %vm1633 = vcmp.eq.s32.totalorder %v1551, %v1581
    %vm1634 = vcmp.eq.s32.totalorder %v1551, %v1584
    %vm1635 = vcmp.eq.s32.totalorder %v1551, %v1587
    %vm1636 = vcmp.eq.s32.totalorder %v1551, %v1590
    %vm1637 = vcmp.eq.s32.totalorder %v1551, %v1593
    %vm1638 = vcmp.eq.s32.totalorder %v1551, %v1596
    %vm1639 = vcmp.eq.s32.totalorder %v1551, %v1599
    %vm1640 = vcmp.eq.s32.totalorder %v1551, %v1602
    %vm1641 = vcmp.eq.s32.totalorder %v1551, %v1605
    %vm1642 = vcmp.eq.s32.totalorder %v1551, %v1608
    %vm1643 = vcmp.eq.s32.totalorder %v1551, %v1611
    %vm1644 = vcmp.eq.s32.totalorder %v1551, %v1614
    %vm1645 = vcmp.eq.s32.totalorder %v1551, %v1617
    %vm1646 = vcmp.eq.s32.totalorder %v1551, %v1620
    %vm1647 = vcmp.eq.s32.totalorder %v1551, %v1623
    %v1648 = vsel %vm1624, 1, 0
    %v1649 = vsel %vm1625, 1, 0
    %v1650 = vsel %vm1626, 1, 0
    %v1651 = vsel %vm1627, 1, 0
    %v1652 = vsel %vm1628, 1, 0
    %v1653 = vsel %vm1629, 1, 0
    %v1654 = vsel %vm1630, 1, 0
    %v1655 = vsel %vm1631, 1, 0
    %v1656 = vsel %vm1632, 1, 0
    %v1657 = vsel %vm1633, 1, 0
    %v1658 = vsel %vm1634, 1, 0
    %v1659 = vsel %vm1635, 1, 0
    %v1660 = vsel %vm1636, 1, 0
    %v1661 = vsel %vm1637, 1, 0
    %v1662 = vsel %vm1638, 1, 0
    %v1663 = vsel %vm1639, 1, 0
    %v1664 = vsel %vm1640, 1, 0
    %v1665 = vsel %vm1641, 1, 0
    %v1666 = vsel %vm1642, 1, 0
    %v1667 = vsel %vm1643, 1, 0
    %v1668 = vsel %vm1644, 1, 0
    %v1669 = vsel %vm1645, 1, 0
    %v1670 = vsel %vm1646, 1, 0
    %v1671 = vsel %vm1647, 1, 0
    %v1672 = vcvt.s32.f32 %v1648
    %v1673 = vcvt.s32.f32 %v1649
    %v1674 = vcvt.s32.f32 %v1650
    %v1675 = vcvt.s32.f32 %v1651
    %v1676 = vcvt.s32.f32 %v1652
    %v1677 = vcvt.s32.f32 %v1653
    %v1678 = vcvt.s32.f32 %v1654
    %v1679 = vcvt.s32.f32 %v1655
    %v1680 = vcvt.s32.f32 %v1656
    %v1681 = vcvt.s32.f32 %v1657
    %v1682 = vcvt.s32.f32 %v1658
    %v1683 = vcvt.s32.f32 %v1659
    %v1684 = vcvt.s32.f32 %v1660
    %v1685 = vcvt.s32.f32 %v1661
    %v1686 = vcvt.s32.f32 %v1662
    %v1687 = vcvt.s32.f32 %v1663
    %v1688 = vcvt.s32.f32 %v1664
    %v1689 = vcvt.s32.f32 %v1665
    %v1690 = vcvt.s32.f32 %v1666
    %v1691 = vcvt.s32.f32 %v1667
    %v1692 = vcvt.s32.f32 %v1668
    %v1693 = vcvt.s32.f32 %v1669
    %v1694 = vcvt.s32.f32 %v1670
    %v1695 = vcvt.s32.f32 %v1671
    %v1696 = vpack.c.bf16 %v1672, %v1672
    %v1697 = vpack.c.bf16 %v1673, %v1673
    %v1698 = vpack.c.bf16 %v1674, %v1674
    %v1699 = vpack.c.bf16 %v1675, %v1675
    %v1700 = vpack.c.bf16 %v1676, %v1676
    %v1701 = vpack.c.bf16 %v1677, %v1677
    %v1702 = vpack.c.bf16 %v1678, %v1678
    %v1703 = vpack.c.bf16 %v1679, %v1679
    %v1704 = vpack.c.bf16 %v1680, %v1680
    %v1705 = vpack.c.bf16 %v1681, %v1681
    %v1706 = vpack.c.bf16 %v1682, %v1682
    %v1707 = vpack.c.bf16 %v1683, %v1683
    %v1708 = vpack.c.bf16 %v1684, %v1684
    %v1709 = vpack.c.bf16 %v1685, %v1685
    %v1710 = vpack.c.bf16 %v1686, %v1686
    %v1711 = vpack.c.bf16 %v1687, %v1687
    %v1712 = vpack.c.bf16 %v1688, %v1688
    %v1713 = vpack.c.bf16 %v1689, %v1689
    %v1714 = vpack.c.bf16 %v1690, %v1690
    %v1715 = vpack.c.bf16 %v1691, %v1691
    %v1716 = vpack.c.bf16 %v1692, %v1692
    %v1717 = vpack.c.bf16 %v1693, %v1693
    %v1718 = vpack.c.bf16 %v1694, %v1694
    %v1719 = vpack.c.bf16 %v1695, %v1695
    %v1720 = vpack.c.bf16 %v485, %v485
    %v1721 = vpack.c.bf16 %v487, %v487
    %v1722 = vpack.c.bf16 %v490, %v490
    %v1723 = vpack.c.bf16 %v492, %v492
    %v1724 = vpack.c.bf16 %v495, %v495
    %v1725 = vpack.c.bf16 %v497, %v497
    %v1726 = vpack.c.bf16 %v500, %v500
    %v1727 = vpack.c.bf16 %v502, %v502
    %v1728 = vpack.c.bf16 %v154, %v154
    %v1729 = vpack.c.bf16 %v156, %v156
    %v1730 = vpack.c.bf16 %v159, %v159
    %v1731 = vpack.c.bf16 %v161, %v161
    %v1732 = vpack.c.bf16 %v164, %v164
    %v1733 = vpack.c.bf16 %v166, %v166
    %v1734 = vpack.c.bf16 %v169, %v169
    %v1735 = vpack.c.bf16 %v171, %v171
    %v1744 = vunpack.c.l.b16 %v1720
    %v1745 = vunpack.c.l.b16 %v1721
    %v1746 = vunpack.c.l.b16 %v1722
    %v1747 = vunpack.c.l.b16 %v1723
    %v1748 = vunpack.c.l.b16 %v1724
    %v1749 = vunpack.c.l.b16 %v1725
    %v1750 = vunpack.c.l.b16 %v1726
    %v1751 = vunpack.c.l.b16 %v1727
    %v1752 = vpack.c.b16 %v1745, %v1744
    %v1753 = vpack.c.b16 %v1747, %v1746
    %v1754 = vpack.c.b16 %v1749, %v1748
    %v1755 = vpack.c.b16 %v1751, %v1750
    %v1768 = vunpack.c.l.b16 %v1728
    %v1769 = vunpack.c.l.b16 %v1729
    %v1770 = vunpack.c.l.b16 %v1730
    %v1771 = vunpack.c.l.b16 %v1731
    %v1772 = vunpack.c.l.b16 %v1732
    %v1773 = vunpack.c.l.b16 %v1733
    %v1774 = vunpack.c.l.b16 %v1734
    %v1775 = vunpack.c.l.b16 %v1735
    %v1776 = vpack.c.b16 %v1769, %v1768
    %v1777 = vpack.c.b16 %v1771, %v1770
    %v1778 = vpack.c.b16 %v1773, %v1772
    %v1779 = vpack.c.b16 %v1775, %v1774
    %v1790 = vunpack.c.l.b16 %v1696
    %v1791 = vunpack.c.l.b16 %v1697
    %v1792 = vunpack.c.l.b16 %v1698
    %v1793 = vunpack.c.l.b16 %v1699
    %v1794 = vunpack.c.l.b16 %v1700
    %v1795 = vunpack.c.l.b16 %v1701
    %v1796 = vpack.c.b16 %v1791, %v1790
    %v1797 = vpack.c.b16 %v1793, %v1792
    %v1798 = vpack.c.b16 %v1795, %v1794
    %vm1799 = vcmask 130048
    %v1801 = vsel %vm1799, %v1796, 0
    %v1804 = vsel %vm1799, %v1797, 0
    %v1807 = vsel %vm1799, %v1798, 0
    %1809 = vmatpush.bf16.msra.mxu0 0
    %1810 = vmatpush.bf16.msra.mxu0 0
    %1811 = vmatpush.bf16.msra.mxu0 0
    %1812 = vmatpush.bf16.msra.mxu0 0
    %1813 = vmatpush.bf16.msra.mxu0 0
    %1814 = vmatpush.bf16.msra.mxu0 0
    %1815 = vmatpush.bf16.msra.mxu0 0
    %1816 = vmatpush.bf16.msra.mxu0 %v1752
    %1817 = vmatmul.bf16.gmra.mxu0 %v1801
    %v1818 = vpop.f32.mrf.mxu0
    %v1819 = vadd.f32 0.0, %v1818
    %v1820 = vpop.f32.mrf.mxu0
    %v1821 = vadd.f32 0.0, %v1820
    %1822 = vmatmul.bf16.gmra.mxu0 %v1804
    %v1823 = vpop.f32.mrf.mxu0
    %v1824 = vadd.f32 0.0, %v1823
    %v1825 = vpop.f32.mrf.mxu0
    %v1826 = vadd.f32 0.0, %v1825
    %1827 = vmatmul.bf16.gmra.mxu0 %v1807
    %v1828 = vpop.f32.mrf.mxu0
    %v1829 = vadd.f32 0.0, %v1828
    %v1830 = vpop.f32.mrf.mxu0
    %v1831 = vadd.f32 0.0, %v1830
    %1832 = vdwg.mxu0
    %1833 = vmatpush.bf16.msra.mxu0 0
    %1834 = vmatpush.bf16.msra.mxu0 0
    %1835 = vmatpush.bf16.msra.mxu0 0
    %1836 = vmatpush.bf16.msra.mxu0 0
    %1837 = vmatpush.bf16.msra.mxu0 0
    %1838 = vmatpush.bf16.msra.mxu0 0
    %1839 = vmatpush.bf16.msra.mxu0 0
    %1840 = vmatpush.bf16.msra.mxu0 %v1776
    %1841 = vmatmul.bf16.gmra.mxu0 %v1801
    %v1842 = vpop.f32.mrf.mxu0
    %v1843 = vadd.f32 0.0, %v1842
    %v1844 = vpop.f32.mrf.mxu0
    %v1845 = vadd.f32 0.0, %v1844
    %1846 = vmatmul.bf16.gmra.mxu0 %v1804
    %v1847 = vpop.f32.mrf.mxu0
    %v1848 = vadd.f32 0.0, %v1847
    %v1849 = vpop.f32.mrf.mxu0
    %v1850 = vadd.f32 0.0, %v1849
    %1851 = vmatmul.bf16.gmra.mxu0 %v1807
    %v1852 = vpop.f32.mrf.mxu0
    %v1853 = vadd.f32 0.0, %v1852
    %v1854 = vpop.f32.mrf.mxu0
    %v1855 = vadd.f32 0.0, %v1854
    %1856 = vdwg.mxu0
    %v1863 = vunpack.c.l.b16 %v1702
    %v1864 = vunpack.c.l.b16 %v1703
    %v1865 = vunpack.c.l.b16 %v1704
    %v1866 = vunpack.c.l.b16 %v1705
    %v1867 = vunpack.c.l.b16 %v1706
    %v1868 = vunpack.c.l.b16 %v1707
    %v1869 = vpack.c.b16 %v1864, %v1863
    %v1870 = vpack.c.b16 %v1866, %v1865
    %v1871 = vpack.c.b16 %v1868, %v1867
    %v1873 = vsel %vm1799, %v1869, 0
    %v1876 = vsel %vm1799, %v1870, 0
    %v1879 = vsel %vm1799, %v1871, 0
    %1881 = vmatpush.bf16.msra.mxu0 0
    %1882 = vmatpush.bf16.msra.mxu0 0
    %1883 = vmatpush.bf16.msra.mxu0 0
    %1884 = vmatpush.bf16.msra.mxu0 0
    %1885 = vmatpush.bf16.msra.mxu0 0
    %1886 = vmatpush.bf16.msra.mxu0 0
    %1887 = vmatpush.bf16.msra.mxu0 0
    %1888 = vmatpush.bf16.msra.mxu0 %v1753
    %1889 = vmatmul.bf16.gmra.mxu0 %v1873
    %v1890 = vpop.f32.mrf.mxu0
    %v1891 = vadd.f32 0.0, %v1890
    %v1892 = vpop.f32.mrf.mxu0
    %v1893 = vadd.f32 0.0, %v1892
    %1894 = vmatmul.bf16.gmra.mxu0 %v1876
    %v1895 = vpop.f32.mrf.mxu0
    %v1896 = vadd.f32 0.0, %v1895
    %v1897 = vpop.f32.mrf.mxu0
    %v1898 = vadd.f32 0.0, %v1897
    %1899 = vmatmul.bf16.gmra.mxu0 %v1879
    %v1900 = vpop.f32.mrf.mxu0
    %v1901 = vadd.f32 0.0, %v1900
    %v1902 = vpop.f32.mrf.mxu0
    %v1903 = vadd.f32 0.0, %v1902
    %1904 = vdwg.mxu0
    %1905 = vmatpush.bf16.msra.mxu0 0
    %1906 = vmatpush.bf16.msra.mxu0 0
    %1907 = vmatpush.bf16.msra.mxu0 0
    %1908 = vmatpush.bf16.msra.mxu0 0
    %1909 = vmatpush.bf16.msra.mxu0 0
    %1910 = vmatpush.bf16.msra.mxu0 0
    %1911 = vmatpush.bf16.msra.mxu0 0
    %1912 = vmatpush.bf16.msra.mxu0 %v1777
    %1913 = vmatmul.bf16.gmra.mxu0 %v1873
    %v1914 = vpop.f32.mrf.mxu0
    %v1915 = vadd.f32 0.0, %v1914
    %v1916 = vpop.f32.mrf.mxu0
    %v1917 = vadd.f32 0.0, %v1916
    %1918 = vmatmul.bf16.gmra.mxu0 %v1876
    %v1919 = vpop.f32.mrf.mxu0
    %v1920 = vadd.f32 0.0, %v1919
    %v1921 = vpop.f32.mrf.mxu0
    %v1922 = vadd.f32 0.0, %v1921
    %1923 = vmatmul.bf16.gmra.mxu0 %v1879
    %v1924 = vpop.f32.mrf.mxu0
    %v1925 = vadd.f32 0.0, %v1924
    %v1926 = vpop.f32.mrf.mxu0
    %v1927 = vadd.f32 0.0, %v1926
    %1928 = vdwg.mxu0
    %v1935 = vunpack.c.l.b16 %v1708
    %v1936 = vunpack.c.l.b16 %v1709
    %v1937 = vunpack.c.l.b16 %v1710
    %v1938 = vunpack.c.l.b16 %v1711
    %v1939 = vunpack.c.l.b16 %v1712
    %v1940 = vunpack.c.l.b16 %v1713
    %v1941 = vpack.c.b16 %v1936, %v1935
    %v1942 = vpack.c.b16 %v1938, %v1937
    %v1943 = vpack.c.b16 %v1940, %v1939
    %v1945 = vsel %vm1799, %v1941, 0
    %v1948 = vsel %vm1799, %v1942, 0
    %v1951 = vsel %vm1799, %v1943, 0
    %1953 = vmatpush.bf16.msra.mxu0 0
    %1954 = vmatpush.bf16.msra.mxu0 0
    %1955 = vmatpush.bf16.msra.mxu0 0
    %1956 = vmatpush.bf16.msra.mxu0 0
    %1957 = vmatpush.bf16.msra.mxu0 0
    %1958 = vmatpush.bf16.msra.mxu0 0
    %1959 = vmatpush.bf16.msra.mxu0 0
    %1960 = vmatpush.bf16.msra.mxu0 %v1754
    %1961 = vmatmul.bf16.gmra.mxu0 %v1945
    %v1962 = vpop.f32.mrf.mxu0
    %v1963 = vadd.f32 0.0, %v1962
    %v1964 = vpop.f32.mrf.mxu0
    %v1965 = vadd.f32 0.0, %v1964
    %1966 = vmatmul.bf16.gmra.mxu0 %v1948
    %v1967 = vpop.f32.mrf.mxu0
    %v1968 = vadd.f32 0.0, %v1967
    %v1969 = vpop.f32.mrf.mxu0
    %v1970 = vadd.f32 0.0, %v1969
    %1971 = vmatmul.bf16.gmra.mxu0 %v1951
    %v1972 = vpop.f32.mrf.mxu0
    %v1973 = vadd.f32 0.0, %v1972
    %v1974 = vpop.f32.mrf.mxu0
    %v1975 = vadd.f32 0.0, %v1974
    %1976 = vdwg.mxu0
    %1977 = vmatpush.bf16.msra.mxu0 0
    %1978 = vmatpush.bf16.msra.mxu0 0
    %1979 = vmatpush.bf16.msra.mxu0 0
    %1980 = vmatpush.bf16.msra.mxu0 0
    %1981 = vmatpush.bf16.msra.mxu0 0
    %1982 = vmatpush.bf16.msra.mxu0 0
    %1983 = vmatpush.bf16.msra.mxu0 0
    %1984 = vmatpush.bf16.msra.mxu0 %v1778
    %1985 = vmatmul.bf16.gmra.mxu0 %v1945
    %v1986 = vpop.f32.mrf.mxu0
    %v1987 = vadd.f32 0.0, %v1986
    %v1988 = vpop.f32.mrf.mxu0
    %v1989 = vadd.f32 0.0, %v1988
    %1990 = vmatmul.bf16.gmra.mxu0 %v1948
    %v1991 = vpop.f32.mrf.mxu0
    %v1992 = vadd.f32 0.0, %v1991
    %v1993 = vpop.f32.mrf.mxu0
    %v1994 = vadd.f32 0.0, %v1993
    %1995 = vmatmul.bf16.gmra.mxu0 %v1951
    %v1996 = vpop.f32.mrf.mxu0
    %v1997 = vadd.f32 0.0, %v1996
    %v1998 = vpop.f32.mrf.mxu0
    %v1999 = vadd.f32 0.0, %v1998
    %2000 = vdwg.mxu0
    %v2007 = vunpack.c.l.b16 %v1714
    %v2008 = vunpack.c.l.b16 %v1715
    %v2009 = vunpack.c.l.b16 %v1716
    %v2010 = vunpack.c.l.b16 %v1717
    %v2011 = vunpack.c.l.b16 %v1718
    %v2012 = vunpack.c.l.b16 %v1719
    %v2013 = vpack.c.b16 %v2008, %v2007
    %v2014 = vpack.c.b16 %v2010, %v2009
    %v2015 = vpack.c.b16 %v2012, %v2011
    %v2017 = vsel %vm1799, %v2013, 0
    %v2020 = vsel %vm1799, %v2014, 0
    %v2023 = vsel %vm1799, %v2015, 0
    %2025 = vmatpush.bf16.msra.mxu0 0
    %2026 = vmatpush.bf16.msra.mxu0 0
    %2027 = vmatpush.bf16.msra.mxu0 0
    %2028 = vmatpush.bf16.msra.mxu0 0
    %2029 = vmatpush.bf16.msra.mxu0 0
    %2030 = vmatpush.bf16.msra.mxu0 0
    %2031 = vmatpush.bf16.msra.mxu0 0
    %2032 = vmatpush.bf16.msra.mxu0 %v1755
    %2033 = vmatmul.bf16.gmra.mxu0 %v2017
    %v2034 = vpop.f32.mrf.mxu0
    %v2035 = vadd.f32 0.0, %v2034
    %v2036 = vpop.f32.mrf.mxu0
    %v2037 = vadd.f32 0.0, %v2036
    %2038 = vmatmul.bf16.gmra.mxu0 %v2020
    %v2039 = vpop.f32.mrf.mxu0
    %v2040 = vadd.f32 0.0, %v2039
    %v2041 = vpop.f32.mrf.mxu0
    %v2042 = vadd.f32 0.0, %v2041
    %2043 = vmatmul.bf16.gmra.mxu0 %v2023
    %v2044 = vpop.f32.mrf.mxu0
    %v2045 = vadd.f32 0.0, %v2044
    %v2046 = vpop.f32.mrf.mxu0
    %v2047 = vadd.f32 0.0, %v2046
    %2048 = vdwg.mxu0
    %2049 = vmatpush.bf16.msra.mxu0 0
    %2050 = vmatpush.bf16.msra.mxu0 0
    %2051 = vmatpush.bf16.msra.mxu0 0
    %2052 = vmatpush.bf16.msra.mxu0 0
    %2053 = vmatpush.bf16.msra.mxu0 0
    %2054 = vmatpush.bf16.msra.mxu0 0
    %2055 = vmatpush.bf16.msra.mxu0 0
    %2056 = vmatpush.bf16.msra.mxu0 %v1779
    %2057 = vmatmul.bf16.gmra.mxu0 %v2017
    %v2058 = vpop.f32.mrf.mxu0
    %v2059 = vadd.f32 0.0, %v2058
    %v2060 = vpop.f32.mrf.mxu0
    %v2061 = vadd.f32 0.0, %v2060
    %2062 = vmatmul.bf16.gmra.mxu0 %v2020
    %v2063 = vpop.f32.mrf.mxu0
    %v2064 = vadd.f32 0.0, %v2063
    %v2065 = vpop.f32.mrf.mxu0
    %v2066 = vadd.f32 0.0, %v2065
    %2067 = vmatmul.bf16.gmra.mxu0 %v2023
    %v2068 = vpop.f32.mrf.mxu0
    %v2069 = vadd.f32 0.0, %v2068
    %v2070 = vpop.f32.mrf.mxu0
    %v2071 = vadd.f32 0.0, %v2070
    %2072 = vdwg.mxu0
    %v2073 = vadd.f32 %v666, %v1843
    %v2074 = vadd.f32 %v668, %v1845
    %v2075 = vadd.f32 %v671, %v1848
    %v2076 = vadd.f32 %v673, %v1850
    %v2077 = vadd.f32 %v676, %v1853
    %v2078 = vadd.f32 %v678, %v1855
    %v2079 = vadd.f32 %v681, %v1915
    %v2080 = vadd.f32 %v683, %v1917
    %v2081 = vadd.f32 %v686, %v1920
    %v2082 = vadd.f32 %v688, %v1922
    %v2083 = vadd.f32 %v691, %v1925
    %v2084 = vadd.f32 %v693, %v1927
    %v2085 = vadd.f32 %v696, %v1987
    %v2086 = vadd.f32 %v698, %v1989
    %v2087 = vadd.f32 %v701, %v1992
    %v2088 = vadd.f32 %v703, %v1994
    %v2089 = vadd.f32 %v706, %v1997
    %v2090 = vadd.f32 %v708, %v1999
    %v2091 = vadd.f32 %v711, %v2059
    %v2092 = vadd.f32 %v713, %v2061
    %v2093 = vadd.f32 %v716, %v2064
    %v2094 = vadd.f32 %v718, %v2066
    %v2095 = vadd.f32 %v721, %v2069
    %v2096 = vadd.f32 %v723, %v2071
    %v2097 = vld [vmem:[%s7 + $0x8] sm:$0x1]
    %v2098 = vperm.slane %v2097, 0
    %v2099 = vadd.f32 %v2073, %v2098
    %v2100 = vadd.f32 %v2074, %v2098
    %v2101 = vadd.f32 %v2075, %v2098
    %v2102 = vadd.f32 %v2076, %v2098
    %v2103 = vadd.f32 %v2077, %v2098
    %v2104 = vadd.f32 %v2078, %v2098
    %v2105 = vadd.f32 %v2079, %v2098
    %v2106 = vadd.f32 %v2080, %v2098
    %v2107 = vadd.f32 %v2081, %v2098
    %v2108 = vadd.f32 %v2082, %v2098
    %v2109 = vadd.f32 %v2083, %v2098
    %v2110 = vadd.f32 %v2084, %v2098
    %v2111 = vadd.f32 %v2085, %v2098
    %v2112 = vadd.f32 %v2086, %v2098
    %v2113 = vadd.f32 %v2087, %v2098
    %v2114 = vadd.f32 %v2088, %v2098
    %v2115 = vadd.f32 %v2089, %v2098
    %v2116 = vadd.f32 %v2090, %v2098
    %v2117 = vadd.f32 %v2091, %v2098
    %v2118 = vadd.f32 %v2092, %v2098
    %v2119 = vadd.f32 %v2093, %v2098
    %v2120 = vadd.f32 %v2094, %v2098
    %v2121 = vadd.f32 %v2095, %v2098
    %v2122 = vadd.f32 %v2096, %v2098
    %2123 = vadd.xlane.f32.xlu0 %v2099
    %v2124 = vpop.xlane.xlu0 %2123
    %2125 = vadd.xlane.f32.xlu0 %v2100
    %v2126 = vpop.xlane.xlu0 %2125
    %2127 = vadd.xlane.f32.xlu0 %v2101
    %v2128 = vpop.xlane.xlu0 %2127
    %2129 = vadd.xlane.f32.xlu0 %v2102
    %v2130 = vpop.xlane.xlu0 %2129
    %2131 = vadd.xlane.f32.xlu0 %v2103
    %v2132 = vpop.xlane.xlu0 %2131
    %2133 = vadd.xlane.f32.xlu0 %v2104
    %v2134 = vpop.xlane.xlu0 %2133
    %2135 = vadd.xlane.f32.xlu0 %v2105
    %v2136 = vpop.xlane.xlu0 %2135
    %2137 = vadd.xlane.f32.xlu0 %v2106
    %v2138 = vpop.xlane.xlu0 %2137
    %2139 = vadd.xlane.f32.xlu0 %v2107
    %v2140 = vpop.xlane.xlu0 %2139
    %2141 = vadd.xlane.f32.xlu0 %v2108
    %v2142 = vpop.xlane.xlu0 %2141
    %2143 = vadd.xlane.f32.xlu0 %v2109
    %v2144 = vpop.xlane.xlu0 %2143
    %2145 = vadd.xlane.f32.xlu0 %v2110
    %v2146 = vpop.xlane.xlu0 %2145
    %2147 = vadd.xlane.f32.xlu0 %v2111
    %v2148 = vpop.xlane.xlu0 %2147
    %2149 = vadd.xlane.f32.xlu0 %v2112
    %v2150 = vpop.xlane.xlu0 %2149
    %2151 = vadd.xlane.f32.xlu0 %v2113
    %v2152 = vpop.xlane.xlu0 %2151
    %2153 = vadd.xlane.f32.xlu0 %v2114
    %v2154 = vpop.xlane.xlu0 %2153
    %2155 = vadd.xlane.f32.xlu0 %v2115
    %v2156 = vpop.xlane.xlu0 %2155
    %2157 = vadd.xlane.f32.xlu0 %v2116
    %v2158 = vpop.xlane.xlu0 %2157
    %2159 = vadd.xlane.f32.xlu0 %v2117
    %v2160 = vpop.xlane.xlu0 %2159
    %2161 = vadd.xlane.f32.xlu0 %v2118
    %v2162 = vpop.xlane.xlu0 %2161
    %2163 = vadd.xlane.f32.xlu0 %v2119
    %v2164 = vpop.xlane.xlu0 %2163
    %2165 = vadd.xlane.f32.xlu0 %v2120
    %v2166 = vpop.xlane.xlu0 %2165
    %2167 = vadd.xlane.f32.xlu0 %v2121
    %v2168 = vpop.xlane.xlu0 %2167
    %2169 = vadd.xlane.f32.xlu0 %v2122
    %v2170 = vpop.xlane.xlu0 %2169
    %v2171 = vmul.f32 %v2124, 0.03125
    %v2172 = vmul.f32 %v2126, 0.03125
    %v2173 = vmul.f32 %v2128, 0.03125
    %v2174 = vmul.f32 %v2130, 0.03125
    %v2175 = vmul.f32 %v2132, 0.03125
    %v2176 = vmul.f32 %v2134, 0.03125
    %v2177 = vmul.f32 %v2136, 0.03125
    %v2178 = vmul.f32 %v2138, 0.03125
    %v2179 = vmul.f32 %v2140, 0.03125
    %v2180 = vmul.f32 %v2142, 0.03125
    %v2181 = vmul.f32 %v2144, 0.03125
    %v2182 = vmul.f32 %v2146, 0.03125
    %v2183 = vmul.f32 %v2148, 0.03125
    %v2184 = vmul.f32 %v2150, 0.03125
    %v2185 = vmul.f32 %v2152, 0.03125
    %v2186 = vmul.f32 %v2154, 0.03125
    %v2187 = vmul.f32 %v2156, 0.03125
    %v2188 = vmul.f32 %v2158, 0.03125
    %v2189 = vmul.f32 %v2160, 0.03125
    %v2190 = vmul.f32 %v2162, 0.03125
    %v2191 = vmul.f32 %v2164, 0.03125
    %v2192 = vmul.f32 %v2166, 0.03125
    %v2193 = vmul.f32 %v2168, 0.03125
    %v2194 = vmul.f32 %v2170, 0.03125
    %v2195 = vsub.f32 %v2099, %v2171
    %v2196 = vsub.f32 %v2100, %v2172
    %v2197 = vsub.f32 %v2101, %v2173
    %v2198 = vsub.f32 %v2102, %v2174
    %v2199 = vsub.f32 %v2103, %v2175
    %v2200 = vsub.f32 %v2104, %v2176
    %v2201 = vsub.f32 %v2105, %v2177
    %v2202 = vsub.f32 %v2106, %v2178
    %v2203 = vsub.f32 %v2107, %v2179
    %v2204 = vsub.f32 %v2108, %v2180
    %v2205 = vsub.f32 %v2109, %v2181
    %v2206 = vsub.f32 %v2110, %v2182
    %v2207 = vsub.f32 %v2111, %v2183
    %v2208 = vsub.f32 %v2112, %v2184
    %v2209 = vsub.f32 %v2113, %v2185
    %v2210 = vsub.f32 %v2114, %v2186
    %v2211 = vsub.f32 %v2115, %v2187
    %v2212 = vsub.f32 %v2116, %v2188
    %v2213 = vsub.f32 %v2117, %v2189
    %v2214 = vsub.f32 %v2118, %v2190
    %v2215 = vsub.f32 %v2119, %v2191
    %v2216 = vsub.f32 %v2120, %v2192
    %v2217 = vsub.f32 %v2121, %v2193
    %v2218 = vsub.f32 %v2122, %v2194
    %v2219 = vmul.f32 %v2195, %v2195
    %v2220 = vmul.f32 %v2196, %v2196
    %v2221 = vmul.f32 %v2197, %v2197
    %v2222 = vmul.f32 %v2198, %v2198
    %v2223 = vmul.f32 %v2199, %v2199
    %v2224 = vmul.f32 %v2200, %v2200
    %v2225 = vmul.f32 %v2201, %v2201
    %v2226 = vmul.f32 %v2202, %v2202
    %v2227 = vmul.f32 %v2203, %v2203
    %v2228 = vmul.f32 %v2204, %v2204
    %v2229 = vmul.f32 %v2205, %v2205
    %v2230 = vmul.f32 %v2206, %v2206
    %v2231 = vmul.f32 %v2207, %v2207
    %v2232 = vmul.f32 %v2208, %v2208
    %v2233 = vmul.f32 %v2209, %v2209
    %v2234 = vmul.f32 %v2210, %v2210
    %v2235 = vmul.f32 %v2211, %v2211
    %v2236 = vmul.f32 %v2212, %v2212
    %v2237 = vmul.f32 %v2213, %v2213
    %v2238 = vmul.f32 %v2214, %v2214
    %v2239 = vmul.f32 %v2215, %v2215
    %v2240 = vmul.f32 %v2216, %v2216
    %v2241 = vmul.f32 %v2217, %v2217
    %v2242 = vmul.f32 %v2218, %v2218
    %2243 = vadd.xlane.f32.xlu0 %v2219
    %v2244 = vpop.xlane.xlu0 %2243
    %2245 = vadd.xlane.f32.xlu0 %v2220
    %v2246 = vpop.xlane.xlu0 %2245
    %2247 = vadd.xlane.f32.xlu0 %v2221
    %v2248 = vpop.xlane.xlu0 %2247
    %2249 = vadd.xlane.f32.xlu0 %v2222
    %v2250 = vpop.xlane.xlu0 %2249
    %2251 = vadd.xlane.f32.xlu0 %v2223
    %v2252 = vpop.xlane.xlu0 %2251
    %2253 = vadd.xlane.f32.xlu0 %v2224
    %v2254 = vpop.xlane.xlu0 %2253
    %2255 = vadd.xlane.f32.xlu0 %v2225
    %v2256 = vpop.xlane.xlu0 %2255
    %2257 = vadd.xlane.f32.xlu0 %v2226
    %v2258 = vpop.xlane.xlu0 %2257
    %2259 = vadd.xlane.f32.xlu0 %v2227
    %v2260 = vpop.xlane.xlu0 %2259
    %2261 = vadd.xlane.f32.xlu0 %v2228
    %v2262 = vpop.xlane.xlu0 %2261
    %2263 = vadd.xlane.f32.xlu0 %v2229
    %v2264 = vpop.xlane.xlu0 %2263
    %2265 = vadd.xlane.f32.xlu0 %v2230
    %v2266 = vpop.xlane.xlu0 %2265
    %2267 = vadd.xlane.f32.xlu0 %v2231
    %v2268 = vpop.xlane.xlu0 %2267
    %2269 = vadd.xlane.f32.xlu0 %v2232
    %v2270 = vpop.xlane.xlu0 %2269
    %2271 = vadd.xlane.f32.xlu0 %v2233
    %v2272 = vpop.xlane.xlu0 %2271
    %2273 = vadd.xlane.f32.xlu0 %v2234
    %v2274 = vpop.xlane.xlu0 %2273
    %2275 = vadd.xlane.f32.xlu0 %v2235
    %v2276 = vpop.xlane.xlu0 %2275
    %2277 = vadd.xlane.f32.xlu0 %v2236
    %v2278 = vpop.xlane.xlu0 %2277
    %2279 = vadd.xlane.f32.xlu0 %v2237
    %v2280 = vpop.xlane.xlu0 %2279
    %2281 = vadd.xlane.f32.xlu0 %v2238
    %v2282 = vpop.xlane.xlu0 %2281
    %2283 = vadd.xlane.f32.xlu0 %v2239
    %v2284 = vpop.xlane.xlu0 %2283
    %2285 = vadd.xlane.f32.xlu0 %v2240
    %v2286 = vpop.xlane.xlu0 %2285
    %2287 = vadd.xlane.f32.xlu0 %v2241
    %v2288 = vpop.xlane.xlu0 %2287
    %2289 = vadd.xlane.f32.xlu0 %v2242
    %v2290 = vpop.xlane.xlu0 %2289
    %v2291 = vmul.f32 %v2171, 96.0
    %v2292 = vmul.f32 %v2172, 96.0
    %v2293 = vmul.f32 %v2173, 96.0
    %v2294 = vmul.f32 %v2174, 96.0
    %v2295 = vmul.f32 %v2175, 96.0
    %v2296 = vmul.f32 %v2176, 96.0
    %v2297 = vmul.f32 %v2177, 96.0
    %v2298 = vmul.f32 %v2178, 96.0
    %v2299 = vmul.f32 %v2179, 96.0
    %v2300 = vmul.f32 %v2180, 96.0
    %v2301 = vmul.f32 %v2181, 96.0
    %v2302 = vmul.f32 %v2182, 96.0
    %v2303 = vmul.f32 %v2183, 96.0
    %v2304 = vmul.f32 %v2184, 96.0
    %v2305 = vmul.f32 %v2185, 96.0
    %v2306 = vmul.f32 %v2186, 96.0
    %v2307 = vmul.f32 %v2187, 96.0
    %v2308 = vmul.f32 %v2188, 96.0
    %v2309 = vmul.f32 %v2189, 96.0
    %v2310 = vmul.f32 %v2190, 96.0
    %v2311 = vmul.f32 %v2191, 96.0
    %v2312 = vmul.f32 %v2192, 96.0
    %v2313 = vmul.f32 %v2193, 96.0
    %v2314 = vmul.f32 %v2194, 96.0
    %v2315 = vmul.f32 %v2291, %v2171
    %v2316 = vmul.f32 %v2292, %v2172
    %v2317 = vmul.f32 %v2293, %v2173
    %v2318 = vmul.f32 %v2294, %v2174
    %v2319 = vmul.f32 %v2295, %v2175
    %v2320 = vmul.f32 %v2296, %v2176
    %v2321 = vmul.f32 %v2297, %v2177
    %v2322 = vmul.f32 %v2298, %v2178
    %v2323 = vmul.f32 %v2299, %v2179
    %v2324 = vmul.f32 %v2300, %v2180
    %v2325 = vmul.f32 %v2301, %v2181
    %v2326 = vmul.f32 %v2302, %v2182
    %v2327 = vmul.f32 %v2303, %v2183
    %v2328 = vmul.f32 %v2304, %v2184
    %v2329 = vmul.f32 %v2305, %v2185
    %v2330 = vmul.f32 %v2306, %v2186
    %v2331 = vmul.f32 %v2307, %v2187
    %v2332 = vmul.f32 %v2308, %v2188
    %v2333 = vmul.f32 %v2309, %v2189
    %v2334 = vmul.f32 %v2310, %v2190
    %v2335 = vmul.f32 %v2311, %v2191
    %v2336 = vmul.f32 %v2312, %v2192
    %v2337 = vmul.f32 %v2313, %v2193
    %v2338 = vmul.f32 %v2314, %v2194
    %v2339 = vsub.f32 %v2244, %v2315
    %v2340 = vsub.f32 %v2246, %v2316
    %v2341 = vsub.f32 %v2248, %v2317
    %v2342 = vsub.f32 %v2250, %v2318
    %v2343 = vsub.f32 %v2252, %v2319
    %v2344 = vsub.f32 %v2254, %v2320
    %v2345 = vsub.f32 %v2256, %v2321
    %v2346 = vsub.f32 %v2258, %v2322
    %v2347 = vsub.f32 %v2260, %v2323
    %v2348 = vsub.f32 %v2262, %v2324
    %v2349 = vsub.f32 %v2264, %v2325
    %v2350 = vsub.f32 %v2266, %v2326
    %v2351 = vsub.f32 %v2268, %v2327
    %v2352 = vsub.f32 %v2270, %v2328
    %v2353 = vsub.f32 %v2272, %v2329
    %v2354 = vsub.f32 %v2274, %v2330
    %v2355 = vsub.f32 %v2276, %v2331
    %v2356 = vsub.f32 %v2278, %v2332
    %v2357 = vsub.f32 %v2280, %v2333
    %v2358 = vsub.f32 %v2282, %v2334
    %v2359 = vsub.f32 %v2284, %v2335
    %v2360 = vsub.f32 %v2286, %v2336
    %v2361 = vsub.f32 %v2288, %v2337
    %v2362 = vsub.f32 %v2290, %v2338
    %v2363 = vmul.f32 %v2339, 0.03125
    %v2364 = vmul.f32 %v2340, 0.03125
    %v2365 = vmul.f32 %v2341, 0.03125
    %v2366 = vmul.f32 %v2342, 0.03125
    %v2367 = vmul.f32 %v2343, 0.03125
    %v2368 = vmul.f32 %v2344, 0.03125
    %v2369 = vmul.f32 %v2345, 0.03125
    %v2370 = vmul.f32 %v2346, 0.03125
    %v2371 = vmul.f32 %v2347, 0.03125
    %v2372 = vmul.f32 %v2348, 0.03125
    %v2373 = vmul.f32 %v2349, 0.03125
    %v2374 = vmul.f32 %v2350, 0.03125
    %v2375 = vmul.f32 %v2351, 0.03125
    %v2376 = vmul.f32 %v2352, 0.03125
    %v2377 = vmul.f32 %v2353, 0.03125
    %v2378 = vmul.f32 %v2354, 0.03125
    %v2379 = vmul.f32 %v2355, 0.03125
    %v2380 = vmul.f32 %v2356, 0.03125
    %v2381 = vmul.f32 %v2357, 0.03125
    %v2382 = vmul.f32 %v2358, 0.03125
    %v2383 = vmul.f32 %v2359, 0.03125
    %v2384 = vmul.f32 %v2360, 0.03125
    %v2385 = vmul.f32 %v2361, 0.03125
    %v2386 = vmul.f32 %v2362, 0.03125
    %v2387 = vadd.f32 %v2363, 1e-05
    %v2388 = vadd.f32 %v2364, 1e-05
    %v2389 = vadd.f32 %v2365, 1e-05
    %v2390 = vadd.f32 %v2366, 1e-05
    %v2391 = vadd.f32 %v2367, 1e-05
    %v2392 = vadd.f32 %v2368, 1e-05
    %v2393 = vadd.f32 %v2369, 1e-05
    %v2394 = vadd.f32 %v2370, 1e-05
    %v2395 = vadd.f32 %v2371, 1e-05
    %v2396 = vadd.f32 %v2372, 1e-05
    %v2397 = vadd.f32 %v2373, 1e-05
    %v2398 = vadd.f32 %v2374, 1e-05
    %v2399 = vadd.f32 %v2375, 1e-05
    %v2400 = vadd.f32 %v2376, 1e-05
    %v2401 = vadd.f32 %v2377, 1e-05
    %v2402 = vadd.f32 %v2378, 1e-05
    %v2403 = vadd.f32 %v2379, 1e-05
    %v2404 = vadd.f32 %v2380, 1e-05
    %v2405 = vadd.f32 %v2381, 1e-05
    %v2406 = vadd.f32 %v2382, 1e-05
    %v2407 = vadd.f32 %v2383, 1e-05
    %v2408 = vadd.f32 %v2384, 1e-05
    %v2409 = vadd.f32 %v2385, 1e-05
    %v2410 = vadd.f32 %v2386, 1e-05
    %v2411 = vrsqrt.pop %v2387
    %v2412 = vmul.f32 %v2411, %v2387
    %v2413 = vmul.f32 %v2412, %v2411
    %v2414 = vmul.f32 0.5, %v2413
    %v2415 = vsub.f32 1.5, %v2414
    %v2416 = vmul.f32 %v2411, %v2415
    %vm2417 = vweird.f32 %v2387
    %vm2418 = vweird.f32 %v2411
    %vm2419 = vmor %vm2417, %vm2418
    %v2420 = vsel %vm2419, %v2411, %v2416
    %v2421 = vrsqrt.pop %v2388
    %v2422 = vmul.f32 %v2421, %v2388
    %v2423 = vmul.f32 %v2422, %v2421
    %v2424 = vmul.f32 0.5, %v2423
    %v2425 = vsub.f32 1.5, %v2424
    %v2426 = vmul.f32 %v2421, %v2425
    %vm2427 = vweird.f32 %v2388
    %vm2428 = vweird.f32 %v2421
    %vm2429 = vmor %vm2427, %vm2428
    %v2430 = vsel %vm2429, %v2421, %v2426
    %v2431 = vrsqrt.pop %v2389
    %v2432 = vmul.f32 %v2431, %v2389
    %v2433 = vmul.f32 %v2432, %v2431
    %v2434 = vmul.f32 0.5, %v2433
    %v2435 = vsub.f32 1.5, %v2434
    %v2436 = vmul.f32 %v2431, %v2435
    %vm2437 = vweird.f32 %v2389
    %vm2438 = vweird.f32 %v2431
    %vm2439 = vmor %vm2437, %vm2438
    %v2440 = vsel %vm2439, %v2431, %v2436
    %v2441 = vrsqrt.pop %v2390
    %v2442 = vmul.f32 %v2441, %v2390
    %v2443 = vmul.f32 %v2442, %v2441
    %v2444 = vmul.f32 0.5, %v2443
    %v2445 = vsub.f32 1.5, %v2444
    %v2446 = vmul.f32 %v2441, %v2445
    %vm2447 = vweird.f32 %v2390
    %vm2448 = vweird.f32 %v2441
    %vm2449 = vmor %vm2447, %vm2448
    %v2450 = vsel %vm2449, %v2441, %v2446
    %v2451 = vrsqrt.pop %v2391
    %v2452 = vmul.f32 %v2451, %v2391
    %v2453 = vmul.f32 %v2452, %v2451
    %v2454 = vmul.f32 0.5, %v2453
    %v2455 = vsub.f32 1.5, %v2454
    %v2456 = vmul.f32 %v2451, %v2455
    %vm2457 = vweird.f32 %v2391
    %vm2458 = vweird.f32 %v2451
    %vm2459 = vmor %vm2457, %vm2458
    %v2460 = vsel %vm2459, %v2451, %v2456
    %v2461 = vrsqrt.pop %v2392
    %v2462 = vmul.f32 %v2461, %v2392
    %v2463 = vmul.f32 %v2462, %v2461
    %v2464 = vmul.f32 0.5, %v2463
    %v2465 = vsub.f32 1.5, %v2464
    %v2466 = vmul.f32 %v2461, %v2465
    %vm2467 = vweird.f32 %v2392
    %vm2468 = vweird.f32 %v2461
    %vm2469 = vmor %vm2467, %vm2468
    %v2470 = vsel %vm2469, %v2461, %v2466
    %v2471 = vrsqrt.pop %v2393
    %v2472 = vmul.f32 %v2471, %v2393
    %v2473 = vmul.f32 %v2472, %v2471
    %v2474 = vmul.f32 0.5, %v2473
    %v2475 = vsub.f32 1.5, %v2474
    %v2476 = vmul.f32 %v2471, %v2475
    %vm2477 = vweird.f32 %v2393
    %vm2478 = vweird.f32 %v2471
    %vm2479 = vmor %vm2477, %vm2478
    %v2480 = vsel %vm2479, %v2471, %v2476
    %v2481 = vrsqrt.pop %v2394
    %v2482 = vmul.f32 %v2481, %v2394
    %v2483 = vmul.f32 %v2482, %v2481
    %v2484 = vmul.f32 0.5, %v2483
    %v2485 = vsub.f32 1.5, %v2484
    %v2486 = vmul.f32 %v2481, %v2485
    %vm2487 = vweird.f32 %v2394
    %vm2488 = vweird.f32 %v2481
    %vm2489 = vmor %vm2487, %vm2488
    %v2490 = vsel %vm2489, %v2481, %v2486
    %v2491 = vrsqrt.pop %v2395
    %v2492 = vmul.f32 %v2491, %v2395
    %v2493 = vmul.f32 %v2492, %v2491
    %v2494 = vmul.f32 0.5, %v2493
    %v2495 = vsub.f32 1.5, %v2494
    %v2496 = vmul.f32 %v2491, %v2495
    %vm2497 = vweird.f32 %v2395
    %vm2498 = vweird.f32 %v2491
    %vm2499 = vmor %vm2497, %vm2498
    %v2500 = vsel %vm2499, %v2491, %v2496
    %v2501 = vrsqrt.pop %v2396
    %v2502 = vmul.f32 %v2501, %v2396
    %v2503 = vmul.f32 %v2502, %v2501
    %v2504 = vmul.f32 0.5, %v2503
    %v2505 = vsub.f32 1.5, %v2504
    %v2506 = vmul.f32 %v2501, %v2505
    %vm2507 = vweird.f32 %v2396
    %vm2508 = vweird.f32 %v2501
    %vm2509 = vmor %vm2507, %vm2508
    %v2510 = vsel %vm2509, %v2501, %v2506
    %v2511 = vrsqrt.pop %v2397
    %v2512 = vmul.f32 %v2511, %v2397
    %v2513 = vmul.f32 %v2512, %v2511
    %v2514 = vmul.f32 0.5, %v2513
    %v2515 = vsub.f32 1.5, %v2514
    %v2516 = vmul.f32 %v2511, %v2515
    %vm2517 = vweird.f32 %v2397
    %vm2518 = vweird.f32 %v2511
    %vm2519 = vmor %vm2517, %vm2518
    %v2520 = vsel %vm2519, %v2511, %v2516
    %v2521 = vrsqrt.pop %v2398
    %v2522 = vmul.f32 %v2521, %v2398
    %v2523 = vmul.f32 %v2522, %v2521
    %v2524 = vmul.f32 0.5, %v2523
    %v2525 = vsub.f32 1.5, %v2524
    %v2526 = vmul.f32 %v2521, %v2525
    %vm2527 = vweird.f32 %v2398
    %vm2528 = vweird.f32 %v2521
    %vm2529 = vmor %vm2527, %vm2528
    %v2530 = vsel %vm2529, %v2521, %v2526
    %v2531 = vrsqrt.pop %v2399
    %v2532 = vmul.f32 %v2531, %v2399
    %v2533 = vmul.f32 %v2532, %v2531
    %v2534 = vmul.f32 0.5, %v2533
    %v2535 = vsub.f32 1.5, %v2534
    %v2536 = vmul.f32 %v2531, %v2535
    %vm2537 = vweird.f32 %v2399
    %vm2538 = vweird.f32 %v2531
    %vm2539 = vmor %vm2537, %vm2538
    %v2540 = vsel %vm2539, %v2531, %v2536
    %v2541 = vrsqrt.pop %v2400
    %v2542 = vmul.f32 %v2541, %v2400
    %v2543 = vmul.f32 %v2542, %v2541
    %v2544 = vmul.f32 0.5, %v2543
    %v2545 = vsub.f32 1.5, %v2544
    %v2546 = vmul.f32 %v2541, %v2545
    %vm2547 = vweird.f32 %v2400
    %vm2548 = vweird.f32 %v2541
    %vm2549 = vmor %vm2547, %vm2548
    %v2550 = vsel %vm2549, %v2541, %v2546
    %v2551 = vrsqrt.pop %v2401
    %v2552 = vmul.f32 %v2551, %v2401
    %v2553 = vmul.f32 %v2552, %v2551
    %v2554 = vmul.f32 0.5, %v2553
    %v2555 = vsub.f32 1.5, %v2554
    %v2556 = vmul.f32 %v2551, %v2555
    %vm2557 = vweird.f32 %v2401
    %vm2558 = vweird.f32 %v2551
    %vm2559 = vmor %vm2557, %vm2558
    %v2560 = vsel %vm2559, %v2551, %v2556
    %v2561 = vrsqrt.pop %v2402
    %v2562 = vmul.f32 %v2561, %v2402
    %v2563 = vmul.f32 %v2562, %v2561
    %v2564 = vmul.f32 0.5, %v2563
    %v2565 = vsub.f32 1.5, %v2564
    %v2566 = vmul.f32 %v2561, %v2565
    %vm2567 = vweird.f32 %v2402
    %vm2568 = vweird.f32 %v2561
    %vm2569 = vmor %vm2567, %vm2568
    %v2570 = vsel %vm2569, %v2561, %v2566
    %v2571 = vrsqrt.pop %v2403
    %v2572 = vmul.f32 %v2571, %v2403
    %v2573 = vmul.f32 %v2572, %v2571
    %v2574 = vmul.f32 0.5, %v2573
    %v2575 = vsub.f32 1.5, %v2574
    %v2576 = vmul.f32 %v2571, %v2575
    %vm2577 = vweird.f32 %v2403
    %vm2578 = vweird.f32 %v2571
    %vm2579 = vmor %vm2577, %vm2578
    %v2580 = vsel %vm2579, %v2571, %v2576
    %v2581 = vrsqrt.pop %v2404
    %v2582 = vmul.f32 %v2581, %v2404
    %v2583 = vmul.f32 %v2582, %v2581
    %v2584 = vmul.f32 0.5, %v2583
    %v2585 = vsub.f32 1.5, %v2584
    %v2586 = vmul.f32 %v2581, %v2585
    %vm2587 = vweird.f32 %v2404
    %vm2588 = vweird.f32 %v2581
    %vm2589 = vmor %vm2587, %vm2588
    %v2590 = vsel %vm2589, %v2581, %v2586
    %v2591 = vrsqrt.pop %v2405
    %v2592 = vmul.f32 %v2591, %v2405
    %v2593 = vmul.f32 %v2592, %v2591
    %v2594 = vmul.f32 0.5, %v2593
    %v2595 = vsub.f32 1.5, %v2594
    %v2596 = vmul.f32 %v2591, %v2595
    %vm2597 = vweird.f32 %v2405
    %vm2598 = vweird.f32 %v2591
    %vm2599 = vmor %vm2597, %vm2598
    %v2600 = vsel %vm2599, %v2591, %v2596
    %v2601 = vrsqrt.pop %v2406
    %v2602 = vmul.f32 %v2601, %v2406
    %v2603 = vmul.f32 %v2602, %v2601
    %v2604 = vmul.f32 0.5, %v2603
    %v2605 = vsub.f32 1.5, %v2604
    %v2606 = vmul.f32 %v2601, %v2605
    %vm2607 = vweird.f32 %v2406
    %vm2608 = vweird.f32 %v2601
    %vm2609 = vmor %vm2607, %vm2608
    %v2610 = vsel %vm2609, %v2601, %v2606
    %v2611 = vrsqrt.pop %v2407
    %v2612 = vmul.f32 %v2611, %v2407
    %v2613 = vmul.f32 %v2612, %v2611
    %v2614 = vmul.f32 0.5, %v2613
    %v2615 = vsub.f32 1.5, %v2614
    %v2616 = vmul.f32 %v2611, %v2615
    %vm2617 = vweird.f32 %v2407
    %vm2618 = vweird.f32 %v2611
    %vm2619 = vmor %vm2617, %vm2618
    %v2620 = vsel %vm2619, %v2611, %v2616
    %v2621 = vrsqrt.pop %v2408
    %v2622 = vmul.f32 %v2621, %v2408
    %v2623 = vmul.f32 %v2622, %v2621
    %v2624 = vmul.f32 0.5, %v2623
    %v2625 = vsub.f32 1.5, %v2624
    %v2626 = vmul.f32 %v2621, %v2625
    %vm2627 = vweird.f32 %v2408
    %vm2628 = vweird.f32 %v2621
    %vm2629 = vmor %vm2627, %vm2628
    %v2630 = vsel %vm2629, %v2621, %v2626
    %v2631 = vrsqrt.pop %v2409
    %v2632 = vmul.f32 %v2631, %v2409
    %v2633 = vmul.f32 %v2632, %v2631
    %v2634 = vmul.f32 0.5, %v2633
    %v2635 = vsub.f32 1.5, %v2634
    %v2636 = vmul.f32 %v2631, %v2635
    %vm2637 = vweird.f32 %v2409
    %vm2638 = vweird.f32 %v2631
    %vm2639 = vmor %vm2637, %vm2638
    %v2640 = vsel %vm2639, %v2631, %v2636
    %v2641 = vrsqrt.pop %v2410
    %v2642 = vmul.f32 %v2641, %v2410
    %v2643 = vmul.f32 %v2642, %v2641
    %v2644 = vmul.f32 0.5, %v2643
    %v2645 = vsub.f32 1.5, %v2644
    %v2646 = vmul.f32 %v2641, %v2645
    %vm2647 = vweird.f32 %v2410
    %vm2648 = vweird.f32 %v2641
    %vm2649 = vmor %vm2647, %vm2648
    %v2650 = vsel %vm2649, %v2641, %v2646
    %v2651 = vmul.f32 %v2195, %v2420
    %v2652 = vmul.f32 %v2196, %v2430
    %v2653 = vmul.f32 %v2197, %v2440
    %v2654 = vmul.f32 %v2198, %v2450
    %v2655 = vmul.f32 %v2199, %v2460
    %v2656 = vmul.f32 %v2200, %v2470
    %v2657 = vmul.f32 %v2201, %v2480
    %v2658 = vmul.f32 %v2202, %v2490
    %v2659 = vmul.f32 %v2203, %v2500
    %v2660 = vmul.f32 %v2204, %v2510
    %v2661 = vmul.f32 %v2205, %v2520
    %v2662 = vmul.f32 %v2206, %v2530
    %v2663 = vmul.f32 %v2207, %v2540
    %v2664 = vmul.f32 %v2208, %v2550
    %v2665 = vmul.f32 %v2209, %v2560
    %v2666 = vmul.f32 %v2210, %v2570
    %v2667 = vmul.f32 %v2211, %v2580
    %v2668 = vmul.f32 %v2212, %v2590
    %v2669 = vmul.f32 %v2213, %v2600
    %v2670 = vmul.f32 %v2214, %v2610
    %v2671 = vmul.f32 %v2215, %v2620
    %v2672 = vmul.f32 %v2216, %v2630
    %v2673 = vmul.f32 %v2217, %v2640
    %v2674 = vmul.f32 %v2218, %v2650
    %v2675 = vld [vmem:[%s7 + $0x9] sm:$0x1]
    %v2676 = vperm.slane %v2675, 0
    %v2677 = vmul.f32 %v2651, %v2676
    %v2678 = vmul.f32 %v2652, %v2676
    %v2679 = vmul.f32 %v2653, %v2676
    %v2680 = vmul.f32 %v2654, %v2676
    %v2681 = vmul.f32 %v2655, %v2676
    %v2682 = vmul.f32 %v2656, %v2676
    %v2683 = vmul.f32 %v2657, %v2676
    %v2684 = vmul.f32 %v2658, %v2676
    %v2685 = vmul.f32 %v2659, %v2676
    %v2686 = vmul.f32 %v2660, %v2676
    %v2687 = vmul.f32 %v2661, %v2676
    %v2688 = vmul.f32 %v2662, %v2676
    %v2689 = vmul.f32 %v2663, %v2676
    %v2690 = vmul.f32 %v2664, %v2676
    %v2691 = vmul.f32 %v2665, %v2676
    %v2692 = vmul.f32 %v2666, %v2676
    %v2693 = vmul.f32 %v2667, %v2676
    %v2694 = vmul.f32 %v2668, %v2676
    %v2695 = vmul.f32 %v2669, %v2676
    %v2696 = vmul.f32 %v2670, %v2676
    %v2697 = vmul.f32 %v2671, %v2676
    %v2698 = vmul.f32 %v2672, %v2676
    %v2699 = vmul.f32 %v2673, %v2676
    %v2700 = vmul.f32 %v2674, %v2676
    %v2701 = vld [vmem:[%s7 + $0xa] sm:$0x1]
    %v2702 = vperm.slane %v2701, 0
    %v2703 = vadd.f32 %v2677, %v2702
    %v2704 = vadd.f32 %v2678, %v2702
    %v2705 = vadd.f32 %v2679, %v2702
    %v2706 = vadd.f32 %v2680, %v2702
    %v2707 = vadd.f32 %v2681, %v2702
    %v2708 = vadd.f32 %v2682, %v2702
    %v2709 = vadd.f32 %v2683, %v2702
    %v2710 = vadd.f32 %v2684, %v2702
    %v2711 = vadd.f32 %v2685, %v2702
    %v2712 = vadd.f32 %v2686, %v2702
    %v2713 = vadd.f32 %v2687, %v2702
    %v2714 = vadd.f32 %v2688, %v2702
    %v2715 = vadd.f32 %v2689, %v2702
    %v2716 = vadd.f32 %v2690, %v2702
    %v2717 = vadd.f32 %v2691, %v2702
    %v2718 = vadd.f32 %v2692, %v2702
    %v2719 = vadd.f32 %v2693, %v2702
    %v2720 = vadd.f32 %v2694, %v2702
    %v2721 = vadd.f32 %v2695, %v2702
    %v2722 = vadd.f32 %v2696, %v2702
    %v2723 = vadd.f32 %v2697, %v2702
    %v2724 = vadd.f32 %v2698, %v2702
    %v2725 = vadd.f32 %v2699, %v2702
    %v2726 = vadd.f32 %v2700, %v2702
    %v2727 = vmax.f32 %v2703, 0.0
    %v2728 = vmax.f32 %v2704, 0.0
    %v2729 = vmax.f32 %v2705, 0.0
    %v2730 = vmax.f32 %v2706, 0.0
    %v2731 = vmax.f32 %v2707, 0.0
    %v2732 = vmax.f32 %v2708, 0.0
    %v2733 = vmax.f32 %v2709, 0.0
    %v2734 = vmax.f32 %v2710, 0.0
    %v2735 = vmax.f32 %v2711, 0.0
    %v2736 = vmax.f32 %v2712, 0.0
    %v2737 = vmax.f32 %v2713, 0.0
    %v2738 = vmax.f32 %v2714, 0.0
    %v2739 = vmax.f32 %v2715, 0.0
    %v2740 = vmax.f32 %v2716, 0.0
    %v2741 = vmax.f32 %v2717, 0.0
    %v2742 = vmax.f32 %v2718, 0.0
    %v2743 = vmax.f32 %v2719, 0.0
    %v2744 = vmax.f32 %v2720, 0.0
    %v2745 = vmax.f32 %v2721, 0.0
    %v2746 = vmax.f32 %v2722, 0.0
    %v2747 = vmax.f32 %v2723, 0.0
    %v2748 = vmax.f32 %v2724, 0.0
    %v2749 = vmax.f32 %v2725, 0.0
    %v2750 = vmax.f32 %v2726, 0.0
    %v2751 = vpack.c.bf16 %v2728, %v2727
    %v2752 = vpack.c.bf16 %v2730, %v2729
    %v2753 = vpack.c.bf16 %v2732, %v2731
    %v2754 = vpack.c.bf16 %v2734, %v2733
    %v2755 = vpack.c.bf16 %v2736, %v2735
    %v2756 = vpack.c.bf16 %v2738, %v2737
    %v2757 = vpack.c.bf16 %v2740, %v2739
    %v2758 = vpack.c.bf16 %v2742, %v2741
    %v2759 = vpack.c.bf16 %v2744, %v2743
    %v2760 = vpack.c.bf16 %v2746, %v2745
    %v2761 = vpack.c.bf16 %v2748, %v2747
    %v2762 = vpack.c.bf16 %v2750, %v2749
    %v2763 = vld [vmem:[%s6 + $0x8] sm:$0xf]
    %v2764 = vld [vmem:[%s6 + $0x1c] sm:$0xf]
    %v2765 = vld [vmem:[%s6 + $0x30] sm:$0xf]
    %v2766 = vld [vmem:[%s6 + $0x44] sm:$0xf]
    %v2767 = vld [vmem:[%s6 + $0x58] sm:$0xf]
    %v2768 = vld [vmem:[%s6 + $0x6c] sm:$0xf]
    %v2769 = vld [vmem:[%s6 + $0x80] sm:$0xf]
    %v2770 = vld [vmem:[%s6 + $0x94] sm:$0xf]
    %v2771 = vld [vmem:[%s6 + $0xa8] sm:$0xf]
    %v2772 = vld [vmem:[%s6 + $0xbc] sm:$0xf]
    %v2773 = vld [vmem:[%s6 + $0xd0] sm:$0xf]
    %v2774 = vld [vmem:[%s6 + $0xe4] sm:$0xf]
    %v2775 = vld [vmem:[%s6 + $0xf8] sm:$0xf]
    %v2776 = vld [vmem:[%s6 + $0x10c] sm:$0xf]
    %v2777 = vld [vmem:[%s6 + $0x120] sm:$0xf]
    %v2778 = vld [vmem:[%s6 + $0x134] sm:$0xf]
    %v2779 = vld [vmem:[%s7 + $0xb] sm:$0x1]
    %v2780 = vperm.slane %v2779, 0
    %v2797 = vunpack.c.l.b16 %v2763
    %v2798 = vunpack.c.l.b16 %v2764
    %v2799 = vunpack.c.l.b16 %v2765
    %v2800 = vunpack.c.l.b16 %v2766
    %v2801 = vunpack.c.l.b16 %v2767
    %v2802 = vunpack.c.l.b16 %v2768
    %v2803 = vunpack.c.l.b16 %v2769
    %v2804 = vunpack.c.l.b16 %v2770
    %v2805 = vunpack.c.l.b16 %v2771
    %v2806 = vunpack.c.l.b16 %v2772
    %v2807 = vunpack.c.l.b16 %v2773
    %v2808 = vunpack.c.l.b16 %v2774
    %v2809 = vunpack.c.l.b16 %v2775
    %v2810 = vunpack.c.l.b16 %v2776
    %v2811 = vunpack.c.l.b16 %v2777
    %v2812 = vunpack.c.l.b16 %v2778
    %v2813 = vpack.c.b16 %v2798, %v2797
    %v2814 = vpack.c.b16 %v2800, %v2799
    %v2815 = vpack.c.b16 %v2802, %v2801
    %v2816 = vpack.c.b16 %v2804, %v2803
    %v2817 = vpack.c.b16 %v2806, %v2805
    %v2818 = vpack.c.b16 %v2808, %v2807
    %v2819 = vpack.c.b16 %v2810, %v2809
    %v2820 = vpack.c.b16 %v2812, %v2811
    %2829 = vmatpush.bf16.msra.mxu0 %v2820
    %2830 = vmatpush.bf16.msra.mxu0 %v2819
    %2831 = vmatpush.bf16.msra.mxu0 %v2818
    %2832 = vmatpush.bf16.msra.mxu0 %v2817
    %2833 = vmatpush.bf16.msra.mxu0 %v2816
    %2834 = vmatpush.bf16.msra.mxu0 %v2815
    %2835 = vmatpush.bf16.msra.mxu0 %v2814
    %2836 = vmatpush.bf16.msra.mxu0 %v2813
    %2837 = vmatmul.bf16.gmra.mxu0 %v2751
    %v2838 = vpop.f32.mrf.mxu0
    %v2839 = vadd.f32 %v2780, %v2838
    %v2840 = vpop.f32.mrf.mxu0
    %v2841 = vadd.f32 %v2780, %v2840
    %2842 = vmatmul.bf16.gmra.mxu0 %v2752
    %v2843 = vpop.f32.mrf.mxu0
    %v2844 = vadd.f32 %v2780, %v2843
    %v2845 = vpop.f32.mrf.mxu0
    %v2846 = vadd.f32 %v2780, %v2845
    %2847 = vmatmul.bf16.gmra.mxu0 %v2753
    %v2848 = vpop.f32.mrf.mxu0
    %v2849 = vadd.f32 %v2780, %v2848
    %v2850 = vpop.f32.mrf.mxu0
    %v2851 = vadd.f32 %v2780, %v2850
    %2852 = vmatmul.bf16.gmra.mxu0 %v2754
    %v2853 = vpop.f32.mrf.mxu0
    %v2854 = vadd.f32 %v2780, %v2853
    %v2855 = vpop.f32.mrf.mxu0
    %v2856 = vadd.f32 %v2780, %v2855
    %2857 = vmatmul.bf16.gmra.mxu0 %v2755
    %v2858 = vpop.f32.mrf.mxu0
    %v2859 = vadd.f32 %v2780, %v2858
    %v2860 = vpop.f32.mrf.mxu0
    %v2861 = vadd.f32 %v2780, %v2860
    %2862 = vmatmul.bf16.gmra.mxu0 %v2756
    %v2863 = vpop.f32.mrf.mxu0
    %v2864 = vadd.f32 %v2780, %v2863
    %v2865 = vpop.f32.mrf.mxu0
    %v2866 = vadd.f32 %v2780, %v2865
    %2867 = vmatmul.bf16.gmra.mxu0 %v2757
    %v2868 = vpop.f32.mrf.mxu0
    %v2869 = vadd.f32 %v2780, %v2868
    %v2870 = vpop.f32.mrf.mxu0
    %v2871 = vadd.f32 %v2780, %v2870
    %2872 = vmatmul.bf16.gmra.mxu0 %v2758
    %v2873 = vpop.f32.mrf.mxu0
    %v2874 = vadd.f32 %v2780, %v2873
    %v2875 = vpop.f32.mrf.mxu0
    %v2876 = vadd.f32 %v2780, %v2875
    %2877 = vmatmul.bf16.gmra.mxu0 %v2759
    %v2878 = vpop.f32.mrf.mxu0
    %v2879 = vadd.f32 %v2780, %v2878
    %v2880 = vpop.f32.mrf.mxu0
    %v2881 = vadd.f32 %v2780, %v2880
    %2882 = vmatmul.bf16.gmra.mxu0 %v2760
    %v2883 = vpop.f32.mrf.mxu0
    %v2884 = vadd.f32 %v2780, %v2883
    %v2885 = vpop.f32.mrf.mxu0
    %v2886 = vadd.f32 %v2780, %v2885
    %2887 = vmatmul.bf16.gmra.mxu0 %v2761
    %v2888 = vpop.f32.mrf.mxu0
    %v2889 = vadd.f32 %v2780, %v2888
    %v2890 = vpop.f32.mrf.mxu0
    %v2891 = vadd.f32 %v2780, %v2890
    %2892 = vmatmul.bf16.gmra.mxu0 %v2762
    %v2893 = vpop.f32.mrf.mxu0
    %v2894 = vadd.f32 %v2780, %v2893
    %v2895 = vpop.f32.mrf.mxu0
    %v2896 = vadd.f32 %v2780, %v2895
    %2897 = vdwg.mxu0
    %v2898 = vmul.f32 %v1467, %v1819
    %v2899 = vmul.f32 %v1469, %v1821
    %v2900 = vmul.f32 %v1472, %v1824
    %v2901 = vmul.f32 %v1474, %v1826
    %v2902 = vmul.f32 %v1477, %v1829
    %v2903 = vmul.f32 %v1479, %v1831
    %v2904 = vmul.f32 %v1482, %v1891
    %v2905 = vmul.f32 %v1484, %v1893
    %v2906 = vmul.f32 %v1487, %v1896
    %v2907 = vmul.f32 %v1489, %v1898
    %v2908 = vmul.f32 %v1492, %v1901
    %v2909 = vmul.f32 %v1494, %v1903
    %v2910 = vmul.f32 %v1497, %v1963
    %v2911 = vmul.f32 %v1499, %v1965
    %v2912 = vmul.f32 %v1502, %v1968
    %v2913 = vmul.f32 %v1504, %v1970
    %v2914 = vmul.f32 %v1507, %v1973
    %v2915 = vmul.f32 %v1509, %v1975
    %v2916 = vmul.f32 %v1512, %v2035
    %v2917 = vmul.f32 %v1514, %v2037
    %v2918 = vmul.f32 %v1517, %v2040
    %v2919 = vmul.f32 %v1519, %v2042
    %v2920 = vmul.f32 %v1522, %v2045
    %v2921 = vmul.f32 %v1524, %v2047
    %v2922 = vpack.c.bf16 %v2899, %v2898
    %v2923 = vpack.c.bf16 %v2901, %v2900
    %v2924 = vpack.c.bf16 %v2903, %v2902
    %v2925 = vpack.c.bf16 %v2905, %v2904
    %v2926 = vpack.c.bf16 %v2907, %v2906
    %v2927 = vpack.c.bf16 %v2909, %v2908
    %v2928 = vpack.c.bf16 %v2911, %v2910
    %v2929 = vpack.c.bf16 %v2913, %v2912
    %v2930 = vpack.c.bf16 %v2915, %v2914
    %v2931 = vpack.c.bf16 %v2917, %v2916
    %v2932 = vpack.c.bf16 %v2919, %v2918
    %v2933 = vpack.c.bf16 %v2921, %v2920
    %v2934 = vld [vmem:[%s6 + $0xc] sm:$0xf]
    %v2935 = vld [vmem:[%s6 + $0x20] sm:$0xf]
    %v2936 = vld [vmem:[%s6 + $0x34] sm:$0xf]
    %v2937 = vld [vmem:[%s6 + $0x48] sm:$0xf]
    %v2938 = vld [vmem:[%s6 + $0x5c] sm:$0xf]
    %v2939 = vld [vmem:[%s6 + $0x70] sm:$0xf]
    %v2940 = vld [vmem:[%s6 + $0x84] sm:$0xf]
    %v2941 = vld [vmem:[%s6 + $0x98] sm:$0xf]
    %v2942 = vld [vmem:[%s6 + $0xac] sm:$0xf]
    %v2943 = vld [vmem:[%s6 + $0xc0] sm:$0xf]
    %v2944 = vld [vmem:[%s6 + $0xd4] sm:$0xf]
    %v2945 = vld [vmem:[%s6 + $0xe8] sm:$0xf]
    %v2946 = vld [vmem:[%s6 + $0xfc] sm:$0xf]
    %v2947 = vld [vmem:[%s6 + $0x110] sm:$0xf]
    %v2948 = vld [vmem:[%s6 + $0x124] sm:$0xf]
    %v2949 = vld [vmem:[%s6 + $0x138] sm:$0xf]
    %v2950 = vld [vmem:[%s7 + $0xc] sm:$0x1]
    %v2951 = vperm.slane %v2950, 0
    %v2968 = vunpack.c.l.b16 %v2934
    %v2969 = vunpack.c.l.b16 %v2935
    %v2970 = vunpack.c.l.b16 %v2936
    %v2971 = vunpack.c.l.b16 %v2937
    %v2972 = vunpack.c.l.b16 %v2938
    %v2973 = vunpack.c.l.b16 %v2939
    %v2974 = vunpack.c.l.b16 %v2940
    %v2975 = vunpack.c.l.b16 %v2941
    %v2976 = vunpack.c.l.b16 %v2942
    %v2977 = vunpack.c.l.b16 %v2943
    %v2978 = vunpack.c.l.b16 %v2944
    %v2979 = vunpack.c.l.b16 %v2945
    %v2980 = vunpack.c.l.b16 %v2946
    %v2981 = vunpack.c.l.b16 %v2947
    %v2982 = vunpack.c.l.b16 %v2948
    %v2983 = vunpack.c.l.b16 %v2949
    %v2984 = vpack.c.b16 %v2969, %v2968
    %v2985 = vpack.c.b16 %v2971, %v2970
    %v2986 = vpack.c.b16 %v2973, %v2972
    %v2987 = vpack.c.b16 %v2975, %v2974
    %v2988 = vpack.c.b16 %v2977, %v2976
    %v2989 = vpack.c.b16 %v2979, %v2978
    %v2990 = vpack.c.b16 %v2981, %v2980
    %v2991 = vpack.c.b16 %v2983, %v2982
    %3000 = vmatpush.bf16.msra.mxu0 %v2991
    %3001 = vmatpush.bf16.msra.mxu0 %v2990
    %3002 = vmatpush.bf16.msra.mxu0 %v2989
    %3003 = vmatpush.bf16.msra.mxu0 %v2988
    %3004 = vmatpush.bf16.msra.mxu0 %v2987
    %3005 = vmatpush.bf16.msra.mxu0 %v2986
    %3006 = vmatpush.bf16.msra.mxu0 %v2985
    %3007 = vmatpush.bf16.msra.mxu0 %v2984
    %3008 = vmatmul.bf16.gmra.mxu0 %v2922
    %v3009 = vpop.f32.mrf.mxu0
    %v3010 = vadd.f32 %v2951, %v3009
    %v3011 = vpop.f32.mrf.mxu0
    %v3012 = vadd.f32 %v2951, %v3011
    %3013 = vmatmul.bf16.gmra.mxu0 %v2923
    %v3014 = vpop.f32.mrf.mxu0
    %v3015 = vadd.f32 %v2951, %v3014
    %v3016 = vpop.f32.mrf.mxu0
    %v3017 = vadd.f32 %v2951, %v3016
    %3018 = vmatmul.bf16.gmra.mxu0 %v2924
    %v3019 = vpop.f32.mrf.mxu0
    %v3020 = vadd.f32 %v2951, %v3019
    %v3021 = vpop.f32.mrf.mxu0
    %v3022 = vadd.f32 %v2951, %v3021
    %3023 = vmatmul.bf16.gmra.mxu0 %v2925
    %v3024 = vpop.f32.mrf.mxu0
    %v3025 = vadd.f32 %v2951, %v3024
    %v3026 = vpop.f32.mrf.mxu0
    %v3027 = vadd.f32 %v2951, %v3026
    %3028 = vmatmul.bf16.gmra.mxu0 %v2926
    %v3029 = vpop.f32.mrf.mxu0
    %v3030 = vadd.f32 %v2951, %v3029
    %v3031 = vpop.f32.mrf.mxu0
    %v3032 = vadd.f32 %v2951, %v3031
    %3033 = vmatmul.bf16.gmra.mxu0 %v2927
    %v3034 = vpop.f32.mrf.mxu0
    %v3035 = vadd.f32 %v2951, %v3034
    %v3036 = vpop.f32.mrf.mxu0
    %v3037 = vadd.f32 %v2951, %v3036
    %3038 = vmatmul.bf16.gmra.mxu0 %v2928
    %v3039 = vpop.f32.mrf.mxu0
    %v3040 = vadd.f32 %v2951, %v3039
    %v3041 = vpop.f32.mrf.mxu0
    %v3042 = vadd.f32 %v2951, %v3041
    %3043 = vmatmul.bf16.gmra.mxu0 %v2929
    %v3044 = vpop.f32.mrf.mxu0
    %v3045 = vadd.f32 %v2951, %v3044
    %v3046 = vpop.f32.mrf.mxu0
    %v3047 = vadd.f32 %v2951, %v3046
    %3048 = vmatmul.bf16.gmra.mxu0 %v2930
    %v3049 = vpop.f32.mrf.mxu0
    %v3050 = vadd.f32 %v2951, %v3049
    %v3051 = vpop.f32.mrf.mxu0
    %v3052 = vadd.f32 %v2951, %v3051
    %3053 = vmatmul.bf16.gmra.mxu0 %v2931
    %v3054 = vpop.f32.mrf.mxu0
    %v3055 = vadd.f32 %v2951, %v3054
    %v3056 = vpop.f32.mrf.mxu0
    %v3057 = vadd.f32 %v2951, %v3056
    %3058 = vmatmul.bf16.gmra.mxu0 %v2932
    %v3059 = vpop.f32.mrf.mxu0
    %v3060 = vadd.f32 %v2951, %v3059
    %v3061 = vpop.f32.mrf.mxu0
    %v3062 = vadd.f32 %v2951, %v3061
    %3063 = vmatmul.bf16.gmra.mxu0 %v2933
    %v3064 = vpop.f32.mrf.mxu0
    %v3065 = vadd.f32 %v2951, %v3064
    %v3066 = vpop.f32.mrf.mxu0
    %v3067 = vadd.f32 %v2951, %v3066
    %3068 = vdwg.mxu0
    %v3069 = vsub.f32 0.0, %v2839
    %v3070 = vsub.f32 0.0, %v2841
    %v3071 = vsub.f32 0.0, %v2844
    %v3072 = vsub.f32 0.0, %v2846
    %v3073 = vsub.f32 0.0, %v2849
    %v3074 = vsub.f32 0.0, %v2851
    %v3075 = vsub.f32 0.0, %v2854
    %v3076 = vsub.f32 0.0, %v2856
    %v3077 = vsub.f32 0.0, %v2859
    %v3078 = vsub.f32 0.0, %v2861
    %v3079 = vsub.f32 0.0, %v2864
    %v3080 = vsub.f32 0.0, %v2866
    %v3081 = vsub.f32 0.0, %v2869
    %v3082 = vsub.f32 0.0, %v2871
    %v3083 = vsub.f32 0.0, %v2874
    %v3084 = vsub.f32 0.0, %v2876
    %v3085 = vsub.f32 0.0, %v2879
    %v3086 = vsub.f32 0.0, %v2881
    %v3087 = vsub.f32 0.0, %v2884
    %v3088 = vsub.f32 0.0, %v2886
    %v3089 = vsub.f32 0.0, %v2889
    %v3090 = vsub.f32 0.0, %v2891
    %v3091 = vsub.f32 0.0, %v2894
    %v3092 = vsub.f32 0.0, %v2896
    %v3093 = vmul.f32 %v3069, 1.442695
    %v3094 = vpow.pop %v3093
    %v3095 = vmul.f32 %v3070, 1.442695
    %v3096 = vpow.pop %v3095
    %v3097 = vmul.f32 %v3071, 1.442695
    %v3098 = vpow.pop %v3097
    %v3099 = vmul.f32 %v3072, 1.442695
    %v3100 = vpow.pop %v3099
    %v3101 = vmul.f32 %v3073, 1.442695
    %v3102 = vpow.pop %v3101
    %v3103 = vmul.f32 %v3074, 1.442695
    %v3104 = vpow.pop %v3103
    %v3105 = vmul.f32 %v3075, 1.442695
    %v3106 = vpow.pop %v3105
    %v3107 = vmul.f32 %v3076, 1.442695
    %v3108 = vpow.pop %v3107
    %v3109 = vmul.f32 %v3077, 1.442695
    %v3110 = vpow.pop %v3109
    %v3111 = vmul.f32 %v3078, 1.442695
    %v3112 = vpow.pop %v3111
    %v3113 = vmul.f32 %v3079, 1.442695
    %v3114 = vpow.pop %v3113
    %v3115 = vmul.f32 %v3080, 1.442695
    %v3116 = vpow.pop %v3115
    %v3117 = vmul.f32 %v3081, 1.442695
    %v3118 = vpow.pop %v3117
    %v3119 = vmul.f32 %v3082, 1.442695
    %v3120 = vpow.pop %v3119
    %v3121 = vmul.f32 %v3083, 1.442695
    %v3122 = vpow.pop %v3121
    %v3123 = vmul.f32 %v3084, 1.442695
    %v3124 = vpow.pop %v3123
    %v3125 = vmul.f32 %v3085, 1.442695
    %v3126 = vpow.pop %v3125
    %v3127 = vmul.f32 %v3086, 1.442695
    %v3128 = vpow.pop %v3127
    %v3129 = vmul.f32 %v3087, 1.442695
    %v3130 = vpow.pop %v3129
    %v3131 = vmul.f32 %v3088, 1.442695
    %v3132 = vpow.pop %v3131
    %v3133 = vmul.f32 %v3089, 1.442695
    %v3134 = vpow.pop %v3133
    %v3135 = vmul.f32 %v3090, 1.442695
    %v3136 = vpow.pop %v3135
    %v3137 = vmul.f32 %v3091, 1.442695
    %v3138 = vpow.pop %v3137
    %v3139 = vmul.f32 %v3092, 1.442695
    %v3140 = vpow.pop %v3139
    %v3141 = vadd.f32 %v3094, 1.0
    %v3142 = vadd.f32 %v3096, 1.0
    %v3143 = vadd.f32 %v3098, 1.0
    %v3144 = vadd.f32 %v3100, 1.0
    %v3145 = vadd.f32 %v3102, 1.0
    %v3146 = vadd.f32 %v3104, 1.0
    %v3147 = vadd.f32 %v3106, 1.0
    %v3148 = vadd.f32 %v3108, 1.0
    %v3149 = vadd.f32 %v3110, 1.0
    %v3150 = vadd.f32 %v3112, 1.0
    %v3151 = vadd.f32 %v3114, 1.0
    %v3152 = vadd.f32 %v3116, 1.0
    %v3153 = vadd.f32 %v3118, 1.0
    %v3154 = vadd.f32 %v3120, 1.0
    %v3155 = vadd.f32 %v3122, 1.0
    %v3156 = vadd.f32 %v3124, 1.0
    %v3157 = vadd.f32 %v3126, 1.0
    %v3158 = vadd.f32 %v3128, 1.0
    %v3159 = vadd.f32 %v3130, 1.0
    %v3160 = vadd.f32 %v3132, 1.0
    %v3161 = vadd.f32 %v3134, 1.0
    %v3162 = vadd.f32 %v3136, 1.0
    %v3163 = vadd.f32 %v3138, 1.0
    %v3164 = vadd.f32 %v3140, 1.0
    %v3165 = vrcp.pop %v3141
    %v3166 = vmul.f32 %v3141, %v3165
    %v3167 = vsub.f32 1.0, %v3166
    %v3168 = vmul.f32 %v3165, %v3167
    %v3169 = vadd.f32 %v3165, %v3168
    %vm3170 = vweird.f32 %v3141
    %vm3171 = vweird.f32 %v3165
    %vm3172 = vmor %vm3170, %vm3171
    %v3173 = vsel %vm3172, %v3165, %v3169
    %v3174 = vand.u32 2147483647, %v3141
    %vm3175 = vcmp.eq.f32.partialorder %v3174, 8.507059e+37
    %v3176 = vand.u32 %v3141, 2147483648
    %v3177 = vor.u32 1.1754944e-38, %v3176
    %v3178 = vsel %vm3175, %v3177, %v3173
    %v3179 = vmul.f32 %v3010, %v3178
    %v3180 = vrcp.pop %v3142
    %v3181 = vmul.f32 %v3142, %v3180
    %v3182 = vsub.f32 1.0, %v3181
    %v3183 = vmul.f32 %v3180, %v3182
    %v3184 = vadd.f32 %v3180, %v3183
    %vm3185 = vweird.f32 %v3142
    %vm3186 = vweird.f32 %v3180
    %vm3187 = vmor %vm3185, %vm3186
    %v3188 = vsel %vm3187, %v3180, %v3184
    %v3189 = vand.u32 2147483647, %v3142
    %vm3190 = vcmp.eq.f32.partialorder %v3189, 8.507059e+37
    %v3191 = vand.u32 %v3142, 2147483648
    %v3192 = vor.u32 1.1754944e-38, %v3191
    %v3193 = vsel %vm3190, %v3192, %v3188
    %v3194 = vmul.f32 %v3012, %v3193
    %v3195 = vrcp.pop %v3143
    %v3196 = vmul.f32 %v3143, %v3195
    %v3197 = vsub.f32 1.0, %v3196
    %v3198 = vmul.f32 %v3195, %v3197
    %v3199 = vadd.f32 %v3195, %v3198
    %vm3200 = vweird.f32 %v3143
    %vm3201 = vweird.f32 %v3195
    %vm3202 = vmor %vm3200, %vm3201
    %v3203 = vsel %vm3202, %v3195, %v3199
    %v3204 = vand.u32 2147483647, %v3143
    %vm3205 = vcmp.eq.f32.partialorder %v3204, 8.507059e+37
    %v3206 = vand.u32 %v3143, 2147483648
    %v3207 = vor.u32 1.1754944e-38, %v3206
    %v3208 = vsel %vm3205, %v3207, %v3203
    %v3209 = vmul.f32 %v3015, %v3208
    %v3210 = vrcp.pop %v3144
    %v3211 = vmul.f32 %v3144, %v3210
    %v3212 = vsub.f32 1.0, %v3211
    %v3213 = vmul.f32 %v3210, %v3212
    %v3214 = vadd.f32 %v3210, %v3213
    %vm3215 = vweird.f32 %v3144
    %vm3216 = vweird.f32 %v3210
    %vm3217 = vmor %vm3215, %vm3216
    %v3218 = vsel %vm3217, %v3210, %v3214
    %v3219 = vand.u32 2147483647, %v3144
    %vm3220 = vcmp.eq.f32.partialorder %v3219, 8.507059e+37
    %v3221 = vand.u32 %v3144, 2147483648
    %v3222 = vor.u32 1.1754944e-38, %v3221
    %v3223 = vsel %vm3220, %v3222, %v3218
    %v3224 = vmul.f32 %v3017, %v3223
    %v3225 = vrcp.pop %v3145
    %v3226 = vmul.f32 %v3145, %v3225
    %v3227 = vsub.f32 1.0, %v3226
    %v3228 = vmul.f32 %v3225, %v3227
    %v3229 = vadd.f32 %v3225, %v3228
    %vm3230 = vweird.f32 %v3145
    %vm3231 = vweird.f32 %v3225
    %vm3232 = vmor %vm3230, %vm3231
    %v3233 = vsel %vm3232, %v3225, %v3229
    %v3234 = vand.u32 2147483647, %v3145
    %vm3235 = vcmp.eq.f32.partialorder %v3234, 8.507059e+37
    %v3236 = vand.u32 %v3145, 2147483648
    %v3237 = vor.u32 1.1754944e-38, %v3236
    %v3238 = vsel %vm3235, %v3237, %v3233
    %v3239 = vmul.f32 %v3020, %v3238
    %v3240 = vrcp.pop %v3146
    %v3241 = vmul.f32 %v3146, %v3240
    %v3242 = vsub.f32 1.0, %v3241
    %v3243 = vmul.f32 %v3240, %v3242
    %v3244 = vadd.f32 %v3240, %v3243
    %vm3245 = vweird.f32 %v3146
    %vm3246 = vweird.f32 %v3240
    %vm3247 = vmor %vm3245, %vm3246
    %v3248 = vsel %vm3247, %v3240, %v3244
    %v3249 = vand.u32 2147483647, %v3146
    %vm3250 = vcmp.eq.f32.partialorder %v3249, 8.507059e+37
    %v3251 = vand.u32 %v3146, 2147483648
    %v3252 = vor.u32 1.1754944e-38, %v3251
    %v3253 = vsel %vm3250, %v3252, %v3248
    %v3254 = vmul.f32 %v3022, %v3253
    %v3255 = vrcp.pop %v3147
    %v3256 = vmul.f32 %v3147, %v3255
    %v3257 = vsub.f32 1.0, %v3256
    %v3258 = vmul.f32 %v3255, %v3257
    %v3259 = vadd.f32 %v3255, %v3258
    %vm3260 = vweird.f32 %v3147
    %vm3261 = vweird.f32 %v3255
    %vm3262 = vmor %vm3260, %vm3261
    %v3263 = vsel %vm3262, %v3255, %v3259
    %v3264 = vand.u32 2147483647, %v3147
    %vm3265 = vcmp.eq.f32.partialorder %v3264, 8.507059e+37
    %v3266 = vand.u32 %v3147, 2147483648
    %v3267 = vor.u32 1.1754944e-38, %v3266
    %v3268 = vsel %vm3265, %v3267, %v3263
    %v3269 = vmul.f32 %v3025, %v3268
    %v3270 = vrcp.pop %v3148
    %v3271 = vmul.f32 %v3148, %v3270
    %v3272 = vsub.f32 1.0, %v3271
    %v3273 = vmul.f32 %v3270, %v3272
    %v3274 = vadd.f32 %v3270, %v3273
    %vm3275 = vweird.f32 %v3148
    %vm3276 = vweird.f32 %v3270
    %vm3277 = vmor %vm3275, %vm3276
    %v3278 = vsel %vm3277, %v3270, %v3274
    %v3279 = vand.u32 2147483647, %v3148
    %vm3280 = vcmp.eq.f32.partialorder %v3279, 8.507059e+37
    %v3281 = vand.u32 %v3148, 2147483648
    %v3282 = vor.u32 1.1754944e-38, %v3281
    %v3283 = vsel %vm3280, %v3282, %v3278
    %v3284 = vmul.f32 %v3027, %v3283
    %v3285 = vrcp.pop %v3149
    %v3286 = vmul.f32 %v3149, %v3285
    %v3287 = vsub.f32 1.0, %v3286
    %v3288 = vmul.f32 %v3285, %v3287
    %v3289 = vadd.f32 %v3285, %v3288
    %vm3290 = vweird.f32 %v3149
    %vm3291 = vweird.f32 %v3285
    %vm3292 = vmor %vm3290, %vm3291
    %v3293 = vsel %vm3292, %v3285, %v3289
    %v3294 = vand.u32 2147483647, %v3149
    %vm3295 = vcmp.eq.f32.partialorder %v3294, 8.507059e+37
    %v3296 = vand.u32 %v3149, 2147483648
    %v3297 = vor.u32 1.1754944e-38, %v3296
    %v3298 = vsel %vm3295, %v3297, %v3293
    %v3299 = vmul.f32 %v3030, %v3298
    %v3300 = vrcp.pop %v3150
    %v3301 = vmul.f32 %v3150, %v3300
    %v3302 = vsub.f32 1.0, %v3301
    %v3303 = vmul.f32 %v3300, %v3302
    %v3304 = vadd.f32 %v3300, %v3303
    %vm3305 = vweird.f32 %v3150
    %vm3306 = vweird.f32 %v3300
    %vm3307 = vmor %vm3305, %vm3306
    %v3308 = vsel %vm3307, %v3300, %v3304
    %v3309 = vand.u32 2147483647, %v3150
    %vm3310 = vcmp.eq.f32.partialorder %v3309, 8.507059e+37
    %v3311 = vand.u32 %v3150, 2147483648
    %v3312 = vor.u32 1.1754944e-38, %v3311
    %v3313 = vsel %vm3310, %v3312, %v3308
    %v3314 = vmul.f32 %v3032, %v3313
    %v3315 = vrcp.pop %v3151
    %v3316 = vmul.f32 %v3151, %v3315
    %v3317 = vsub.f32 1.0, %v3316
    %v3318 = vmul.f32 %v3315, %v3317
    %v3319 = vadd.f32 %v3315, %v3318
    %vm3320 = vweird.f32 %v3151
    %vm3321 = vweird.f32 %v3315
    %vm3322 = vmor %vm3320, %vm3321
    %v3323 = vsel %vm3322, %v3315, %v3319
    %v3324 = vand.u32 2147483647, %v3151
    %vm3325 = vcmp.eq.f32.partialorder %v3324, 8.507059e+37
    %v3326 = vand.u32 %v3151, 2147483648
    %v3327 = vor.u32 1.1754944e-38, %v3326
    %v3328 = vsel %vm3325, %v3327, %v3323
    %v3329 = vmul.f32 %v3035, %v3328
    %v3330 = vrcp.pop %v3152
    %v3331 = vmul.f32 %v3152, %v3330
    %v3332 = vsub.f32 1.0, %v3331
    %v3333 = vmul.f32 %v3330, %v3332
    %v3334 = vadd.f32 %v3330, %v3333
    %vm3335 = vweird.f32 %v3152
    %vm3336 = vweird.f32 %v3330
    %vm3337 = vmor %vm3335, %vm3336
    %v3338 = vsel %vm3337, %v3330, %v3334
    %v3339 = vand.u32 2147483647, %v3152
    %vm3340 = vcmp.eq.f32.partialorder %v3339, 8.507059e+37
    %v3341 = vand.u32 %v3152, 2147483648
    %v3342 = vor.u32 1.1754944e-38, %v3341
    %v3343 = vsel %vm3340, %v3342, %v3338
    %v3344 = vmul.f32 %v3037, %v3343
    %v3345 = vrcp.pop %v3153
    %v3346 = vmul.f32 %v3153, %v3345
    %v3347 = vsub.f32 1.0, %v3346
    %v3348 = vmul.f32 %v3345, %v3347
    %v3349 = vadd.f32 %v3345, %v3348
    %vm3350 = vweird.f32 %v3153
    %vm3351 = vweird.f32 %v3345
    %vm3352 = vmor %vm3350, %vm3351
    %v3353 = vsel %vm3352, %v3345, %v3349
    %v3354 = vand.u32 2147483647, %v3153
    %vm3355 = vcmp.eq.f32.partialorder %v3354, 8.507059e+37
    %v3356 = vand.u32 %v3153, 2147483648
    %v3357 = vor.u32 1.1754944e-38, %v3356
    %v3358 = vsel %vm3355, %v3357, %v3353
    %v3359 = vmul.f32 %v3040, %v3358
    %v3360 = vrcp.pop %v3154
    %v3361 = vmul.f32 %v3154, %v3360
    %v3362 = vsub.f32 1.0, %v3361
    %v3363 = vmul.f32 %v3360, %v3362
    %v3364 = vadd.f32 %v3360, %v3363
    %vm3365 = vweird.f32 %v3154
    %vm3366 = vweird.f32 %v3360
    %vm3367 = vmor %vm3365, %vm3366
    %v3368 = vsel %vm3367, %v3360, %v3364
    %v3369 = vand.u32 2147483647, %v3154
    %vm3370 = vcmp.eq.f32.partialorder %v3369, 8.507059e+37
    %v3371 = vand.u32 %v3154, 2147483648
    %v3372 = vor.u32 1.1754944e-38, %v3371
    %v3373 = vsel %vm3370, %v3372, %v3368
    %v3374 = vmul.f32 %v3042, %v3373
    %v3375 = vrcp.pop %v3155
    %v3376 = vmul.f32 %v3155, %v3375
    %v3377 = vsub.f32 1.0, %v3376
    %v3378 = vmul.f32 %v3375, %v3377
    %v3379 = vadd.f32 %v3375, %v3378
    %vm3380 = vweird.f32 %v3155
    %vm3381 = vweird.f32 %v3375
    %vm3382 = vmor %vm3380, %vm3381
    %v3383 = vsel %vm3382, %v3375, %v3379
    %v3384 = vand.u32 2147483647, %v3155
    %vm3385 = vcmp.eq.f32.partialorder %v3384, 8.507059e+37
    %v3386 = vand.u32 %v3155, 2147483648
    %v3387 = vor.u32 1.1754944e-38, %v3386
    %v3388 = vsel %vm3385, %v3387, %v3383
    %v3389 = vmul.f32 %v3045, %v3388
    %v3390 = vrcp.pop %v3156
    %v3391 = vmul.f32 %v3156, %v3390
    %v3392 = vsub.f32 1.0, %v3391
    %v3393 = vmul.f32 %v3390, %v3392
    %v3394 = vadd.f32 %v3390, %v3393
    %vm3395 = vweird.f32 %v3156
    %vm3396 = vweird.f32 %v3390
    %vm3397 = vmor %vm3395, %vm3396
    %v3398 = vsel %vm3397, %v3390, %v3394
    %v3399 = vand.u32 2147483647, %v3156
    %vm3400 = vcmp.eq.f32.partialorder %v3399, 8.507059e+37
    %v3401 = vand.u32 %v3156, 2147483648
    %v3402 = vor.u32 1.1754944e-38, %v3401
    %v3403 = vsel %vm3400, %v3402, %v3398
    %v3404 = vmul.f32 %v3047, %v3403
    %v3405 = vrcp.pop %v3157
    %v3406 = vmul.f32 %v3157, %v3405
    %v3407 = vsub.f32 1.0, %v3406
    %v3408 = vmul.f32 %v3405, %v3407
    %v3409 = vadd.f32 %v3405, %v3408
    %vm3410 = vweird.f32 %v3157
    %vm3411 = vweird.f32 %v3405
    %vm3412 = vmor %vm3410, %vm3411
    %v3413 = vsel %vm3412, %v3405, %v3409
    %v3414 = vand.u32 2147483647, %v3157
    %vm3415 = vcmp.eq.f32.partialorder %v3414, 8.507059e+37
    %v3416 = vand.u32 %v3157, 2147483648
    %v3417 = vor.u32 1.1754944e-38, %v3416
    %v3418 = vsel %vm3415, %v3417, %v3413
    %v3419 = vmul.f32 %v3050, %v3418
    %v3420 = vrcp.pop %v3158
    %v3421 = vmul.f32 %v3158, %v3420
    %v3422 = vsub.f32 1.0, %v3421
    %v3423 = vmul.f32 %v3420, %v3422
    %v3424 = vadd.f32 %v3420, %v3423
    %vm3425 = vweird.f32 %v3158
    %vm3426 = vweird.f32 %v3420
    %vm3427 = vmor %vm3425, %vm3426
    %v3428 = vsel %vm3427, %v3420, %v3424
    %v3429 = vand.u32 2147483647, %v3158
    %vm3430 = vcmp.eq.f32.partialorder %v3429, 8.507059e+37
    %v3431 = vand.u32 %v3158, 2147483648
    %v3432 = vor.u32 1.1754944e-38, %v3431
    %v3433 = vsel %vm3430, %v3432, %v3428
    %v3434 = vmul.f32 %v3052, %v3433
    %v3435 = vrcp.pop %v3159
    %v3436 = vmul.f32 %v3159, %v3435
    %v3437 = vsub.f32 1.0, %v3436
    %v3438 = vmul.f32 %v3435, %v3437
    %v3439 = vadd.f32 %v3435, %v3438
    %vm3440 = vweird.f32 %v3159
    %vm3441 = vweird.f32 %v3435
    %vm3442 = vmor %vm3440, %vm3441
    %v3443 = vsel %vm3442, %v3435, %v3439
    %v3444 = vand.u32 2147483647, %v3159
    %vm3445 = vcmp.eq.f32.partialorder %v3444, 8.507059e+37
    %v3446 = vand.u32 %v3159, 2147483648
    %v3447 = vor.u32 1.1754944e-38, %v3446
    %v3448 = vsel %vm3445, %v3447, %v3443
    %v3449 = vmul.f32 %v3055, %v3448
    %v3450 = vrcp.pop %v3160
    %v3451 = vmul.f32 %v3160, %v3450
    %v3452 = vsub.f32 1.0, %v3451
    %v3453 = vmul.f32 %v3450, %v3452
    %v3454 = vadd.f32 %v3450, %v3453
    %vm3455 = vweird.f32 %v3160
    %vm3456 = vweird.f32 %v3450
    %vm3457 = vmor %vm3455, %vm3456
    %v3458 = vsel %vm3457, %v3450, %v3454
    %v3459 = vand.u32 2147483647, %v3160
    %vm3460 = vcmp.eq.f32.partialorder %v3459, 8.507059e+37
    %v3461 = vand.u32 %v3160, 2147483648
    %v3462 = vor.u32 1.1754944e-38, %v3461
    %v3463 = vsel %vm3460, %v3462, %v3458
    %v3464 = vmul.f32 %v3057, %v3463
    %v3465 = vrcp.pop %v3161
    %v3466 = vmul.f32 %v3161, %v3465
    %v3467 = vsub.f32 1.0, %v3466
    %v3468 = vmul.f32 %v3465, %v3467
    %v3469 = vadd.f32 %v3465, %v3468
    %vm3470 = vweird.f32 %v3161
    %vm3471 = vweird.f32 %v3465
    %vm3472 = vmor %vm3470, %vm3471
    %v3473 = vsel %vm3472, %v3465, %v3469
    %v3474 = vand.u32 2147483647, %v3161
    %vm3475 = vcmp.eq.f32.partialorder %v3474, 8.507059e+37
    %v3476 = vand.u32 %v3161, 2147483648
    %v3477 = vor.u32 1.1754944e-38, %v3476
    %v3478 = vsel %vm3475, %v3477, %v3473
    %v3479 = vmul.f32 %v3060, %v3478
    %v3480 = vrcp.pop %v3162
    %v3481 = vmul.f32 %v3162, %v3480
    %v3482 = vsub.f32 1.0, %v3481
    %v3483 = vmul.f32 %v3480, %v3482
    %v3484 = vadd.f32 %v3480, %v3483
    %vm3485 = vweird.f32 %v3162
    %vm3486 = vweird.f32 %v3480
    %vm3487 = vmor %vm3485, %vm3486
    %v3488 = vsel %vm3487, %v3480, %v3484
    %v3489 = vand.u32 2147483647, %v3162
    %vm3490 = vcmp.eq.f32.partialorder %v3489, 8.507059e+37
    %v3491 = vand.u32 %v3162, 2147483648
    %v3492 = vor.u32 1.1754944e-38, %v3491
    %v3493 = vsel %vm3490, %v3492, %v3488
    %v3494 = vmul.f32 %v3062, %v3493
    %v3495 = vrcp.pop %v3163
    %v3496 = vmul.f32 %v3163, %v3495
    %v3497 = vsub.f32 1.0, %v3496
    %v3498 = vmul.f32 %v3495, %v3497
    %v3499 = vadd.f32 %v3495, %v3498
    %vm3500 = vweird.f32 %v3163
    %vm3501 = vweird.f32 %v3495
    %vm3502 = vmor %vm3500, %vm3501
    %v3503 = vsel %vm3502, %v3495, %v3499
    %v3504 = vand.u32 2147483647, %v3163
    %vm3505 = vcmp.eq.f32.partialorder %v3504, 8.507059e+37
    %v3506 = vand.u32 %v3163, 2147483648
    %v3507 = vor.u32 1.1754944e-38, %v3506
    %v3508 = vsel %vm3505, %v3507, %v3503
    %v3509 = vmul.f32 %v3065, %v3508
    %v3510 = vrcp.pop %v3164
    %v3511 = vmul.f32 %v3164, %v3510
    %v3512 = vsub.f32 1.0, %v3511
    %v3513 = vmul.f32 %v3510, %v3512
    %v3514 = vadd.f32 %v3510, %v3513
    %vm3515 = vweird.f32 %v3164
    %vm3516 = vweird.f32 %v3510
    %vm3517 = vmor %vm3515, %vm3516
    %v3518 = vsel %vm3517, %v3510, %v3514
    %v3519 = vand.u32 2147483647, %v3164
    %vm3520 = vcmp.eq.f32.partialorder %v3519, 8.507059e+37
    %v3521 = vand.u32 %v3164, 2147483648
    %v3522 = vor.u32 1.1754944e-38, %v3521
    %v3523 = vsel %vm3520, %v3522, %v3518
    %v3524 = vmul.f32 %v3067, %v3523
    %v3525 = vld [vmem:[%s2] sm:$0x1]
    %v3526 = vld [vmem:[%s2 + $0x1] sm:$0x1]
    %v3527 = vld [vmem:[%s2 + $0x2] sm:$0x1]
    %v3528 = vld [vmem:[%s2 + $0x3] sm:$0x1]
    %v3529 = vlaneseq
    %v3530 = vshrl.u32 %v3529, 7
    %v3531 = vadd.s32 %v3530, 8
    %v3532 = vperm.slane %v3525, 0
    %v3533 = vperm.slane %v3526, 0
    %v3534 = vperm.slane %v3527, 0
    %v3535 = vperm.slane %v3528, 0
    %vm3536 = vcmp.eq.s32.totalorder %v3530, %v3532
    %vm3537 = vcmp.eq.s32.totalorder %v3531, %v3532
    %vm3538 = vcmp.eq.s32.totalorder %v3530, %v3533
    %vm3539 = vcmp.eq.s32.totalorder %v3531, %v3533
    %vm3540 = vcmp.eq.s32.totalorder %v3530, %v3534
    %vm3541 = vcmp.eq.s32.totalorder %v3531, %v3534
    %vm3542 = vcmp.eq.s32.totalorder %v3530, %v3535
    %vm3543 = vcmp.eq.s32.totalorder %v3531, %v3535
    %v3544 = vsel %vm3536, 1, 0
    %v3545 = vsel %vm3537, 1, 0
    %v3546 = vsel %vm3538, 1, 0
    %v3547 = vsel %vm3539, 1, 0
    %v3548 = vsel %vm3540, 1, 0
    %v3549 = vsel %vm3541, 1, 0
    %v3550 = vsel %vm3542, 1, 0
    %v3551 = vsel %vm3543, 1, 0
    %v3552 = vcvt.s32.f32 %v3544
    %v3553 = vcvt.s32.f32 %v3545
    %v3554 = vcvt.s32.f32 %v3546
    %v3555 = vcvt.s32.f32 %v3547
    %v3556 = vcvt.s32.f32 %v3548
    %v3557 = vcvt.s32.f32 %v3549
    %v3558 = vcvt.s32.f32 %v3550
    %v3559 = vcvt.s32.f32 %v3551
    %v3560 = vpack.c.bf16 %v3552, %v3552
    %v3561 = vpack.c.bf16 %v3553, %v3553
    %v3562 = vpack.c.bf16 %v3554, %v3554
    %v3563 = vpack.c.bf16 %v3555, %v3555
    %v3564 = vpack.c.bf16 %v3556, %v3556
    %v3565 = vpack.c.bf16 %v3557, %v3557
    %v3566 = vpack.c.bf16 %v3558, %v3558
    %v3567 = vpack.c.bf16 %v3559, %v3559
    %v3568 = vpack.c.bf16 %v3179, %v3179
    %v3569 = vpack.c.bf16 %v3194, %v3194
    %v3570 = vpack.c.bf16 %v3209, %v3209
    %v3571 = vpack.c.bf16 %v3224, %v3224
    %v3572 = vpack.c.bf16 %v3239, %v3239
    %v3573 = vpack.c.bf16 %v3254, %v3254
    %v3574 = vpack.c.bf16 %v3269, %v3269
    %v3575 = vpack.c.bf16 %v3284, %v3284
    %v3576 = vpack.c.bf16 %v3299, %v3299
    %v3577 = vpack.c.bf16 %v3314, %v3314
    %v3578 = vpack.c.bf16 %v3329, %v3329
    %v3579 = vpack.c.bf16 %v3344, %v3344
    %v3580 = vpack.c.bf16 %v3359, %v3359
    %v3581 = vpack.c.bf16 %v3374, %v3374
    %v3582 = vpack.c.bf16 %v3389, %v3389
    %v3583 = vpack.c.bf16 %v3404, %v3404
    %v3584 = vpack.c.bf16 %v3419, %v3419
    %v3585 = vpack.c.bf16 %v3434, %v3434
    %v3586 = vpack.c.bf16 %v3449, %v3449
    %v3587 = vpack.c.bf16 %v3464, %v3464
    %v3588 = vpack.c.bf16 %v3479, %v3479
    %v3589 = vpack.c.bf16 %v3494, %v3494
    %v3590 = vpack.c.bf16 %v3509, %v3509
    %v3591 = vpack.c.bf16 %v3524, %v3524
    %v3594 = vunpack.c.l.b16 %v3560
    %v3595 = vunpack.c.l.b16 %v3561
    %v3596 = vpack.c.b16 %v3595, %v3594
    %v3603 = vunpack.c.l.b16 %v3568
    %v3604 = vunpack.c.l.b16 %v3569
    %v3605 = vunpack.c.l.b16 %v3570
    %v3606 = vunpack.c.l.b16 %v3571
    %v3607 = vunpack.c.l.b16 %v3572
    %v3608 = vunpack.c.l.b16 %v3573
    %v3609 = vpack.c.b16 %v3604, %v3603
    %v3610 = vpack.c.b16 %v3606, %v3605
    %v3611 = vpack.c.b16 %v3608, %v3607
    %vm3615 = vcmask 392192
    %v3617 = vsel %vm3615, %v3596, 0
    %3619 = vmatpush.bf16.msra.mxu0 0
    %3620 = vmatpush.bf16.msra.mxu0 0
    %3621 = vmatpush.bf16.msra.mxu0 0
    %3622 = vmatpush.bf16.msra.mxu0 0
    %3623 = vmatpush.bf16.msra.mxu0 0
    %3624 = vmatpush.bf16.msra.mxu0 %v3611
    %3625 = vmatpush.bf16.msra.mxu0 %v3610
    %3626 = vmatpush.bf16.msra.mxu0 %v3609
    %3627 = vmatmul.bf16.gmra.mxu0 %v3617
    %v3628 = vpop.f32.mrf.mxu0
    %v3629 = vadd.f32 0.0, %v3628
    %v3630 = vpop.f32.mrf.mxu0
    %v3631 = vadd.f32 0.0, %v3630
    %3632 = vdwg.mxu0
    %v3635 = vunpack.c.l.b16 %v3562
    %v3636 = vunpack.c.l.b16 %v3563
    %v3637 = vpack.c.b16 %v3636, %v3635
    %v3644 = vunpack.c.l.b16 %v3574
    %v3645 = vunpack.c.l.b16 %v3575
    %v3646 = vunpack.c.l.b16 %v3576
    %v3647 = vunpack.c.l.b16 %v3577
    %v3648 = vunpack.c.l.b16 %v3578
    %v3649 = vunpack.c.l.b16 %v3579
    %v3650 = vpack.c.b16 %v3645, %v3644
    %v3651 = vpack.c.b16 %v3647, %v3646
    %v3652 = vpack.c.b16 %v3649, %v3648
    %v3657 = vsel %vm3615, %v3637, 0
    %3659 = vmatpush.bf16.msra.mxu0 0
    %3660 = vmatpush.bf16.msra.mxu0 0
    %3661 = vmatpush.bf16.msra.mxu0 0
    %3662 = vmatpush.bf16.msra.mxu0 0
    %3663 = vmatpush.bf16.msra.mxu0 0
    %3664 = vmatpush.bf16.msra.mxu0 %v3652
    %3665 = vmatpush.bf16.msra.mxu0 %v3651
    %3666 = vmatpush.bf16.msra.mxu0 %v3650
    %3667 = vmatmul.bf16.gmra.mxu0 %v3657
    %v3668 = vpop.f32.mrf.mxu0
    %v3669 = vadd.f32 0.0, %v3668
    %v3670 = vpop.f32.mrf.mxu0
    %v3671 = vadd.f32 0.0, %v3670
    %3672 = vdwg.mxu0
    %v3675 = vunpack.c.l.b16 %v3564
    %v3676 = vunpack.c.l.b16 %v3565
    %v3677 = vpack.c.b16 %v3676, %v3675
    %v3684 = vunpack.c.l.b16 %v3580
    %v3685 = vunpack.c.l.b16 %v3581
    %v3686 = vunpack.c.l.b16 %v3582
    %v3687 = vunpack.c.l.b16 %v3583
    %v3688 = vunpack.c.l.b16 %v3584
    %v3689 = vunpack.c.l.b16 %v3585
    %v3690 = vpack.c.b16 %v3685, %v3684
    %v3691 = vpack.c.b16 %v3687, %v3686
    %v3692 = vpack.c.b16 %v3689, %v3688
    %v3697 = vsel %vm3615, %v3677, 0
    %3699 = vmatpush.bf16.msra.mxu0 0
    %3700 = vmatpush.bf16.msra.mxu0 0
    %3701 = vmatpush.bf16.msra.mxu0 0
    %3702 = vmatpush.bf16.msra.mxu0 0
    %3703 = vmatpush.bf16.msra.mxu0 0
    %3704 = vmatpush.bf16.msra.mxu0 %v3692
    %3705 = vmatpush.bf16.msra.mxu0 %v3691
    %3706 = vmatpush.bf16.msra.mxu0 %v3690
    %3707 = vmatmul.bf16.gmra.mxu0 %v3697
    %v3708 = vpop.f32.mrf.mxu0
    %v3709 = vadd.f32 0.0, %v3708
    %v3710 = vpop.f32.mrf.mxu0
    %v3711 = vadd.f32 0.0, %v3710
    %3712 = vdwg.mxu0
    %v3715 = vunpack.c.l.b16 %v3566
    %v3716 = vunpack.c.l.b16 %v3567
    %v3717 = vpack.c.b16 %v3716, %v3715
    %v3724 = vunpack.c.l.b16 %v3586
    %v3725 = vunpack.c.l.b16 %v3587
    %v3726 = vunpack.c.l.b16 %v3588
    %v3727 = vunpack.c.l.b16 %v3589
    %v3728 = vunpack.c.l.b16 %v3590
    %v3729 = vunpack.c.l.b16 %v3591
    %v3730 = vpack.c.b16 %v3725, %v3724
    %v3731 = vpack.c.b16 %v3727, %v3726
    %v3732 = vpack.c.b16 %v3729, %v3728
    %v3737 = vsel %vm3615, %v3717, 0
    %3739 = vmatpush.bf16.msra.mxu0 0
    %3740 = vmatpush.bf16.msra.mxu0 0
    %3741 = vmatpush.bf16.msra.mxu0 0
    %3742 = vmatpush.bf16.msra.mxu0 0
    %3743 = vmatpush.bf16.msra.mxu0 0
    %3744 = vmatpush.bf16.msra.mxu0 %v3732
    %3745 = vmatpush.bf16.msra.mxu0 %v3731
    %3746 = vmatpush.bf16.msra.mxu0 %v3730
    %3747 = vmatmul.bf16.gmra.mxu0 %v3737
    %v3748 = vpop.f32.mrf.mxu0
    %v3749 = vadd.f32 0.0, %v3748
    %v3750 = vpop.f32.mrf.mxu0
    %v3751 = vadd.f32 0.0, %v3750
    %3752 = vdwg.mxu0
    %v3753 = vadd.f32 %v185, %v3629
    %v3754 = vadd.f32 %v186, %v3631
    %v3755 = vadd.f32 %v187, %v3669
    %v3756 = vadd.f32 %v188, %v3671
    %v3757 = vadd.f32 %v189, %v3709
    %v3758 = vadd.f32 %v190, %v3711
    %v3759 = vadd.f32 %v191, %v3749
    %v3760 = vadd.f32 %v192, %v3751
    %3761 = vadd.xlane.f32.xlu0 %v3753
    %v3762 = vpop.xlane.xlu0 %3761
    %3763 = vadd.xlane.f32.xlu0 %v3754
    %v3764 = vpop.xlane.xlu0 %3763
    %3765 = vadd.xlane.f32.xlu0 %v3755
    %v3766 = vpop.xlane.xlu0 %3765
    %3767 = vadd.xlane.f32.xlu0 %v3756
    %v3768 = vpop.xlane.xlu0 %3767
    %3769 = vadd.xlane.f32.xlu0 %v3757
    %v3770 = vpop.xlane.xlu0 %3769
    %3771 = vadd.xlane.f32.xlu0 %v3758
    %v3772 = vpop.xlane.xlu0 %3771
    %3773 = vadd.xlane.f32.xlu0 %v3759
    %v3774 = vpop.xlane.xlu0 %3773
    %3775 = vadd.xlane.f32.xlu0 %v3760
    %v3776 = vpop.xlane.xlu0 %3775
    %v3777 = vmul.f32 %v3762, 0.03125
    %v3778 = vmul.f32 %v3764, 0.03125
    %v3779 = vmul.f32 %v3766, 0.03125
    %v3780 = vmul.f32 %v3768, 0.03125
    %v3781 = vmul.f32 %v3770, 0.03125
    %v3782 = vmul.f32 %v3772, 0.03125
    %v3783 = vmul.f32 %v3774, 0.03125
    %v3784 = vmul.f32 %v3776, 0.03125
    %v3785 = vsub.f32 %v3753, %v3777
    %v3786 = vsub.f32 %v3754, %v3778
    %v3787 = vsub.f32 %v3755, %v3779
    %v3788 = vsub.f32 %v3756, %v3780
    %v3789 = vsub.f32 %v3757, %v3781
    %v3790 = vsub.f32 %v3758, %v3782
    %v3791 = vsub.f32 %v3759, %v3783
    %v3792 = vsub.f32 %v3760, %v3784
    %v3793 = vmul.f32 %v3785, %v3785
    %v3794 = vmul.f32 %v3786, %v3786
    %v3795 = vmul.f32 %v3787, %v3787
    %v3796 = vmul.f32 %v3788, %v3788
    %v3797 = vmul.f32 %v3789, %v3789
    %v3798 = vmul.f32 %v3790, %v3790
    %v3799 = vmul.f32 %v3791, %v3791
    %v3800 = vmul.f32 %v3792, %v3792
    %3801 = vadd.xlane.f32.xlu0 %v3793
    %v3802 = vpop.xlane.xlu0 %3801
    %3803 = vadd.xlane.f32.xlu0 %v3794
    %v3804 = vpop.xlane.xlu0 %3803
    %3805 = vadd.xlane.f32.xlu0 %v3795
    %v3806 = vpop.xlane.xlu0 %3805
    %3807 = vadd.xlane.f32.xlu0 %v3796
    %v3808 = vpop.xlane.xlu0 %3807
    %3809 = vadd.xlane.f32.xlu0 %v3797
    %v3810 = vpop.xlane.xlu0 %3809
    %3811 = vadd.xlane.f32.xlu0 %v3798
    %v3812 = vpop.xlane.xlu0 %3811
    %3813 = vadd.xlane.f32.xlu0 %v3799
    %v3814 = vpop.xlane.xlu0 %3813
    %3815 = vadd.xlane.f32.xlu0 %v3800
    %v3816 = vpop.xlane.xlu0 %3815
    %v3817 = vmul.f32 %v3777, 96.0
    %v3818 = vmul.f32 %v3778, 96.0
    %v3819 = vmul.f32 %v3779, 96.0
    %v3820 = vmul.f32 %v3780, 96.0
    %v3821 = vmul.f32 %v3781, 96.0
    %v3822 = vmul.f32 %v3782, 96.0
    %v3823 = vmul.f32 %v3783, 96.0
    %v3824 = vmul.f32 %v3784, 96.0
    %v3825 = vmul.f32 %v3817, %v3777
    %v3826 = vmul.f32 %v3818, %v3778
    %v3827 = vmul.f32 %v3819, %v3779
    %v3828 = vmul.f32 %v3820, %v3780
    %v3829 = vmul.f32 %v3821, %v3781
    %v3830 = vmul.f32 %v3822, %v3782
    %v3831 = vmul.f32 %v3823, %v3783
    %v3832 = vmul.f32 %v3824, %v3784
    %v3833 = vsub.f32 %v3802, %v3825
    %v3834 = vsub.f32 %v3804, %v3826
    %v3835 = vsub.f32 %v3806, %v3827
    %v3836 = vsub.f32 %v3808, %v3828
    %v3837 = vsub.f32 %v3810, %v3829
    %v3838 = vsub.f32 %v3812, %v3830
    %v3839 = vsub.f32 %v3814, %v3831
    %v3840 = vsub.f32 %v3816, %v3832
    %v3841 = vmul.f32 %v3833, 0.03125
    %v3842 = vmul.f32 %v3834, 0.03125
    %v3843 = vmul.f32 %v3835, 0.03125
    %v3844 = vmul.f32 %v3836, 0.03125
    %v3845 = vmul.f32 %v3837, 0.03125
    %v3846 = vmul.f32 %v3838, 0.03125
    %v3847 = vmul.f32 %v3839, 0.03125
    %v3848 = vmul.f32 %v3840, 0.03125
    %v3849 = vadd.f32 %v3841, 1e-05
    %v3850 = vadd.f32 %v3842, 1e-05
    %v3851 = vadd.f32 %v3843, 1e-05
    %v3852 = vadd.f32 %v3844, 1e-05
    %v3853 = vadd.f32 %v3845, 1e-05
    %v3854 = vadd.f32 %v3846, 1e-05
    %v3855 = vadd.f32 %v3847, 1e-05
    %v3856 = vadd.f32 %v3848, 1e-05
    %v3857 = vrsqrt.pop %v3849
    %v3858 = vmul.f32 %v3857, %v3849
    %v3859 = vmul.f32 %v3858, %v3857
    %v3860 = vmul.f32 0.5, %v3859
    %v3861 = vsub.f32 1.5, %v3860
    %v3862 = vmul.f32 %v3857, %v3861
    %vm3863 = vweird.f32 %v3849
    %vm3864 = vweird.f32 %v3857
    %vm3865 = vmor %vm3863, %vm3864
    %v3866 = vsel %vm3865, %v3857, %v3862
    %v3867 = vrsqrt.pop %v3850
    %v3868 = vmul.f32 %v3867, %v3850
    %v3869 = vmul.f32 %v3868, %v3867
    %v3870 = vmul.f32 0.5, %v3869
    %v3871 = vsub.f32 1.5, %v3870
    %v3872 = vmul.f32 %v3867, %v3871
    %vm3873 = vweird.f32 %v3850
    %vm3874 = vweird.f32 %v3867
    %vm3875 = vmor %vm3873, %vm3874
    %v3876 = vsel %vm3875, %v3867, %v3872
    %v3877 = vrsqrt.pop %v3851
    %v3878 = vmul.f32 %v3877, %v3851
    %v3879 = vmul.f32 %v3878, %v3877
    %v3880 = vmul.f32 0.5, %v3879
    %v3881 = vsub.f32 1.5, %v3880
    %v3882 = vmul.f32 %v3877, %v3881
    %vm3883 = vweird.f32 %v3851
    %vm3884 = vweird.f32 %v3877
    %vm3885 = vmor %vm3883, %vm3884
    %v3886 = vsel %vm3885, %v3877, %v3882
    %v3887 = vrsqrt.pop %v3852
    %v3888 = vmul.f32 %v3887, %v3852
    %v3889 = vmul.f32 %v3888, %v3887
    %v3890 = vmul.f32 0.5, %v3889
    %v3891 = vsub.f32 1.5, %v3890
    %v3892 = vmul.f32 %v3887, %v3891
    %vm3893 = vweird.f32 %v3852
    %vm3894 = vweird.f32 %v3887
    %vm3895 = vmor %vm3893, %vm3894
    %v3896 = vsel %vm3895, %v3887, %v3892
    %v3897 = vrsqrt.pop %v3853
    %v3898 = vmul.f32 %v3897, %v3853
    %v3899 = vmul.f32 %v3898, %v3897
    %v3900 = vmul.f32 0.5, %v3899
    %v3901 = vsub.f32 1.5, %v3900
    %v3902 = vmul.f32 %v3897, %v3901
    %vm3903 = vweird.f32 %v3853
    %vm3904 = vweird.f32 %v3897
    %vm3905 = vmor %vm3903, %vm3904
    %v3906 = vsel %vm3905, %v3897, %v3902
    %v3907 = vrsqrt.pop %v3854
    %v3908 = vmul.f32 %v3907, %v3854
    %v3909 = vmul.f32 %v3908, %v3907
    %v3910 = vmul.f32 0.5, %v3909
    %v3911 = vsub.f32 1.5, %v3910
    %v3912 = vmul.f32 %v3907, %v3911
    %vm3913 = vweird.f32 %v3854
    %vm3914 = vweird.f32 %v3907
    %vm3915 = vmor %vm3913, %vm3914
    %v3916 = vsel %vm3915, %v3907, %v3912
    %v3917 = vrsqrt.pop %v3855
    %v3918 = vmul.f32 %v3917, %v3855
    %v3919 = vmul.f32 %v3918, %v3917
    %v3920 = vmul.f32 0.5, %v3919
    %v3921 = vsub.f32 1.5, %v3920
    %v3922 = vmul.f32 %v3917, %v3921
    %vm3923 = vweird.f32 %v3855
    %vm3924 = vweird.f32 %v3917
    %vm3925 = vmor %vm3923, %vm3924
    %v3926 = vsel %vm3925, %v3917, %v3922
    %v3927 = vrsqrt.pop %v3856
    %v3928 = vmul.f32 %v3927, %v3856
    %v3929 = vmul.f32 %v3928, %v3927
    %v3930 = vmul.f32 0.5, %v3929
    %v3931 = vsub.f32 1.5, %v3930
    %v3932 = vmul.f32 %v3927, %v3931
    %vm3933 = vweird.f32 %v3856
    %vm3934 = vweird.f32 %v3927
    %vm3935 = vmor %vm3933, %vm3934
    %v3936 = vsel %vm3935, %v3927, %v3932
    %v3937 = vmul.f32 %v3785, %v3866
    %v3938 = vmul.f32 %v3786, %v3876
    %v3939 = vmul.f32 %v3787, %v3886
    %v3940 = vmul.f32 %v3788, %v3896
    %v3941 = vmul.f32 %v3789, %v3906
    %v3942 = vmul.f32 %v3790, %v3916
    %v3943 = vmul.f32 %v3791, %v3926
    %v3944 = vmul.f32 %v3792, %v3936
    %v3945 = vld [vmem:[%s7 + $0xe] sm:$0x1]
    %v3946 = vperm.slane %v3945, 0
    %v3947 = vmul.f32 %v3937, %v3946
    %v3948 = vmul.f32 %v3938, %v3946
    %v3949 = vmul.f32 %v3939, %v3946
    %v3950 = vmul.f32 %v3940, %v3946
    %v3951 = vmul.f32 %v3941, %v3946
    %v3952 = vmul.f32 %v3942, %v3946
    %v3953 = vmul.f32 %v3943, %v3946
    %v3954 = vmul.f32 %v3944, %v3946
    %v3955 = vld [vmem:[%s7 + $0xf] sm:$0x1]
    %v3956 = vperm.slane %v3955, 0
    %v3957 = vadd.f32 %v3947, %v3956
    %v3958 = vadd.f32 %v3948, %v3956
    %v3959 = vadd.f32 %v3949, %v3956
    %v3960 = vadd.f32 %v3950, %v3956
    %v3961 = vadd.f32 %v3951, %v3956
    %v3962 = vadd.f32 %v3952, %v3956
    %v3963 = vadd.f32 %v3953, %v3956
    %v3964 = vadd.f32 %v3954, %v3956
    %v3965 = vmax.f32 %v3957, 0.0
    %v3966 = vmax.f32 %v3958, 0.0
    %v3967 = vmax.f32 %v3959, 0.0
    %v3968 = vmax.f32 %v3960, 0.0
    %v3969 = vmax.f32 %v3961, 0.0
    %v3970 = vmax.f32 %v3962, 0.0
    %v3971 = vmax.f32 %v3963, 0.0
    %v3972 = vmax.f32 %v3964, 0.0
    %v3973 = vpack.c.bf16 %v3966, %v3965
    %v3974 = vpack.c.bf16 %v3968, %v3967
    %v3975 = vpack.c.bf16 %v3970, %v3969
    %v3976 = vpack.c.bf16 %v3972, %v3971
    %v3977 = vld [vmem:[%s6 + $0x10] sm:$0xf]
    %v3978 = vld [vmem:[%s6 + $0x24] sm:$0xf]
    %v3979 = vld [vmem:[%s6 + $0x38] sm:$0xf]
    %v3980 = vld [vmem:[%s6 + $0x4c] sm:$0xf]
    %v3981 = vld [vmem:[%s6 + $0x60] sm:$0xf]
    %v3982 = vld [vmem:[%s6 + $0x74] sm:$0xf]
    %v3983 = vld [vmem:[%s6 + $0x88] sm:$0xf]
    %v3984 = vld [vmem:[%s6 + $0x9c] sm:$0xf]
    %v3985 = vld [vmem:[%s6 + $0xb0] sm:$0xf]
    %v3986 = vld [vmem:[%s6 + $0xc4] sm:$0xf]
    %v3987 = vld [vmem:[%s6 + $0xd8] sm:$0xf]
    %v3988 = vld [vmem:[%s6 + $0xec] sm:$0xf]
    %v3989 = vld [vmem:[%s6 + $0x100] sm:$0xf]
    %v3990 = vld [vmem:[%s6 + $0x114] sm:$0xf]
    %v3991 = vld [vmem:[%s6 + $0x128] sm:$0xf]
    %v3992 = vld [vmem:[%s6 + $0x13c] sm:$0xf]
    %v3993 = vld [vmem:[%s7 + $0x10] sm:$0x1]
    %v3994 = vperm.slane %v3993, 0
    %v4011 = vunpack.c.l.b16 %v3977
    %v4012 = vunpack.c.l.b16 %v3978
    %v4013 = vunpack.c.l.b16 %v3979
    %v4014 = vunpack.c.l.b16 %v3980
    %v4015 = vunpack.c.l.b16 %v3981
    %v4016 = vunpack.c.l.b16 %v3982
    %v4017 = vunpack.c.l.b16 %v3983
    %v4018 = vunpack.c.l.b16 %v3984
    %v4019 = vunpack.c.l.b16 %v3985
    %v4020 = vunpack.c.l.b16 %v3986
    %v4021 = vunpack.c.l.b16 %v3987
    %v4022 = vunpack.c.l.b16 %v3988
    %v4023 = vunpack.c.l.b16 %v3989
    %v4024 = vunpack.c.l.b16 %v3990
    %v4025 = vunpack.c.l.b16 %v3991
    %v4026 = vunpack.c.l.b16 %v3992
    %v4027 = vpack.c.b16 %v4012, %v4011
    %v4028 = vpack.c.b16 %v4014, %v4013
    %v4029 = vpack.c.b16 %v4016, %v4015
    %v4030 = vpack.c.b16 %v4018, %v4017
    %v4031 = vpack.c.b16 %v4020, %v4019
    %v4032 = vpack.c.b16 %v4022, %v4021
    %v4033 = vpack.c.b16 %v4024, %v4023
    %v4034 = vpack.c.b16 %v4026, %v4025
    %4043 = vmatpush.bf16.msra.mxu0 %v4034
    %4044 = vmatpush.bf16.msra.mxu0 %v4033
    %4045 = vmatpush.bf16.msra.mxu0 %v4032
    %4046 = vmatpush.bf16.msra.mxu0 %v4031
    %4047 = vmatpush.bf16.msra.mxu0 %v4030
    %4048 = vmatpush.bf16.msra.mxu0 %v4029
    %4049 = vmatpush.bf16.msra.mxu0 %v4028
    %4050 = vmatpush.bf16.msra.mxu0 %v4027
    %4051 = vmatmul.bf16.gmra.mxu0 %v3973
    %v4052 = vpop.f32.mrf.mxu0
    %v4053 = vadd.f32 %v3994, %v4052
    %v4054 = vpop.f32.mrf.mxu0
    %v4055 = vadd.f32 %v3994, %v4054
    %4056 = vmatmul.bf16.gmra.mxu0 %v3974
    %v4057 = vpop.f32.mrf.mxu0
    %v4058 = vadd.f32 %v3994, %v4057
    %v4059 = vpop.f32.mrf.mxu0
    %v4060 = vadd.f32 %v3994, %v4059
    %4061 = vmatmul.bf16.gmra.mxu0 %v3975
    %v4062 = vpop.f32.mrf.mxu0
    %v4063 = vadd.f32 %v3994, %v4062
    %v4064 = vpop.f32.mrf.mxu0
    %v4065 = vadd.f32 %v3994, %v4064
    %4066 = vmatmul.bf16.gmra.mxu0 %v3976
    %v4067 = vpop.f32.mrf.mxu0
    %v4068 = vadd.f32 %v3994, %v4067
    %v4069 = vpop.f32.mrf.mxu0
    %v4070 = vadd.f32 %v3994, %v4069
    %4071 = vdwg.mxu0
    %4072 = vst [vmem:[#allocation2] sm:$0xff] %v4053
    %4073 = vst [vmem:[#allocation2 + $0x8] sm:$0xff] %v4055
    %4074 = vst [vmem:[#allocation2 + $0x10] sm:$0xff] %v4058
    %4075 = vst [vmem:[#allocation2 + $0x18] sm:$0xff] %v4060
    %4076 = vst [vmem:[#allocation2 + $0x20] sm:$0xff] %v4063
    %4077 = vst [vmem:[#allocation2 + $0x28] sm:$0xff] %v4065
    %4078 = vst [vmem:[#allocation2 + $0x30] sm:$0xff] %v4068
    %4079 = vst [vmem:[#allocation2 + $0x38] sm:$0xff] %v4070
    // Predicated region
    $region34: #{tpu_custom_call.1} parent=1 // pred_check
      _
    $region35: #{tpu_custom_call.1} parent=1 // pred_check_branch
      %4081 = sbr.rel (0) target = $region37
    $region36: #{tpu_custom_call.1} parent=1 // pred_region
      %4083 = vsyncadd [#allocation3], 0
      %s4084 = sshll.u32 [#allocation2], 4
      %s4085 = int_to_ptr.vmem [resolvable:$true] %s4084
      %s4086 = sshll.u32 %s8, 4
      %s4087 = int_to_ptr.hbm [resolvable:$true] %s4086
      %4092 = dma.vmem_to_hbm [thread:$0]  %s4085, 1024, %s4087, [#allocation3], 128, 128, 8
    $region37: #{tpu_custom_call.1} parent=1 // pred_fallthru
      _
    // Predicated region
    $region38: #{tpu_custom_call.1} parent=1 // pred_check
      _
    $region39: #{tpu_custom_call.1} parent=1 // pred_check_branch
      %4094 = sbr.rel (0) target = $region41
    $region40: #{tpu_custom_call.1} parent=1 // pred_region
      %4096 = dma.done [#allocation3], 1024
    $region41: #{tpu_custom_call.1} parent=1 // pred_fallthru
      _
    %4097 = vsyncpa [#allocation3], 1

</llo_original>
